<compile_context>
chip_gen: v6e
topology: v6e:2x2x1
jax: 0.10.0
libtpu: 0.0.40
codegen_flags: <defaults>
</compile_context>

<pallas_src>
import jax
import jax.numpy as jnp
from jax import lax
from jax.experimental import pallas as pl
from jax.experimental.pallas import tpu as pltpu

EPS = 1e-5
LANE = 128


def _round_up(x, m):
    return (x + m - 1) // m * m


def _row_tile(m, target=512):
    """Largest row-tile <= target that divides m (multiple of 8), else the whole slab."""
    if m <= target:
        return m
    for t in range(target, 7, -8):
        if m % t == 0:
            return t
    return m


# --------------------------------------------------------------------------------------
# Tiled BatchNorm statistics -> per-channel (scale, shift), accumulated across an
# "arbitrary" row-grid axis (P3 accumulator pattern).  scale = gamma / sqrt(var + eps),
# shift = beta - mean * scale, so BN+ReLU inside the conv kernel is a single FMA + max.
# --------------------------------------------------------------------------------------
def _bn_scale_shift(x2d, gamma_p, beta_p):
    m, c = x2d.shape
    tm = _row_tile(m)
    inv_m = 1.0 / float(m)

    def kernel(x_ref, g_ref, b_ref, scale_ref, shift_ref, sum_ref, ssq_ref):
        step = pl.program_id(0)

        @pl.when(step == 0)
        def _():
            sum_ref[...] = jnp.zeros_like(sum_ref)
            ssq_ref[...] = jnp.zeros_like(ssq_ref)

        x = x_ref[...].astype(jnp.float32)
        sum_ref[...] += jnp.sum(x, axis=0, keepdims=True)
        ssq_ref[...] += jnp.sum(x * x, axis=0, keepdims=True)

        @pl.when(step == pl.num_programs(0) - 1)
        def _():
            mean = sum_ref[...] * inv_m
            var = ssq_ref[...] * inv_m - mean * mean          # biased var (PyTorch train BN)
            scale = g_ref[...] * lax.rsqrt(var + EPS)
            scale_ref[...] = scale
            shift_ref[...] = b_ref[...] - mean * scale

    return pl.pallas_call(
        kernel,
        out_shape=(jax.ShapeDtypeStruct((1, c), jnp.float32),
                   jax.ShapeDtypeStruct((1, c), jnp.float32)),
        grid_spec=pltpu.PrefetchScalarGridSpec(
            num_scalar_prefetch=0,
            grid=(m // tm,),
            in_specs=[pl.BlockSpec((tm, c), lambda i: (i, 0)),
                      pl.BlockSpec((1, c), lambda i: (0, 0)),
                      pl.BlockSpec((1, c), lambda i: (0, 0))],
            out_specs=[pl.BlockSpec((1, c), lambda i: (0, 0)),
                       pl.BlockSpec((1, c), lambda i: (0, 0))],
            scratch_shapes=[pltpu.VMEM((1, c), jnp.float32),
                            pltpu.VMEM((1, c), jnp.float32)]),
        compiler_params=pltpu.CompilerParams(dimension_semantics=("arbitrary",)),
    )(x2d, gamma_p.reshape(1, c), beta_p.reshape(1, c))


# --------------------------------------------------------------------------------------
# Fused  BN(scale/shift) + ReLU + 3x3 conv (pad=1, stride s)  [+ fused residual add].
#
# Input x_ph is phase-decomposed:  x_ph[n, p*s+q, io, jo, c] = x[n, s*io+p, s*jo+q, c],
# so strided tap sampling becomes static unit-stride slices of a zero-padded VMEM scratch.
# Grid = (batch,), marked "parallel" (megacore).  im2col is never materialized; the 9 tap
# matmuls (bf16 x bf16 -> f32) accumulate in registers.
# --------------------------------------------------------------------------------------
def _fused_conv3x3(x_ph, scale, shift, w9, *, stride, res_ph=None, res_w=None):
    n, ss, ho, wo, cin_p = x_ph.shape
    cout_p = w9.shape[-1]
    s = stride
    assert ss == s * s

    have_res = res_ph is not None
    have_res_w = res_w is not None
    if have_res:
        rn, rss, rhs, rws, rcp = res_ph.shape
        assert rn == n and rhs == ho and rws == wo
        if not have_res_w:
            assert rcp == cout_p

    def kernel(*refs):
        if have_res and have_res_w:
            x_ref, sc_ref, sh_ref, w_ref, r_ref, rw_ref, o_ref, pad_ref = refs
        elif have_res:
            x_ref, sc_ref, sh_ref, w_ref, r_ref, o_ref, pad_ref = refs
        else:
            x_ref, sc_ref, sh_ref, w_ref, o_ref, pad_ref = refs

        # ---- fused BatchNorm (precomputed scale/shift) + ReLU on the input tile (f32)
        x = x_ref[0].astype(jnp.float32)                       # (s*s, Ho, Wo, Cin_p)
        h = jnp.maximum(x * sc_ref[0] + sh_ref[0], 0.0)

        # ---- zero-padded, phase-decomposed activation tile in VMEM
        pad_ref[...] = jnp.zeros(pad_ref.shape, pad_ref.dtype)
        pad_ref[:, 1:1 + ho, 1:1 + wo, :] = h

        # ---- fused residual: accumulator starts from it (never written to HBM separately)
        if have_res:
            if have_res_w:                      # 1x1 stride-s projection shortcut (bf16 MXU)
                r = r_ref[0, 0].astype(jnp.bfloat16).reshape(ho * wo, rcp)
                acc = jnp.dot(r, rw_ref[...], preferred_element_type=jnp.float32)
            else:                               # identity shortcut, exact f32 add
                acc = r_ref[0, 0].astype(jnp.float32).reshape(ho * wo, cout_p)
        else:
            acc = jnp.zeros((ho * wo, cout_p), jnp.float32)

        # ---- 3x3 conv as 9 tap matmuls (bf16 inputs, f32 accumulation)
        for dh in range(3):
            a, p = divmod(dh - 1, s)
            for dw in range(3):
                b, q = divmod(dw - 1, s)
                patch = pad_ref[p * s + q, 1 + a:1 + a + ho, 1 + b:1 + b + wo, :]
                acc = acc + jnp.dot(
                    patch.reshape(ho * wo, cin_p).astype(jnp.bfloat16),
                    w_ref[dh * 3 + dw],
                    preferred_element_type=jnp.float32)

        o_ref[0] = acc.reshape(ho, wo, cout_p).astype(o_ref.dtype)

    in_specs = [
        pl.BlockSpec((1, ss, ho, wo, cin_p), lambda i: (i, 0, 0, 0, 0)),
        pl.BlockSpec((1, cin_p), lambda i: (0, 0)),
        pl.BlockSpec((1, cin_p), lambda i: (0, 0)),
        pl.BlockSpec((9, cin_p, cout_p), lambda i: (0, 0, 0)),
    ]
    args = [x_ph, scale.reshape(1, cin_p), shift.reshape(1, cin_p), w9]
    if have_res:
        # only phase (0,0) of the residual source is DMA'd (that IS the stride-s 1x1 sampling)
        in_specs.append(pl.BlockSpec((1, 1, rhs, rws, rcp), lambda i: (i, 0, 0, 0, 0)))
        args.append(res_ph)
        if have_res_w:
            in_specs.append(pl.BlockSpec((rcp, cout_p), lambda i: (0, 0)))
            args.append(res_w)

    return pl.pallas_call(
        kernel,
        out_shape=jax.ShapeDtypeStruct((n, ho, wo, cout_p), jnp.float32),
        grid_spec=pltpu.PrefetchScalarGridSpec(
            num_scalar_prefetch=0,
            grid=(n,),
            in_specs=in_specs,
            out_specs=pl.BlockSpec((1, ho, wo, cout_p), lambda i: (i, 0, 0, 0)),
            scratch_shapes=[pltpu.VMEM((ss, ho + 2, wo + 2, cin_p), jnp.float32)]),
        compiler_params=pltpu.CompilerParams(dimension_semantics=("parallel",)),
    )(*args)


# --------------------------------------------------------------------------------------
# Parameter prep (lane-dense, MXU-friendly layouts; bf16 weights)
# --------------------------------------------------------------------------------------
def _prep_conv3x3_w(w, cin_p, cout_p):
    cout, cin = w.shape[0], w.shape[1]
    w_ = jnp.transpose(w, (2, 3, 1, 0))                          # (3, 3, Cin, Cout)  HWIO
    w_ = jnp.pad(w_, ((0, 0), (0, 0), (0, cin_p - cin), (0, cout_p - cout)))
    return w_.reshape(9, cin_p, cout_p).astype(jnp.bfloat16)


# --------------------------------------------------------------------------------------
# BasicBlock forward
# --------------------------------------------------------------------------------------
def basic_block_forward(x_nchw, params, stride):
    n, cin, h, w = x_nchw.shape
    cout = params['conv1_w'].shape[0]
    s = stride
    assert h % s == 0 and w % s == 0
    ho, wo = h // s, w // s

    has_shortcut = 'shortcut_w' in params
    if not has_shortcut:
        assert s == 1 and cin == cout, "identity shortcut needs stride==1 and Cin==Cout"

    cin_p = _round_up(cin, LANE)
    cout_p = _round_up(cout, LANE)

    # One layout pass: NCHW -> NHWC, zero-pad channels to a full 128-lane tile, and
    # phase-decompose the spatial dims (free reshapes; XLA fuses this into one copy).
    x_nhwc = jnp.transpose(x_nchw, (0, 2, 3, 1))
    x_nhwc = jnp.pad(x_nhwc, ((0, 0), (0, 0), (0, 0), (0, cin_p - cin)))
    x_ph = x_nhwc.reshape(n, ho, s, wo, s, cin_p)
    x_ph = jnp.transpose(x_ph, (0, 2, 4, 1, 3, 5)).reshape(n, s * s, ho, wo, cin_p)

    g1 = jnp.pad(params['bn1_gamma'], (0, cin_p - cin)).astype(jnp.float32)
    b1 = jnp.pad(params['bn1_beta'], (0, cin_p - cin)).astype(jnp.float32)
    g2 = jnp.pad(params['bn2_gamma'], (0, cout_p - cout)).astype(jnp.float32)
    b2 = jnp.pad(params['bn2_beta'], (0, cout_p - cout)).astype(jnp.float32)
    w1 = _prep_conv3x3_w(params['conv1_w'], cin_p, cout_p)
    w2 = _prep_conv3x3_w(params['conv2_w'], cout_p, cout_p)

    wsc = None
    if has_shortcut:
        wsc = jnp.transpose(params['shortcut_w'].reshape(cout, cin), (1, 0))
        wsc = jnp.pad(wsc, ((0, cin_p - cin), (0, cout_p - cout))).astype(jnp.bfloat16)

    # BN1 stats -> scale/shift (tiled Pallas reduction; training-mode batch statistics)
    scale1, shift1 = _bn_scale_shift(x_ph.reshape(-1, cin_p), g1, b1)

    # BN1 + ReLU + conv1 (stride s), fully fused: h1 never hits HBM
    c1 = _fused_conv3x3(x_ph, scale1, shift1, w1, stride=s)       # (N, Ho, Wo, Cout_p) f32

    # BN2 stats on conv1's output
    scale2, shift2 = _bn_scale_shift(c1.reshape(-1, cout_p), g2, b2)

    # BN2 + ReLU + conv2 (stride 1) + fused residual (projection or identity)
    c1_ph = c1.reshape(n, 1, ho, wo, cout_p)
    out_p = _fused_conv3x3(c1_ph, scale2, shift2, w2, stride=1,
                           res_ph=x_ph, res_w=wsc)

    out = out_p[:, :, :, :cout]
    return jnp.transpose(out, (0, 3, 1, 2))                       # back to NCHW
    # TODO(synk): BatchNorm running-mean/var buffer updates (training side effect) are not modeled.


# --------------------------------------------------------------------------------------
# Pure-JAX f32 reference (same semantics as the PyTorch module in training mode)
# --------------------------------------------------------------------------------------
def ref_forward(x_nchw, params, stride):
    x = jnp.transpose(x_nchw, (0, 2, 3, 1))

    def bn_relu(hh, g, b):
        m = jnp.mean(hh, axis=(0, 1, 2))
        v = jnp.var(hh, axis=(0, 1, 2))
        return jnp.maximum((hh - m) * lax.rsqrt(v + EPS) * g + b, 0.0)

    def conv(hh, ww, s, p):
        return lax.conv_general_dilated(
            hh, jnp.transpose(ww, (2, 3, 1, 0)),
            window_strides=(s, s), padding=[(p, p), (p, p)],
            dimension_numbers=('NHWC', 'HWIO', 'NHWC'))

    hh = bn_relu(x, params['bn1_gamma'], params['bn1_beta'])
    hh = conv(hh, params['conv1_w'], stride, 1)
    hh = bn_relu(hh, params['bn2_gamma'], params['bn2_beta'])
    hh = conv(hh, params['conv2_w'], 1, 1)
    res = conv(x, params['shortcut_w'], stride, 0) if 'shortcut_w' in params else x
    return jnp.transpose(hh + res, (0, 3, 1, 2))


# --------------------------------------------------------------------------------------
if __name__ == "__main__":
    in_ch, out_ch, stride = 4, 8, 2
    n, h, w = 2, 16, 16

    key = jax.random.PRNGKey(0)
    ks = jax.random.split(key, 8)
    params = {
        'bn1_gamma': 1.0 + 0.1 * jax.random.normal(ks[0], (in_ch,), jnp.float32),
        'bn1_beta': 0.1 * jax.random.normal(ks[1], (in_ch,), jnp.float32),
        'conv1_w': 0.1 * jax.random.normal(ks[2], (out_ch, in_ch, 3, 3), jnp.float32),
        'bn2_gamma': 1.0 + 0.1 * jax.random.normal(ks[3], (out_ch,), jnp.float32),
        'bn2_beta': 0.1 * jax.random.normal(ks[4], (out_ch,), jnp.float32),
        'conv2_w': 0.1 * jax.random.normal(ks[5], (out_ch, out_ch, 3, 3), jnp.float32),
    }
    if stride != 1 or in_ch != out_ch:
        params['shortcut_w'] = 0.1 * jax.random.normal(ks[6], (out_ch, in_ch, 1, 1), jnp.float32)

    x = jax.random.normal(ks[7], (n, in_ch, h, w), jnp.float32)

    fwd = jax.jit(lambda xx, pp: basic_block_forward(xx, pp, stride))
    out = jax.block_until_ready(fwd(x, params))
    ref = jax.block_until_ready(ref_forward(x, params, stride))

    assert out.shape == (n, out_ch, h // stride, w // stride), out.shape
    # MXU dots run on bf16 inputs (f32 accumulation); compare against the f32 reference
    # with a tolerance that covers bf16 input rounding.
    assert jnp.allclose(out, ref, atol=5e-2, rtol=5e-2), float(jnp.max(jnp.abs(out - ref)))

    print("KERNEL_OK")
</pallas_src>

<mosaic_0001>
module attributes {stable_mosaic.version = 11 : i64} {
  func.func @kernel(%arg0: i32, %arg1: memref<1x4x8x8x128xf32, #tpu.memory_space<vmem>>, %arg2: memref<1x128xf32, #tpu.memory_space<vmem>>, %arg3: memref<1x128xf32, #tpu.memory_space<vmem>>, %arg4: memref<9x128x128xbf16, #tpu.memory_space<vmem>>, %arg5: memref<1x8x8x128xf32, #tpu.memory_space<vmem>>, %arg6: memref<4x10x10x128xf32, #tpu.memory_space<vmem>>) attributes {dimension_semantics = [#tpu.dimension_semantics<parallel>], iteration_bounds = array<i64: 2>, scalar_prefetch = 0 : i64, scratch_operands = 1 : i64, tpu.core_type = #tpu.core_type<tc>, window_params = [{transform_indices = @transform_0, window_bounds = array<i64: 1, 4, 8, 8, 128>}, {pipeline_mode = #tpu.pipeline_mode<synchronous>, transform_indices = @transform_1, window_bounds = array<i64: 1, 128>}, {pipeline_mode = #tpu.pipeline_mode<synchronous>, transform_indices = @transform_2, window_bounds = array<i64: 1, 128>}, {pipeline_mode = #tpu.pipeline_mode<synchronous>, transform_indices = @transform_3, window_bounds = array<i64: 9, 128, 128>}, {transform_indices = @transform_4, window_bounds = array<i64: 1, 8, 8, 128>}]} {
    %c0 = arith.constant 0 : index
    %c0_0 = arith.constant 0 : index
    %c0_1 = arith.constant 0 : index
    %c0_2 = arith.constant 0 : index
    %c0_3 = arith.constant 0 : index
    %0 = vector.load %arg1[%c0, %c0_0, %c0_1, %c0_2, %c0_3] : memref<1x4x8x8x128xf32, #tpu.memory_space<vmem>>, vector<1x4x8x8x128xf32>
    %1 = vector.shape_cast %0 : vector<1x4x8x8x128xf32> to vector<4x8x8x128xf32>
    %c0_4 = arith.constant 0 : index
    %c0_5 = arith.constant 0 : index
    %2 = vector.load %arg2[%c0_4, %c0_5] : memref<1x128xf32, #tpu.memory_space<vmem>>, vector<1x128xf32>
    %3 = vector.shape_cast %2 : vector<1x128xf32> to vector<128xf32>
    %4 = vector.shape_cast %3 : vector<128xf32> to vector<1x1x1x128xf32>
    %5 = vector.broadcast %4 : vector<1x1x1x128xf32> to vector<4x8x8x128xf32>
    %6 = arith.mulf %1, %5 : vector<4x8x8x128xf32>
    %c0_6 = arith.constant 0 : index
    %c0_7 = arith.constant 0 : index
    %7 = vector.load %arg3[%c0_6, %c0_7] : memref<1x128xf32, #tpu.memory_space<vmem>>, vector<1x128xf32>
    %8 = vector.shape_cast %7 : vector<1x128xf32> to vector<128xf32>
    %9 = vector.shape_cast %8 : vector<128xf32> to vector<1x1x1x128xf32>
    %10 = vector.broadcast %9 : vector<1x1x1x128xf32> to vector<4x8x8x128xf32>
    %11 = arith.addf %6, %10 : vector<4x8x8x128xf32>
    %cst = arith.constant 0.000000e+00 : f32
    %12 = vector.broadcast %cst : f32 to vector<4x8x8x128xf32>
    %13 = arith.maximumf %11, %12 : vector<4x8x8x128xf32>
    %cst_8 = arith.constant 0.000000e+00 : f32
    %14 = vector.broadcast %cst_8 : f32 to vector<4x10x10x128xf32>
    %c0_9 = arith.constant 0 : index
    %c0_10 = arith.constant 0 : index
    %c0_11 = arith.constant 0 : index
    %c0_12 = arith.constant 0 : index
    %15 = vector.load %arg6[%c0_9, %c0_10, %c0_11, %c0_12] : memref<4x10x10x128xf32, #tpu.memory_space<vmem>>, vector<4x10x10x128xf32>
    tpu.vector_store %arg6[%c0_9, %c0_10, %c0_11, %c0_12], %14 {strides = array<i32>} : memref<4x10x10x128xf32, #tpu.memory_space<vmem>>, vector<4x10x10x128xf32>,
    %c0_13 = arith.constant 0 : index
    %c1 = arith.constant 1 : index
    %c1_14 = arith.constant 1 : index
    %c0_15 = arith.constant 0 : index
    %16 = vector.load %arg6[%c0_13, %c1, %c1_14, %c0_15] : memref<4x10x10x128xf32, #tpu.memory_space<vmem>>, vector<4x8x8x128xf32>
    tpu.vector_store %arg6[%c0_13, %c1, %c1_14, %c0_15], %13 {strides = array<i32>} : memref<4x10x10x128xf32, #tpu.memory_space<vmem>>, vector<4x8x8x128xf32>,
    %cst_16 = arith.constant 0.000000e+00 : f32
    %17 = vector.broadcast %cst_16 : f32 to vector<64x128xf32>
    %c3 = arith.constant 3 : index
    %c0_17 = arith.constant 0 : index
    %c0_18 = arith.constant 0 : index
    %c0_19 = arith.constant 0 : index
    %18 = vector.load %arg6[%c3, %c0_17, %c0_18, %c0_19] : memref<4x10x10x128xf32, #tpu.memory_space<vmem>>, vector<1x8x8x128xf32>
    %19 = vector.shape_cast %18 : vector<1x8x8x128xf32> to vector<8x8x128xf32>
    %20 = vector.shape_cast %19 : vector<8x8x128xf32> to vector<64x128xf32>
    %21 = arith.truncf %20 : vector<64x128xf32> to vector<64x128xbf16>
    %c0_20 = arith.constant 0 : index
    %c0_21 = arith.constant 0 : index
    %c0_22 = arith.constant 0 : index
    %22 = vector.load %arg4[%c0_20, %c0_21, %c0_22] : memref<9x128x128xbf16, #tpu.memory_space<vmem>>, vector<1x128x128xbf16>
    %23 = vector.shape_cast %22 : vector<1x128x128xbf16> to vector<128x128xbf16>
    %cst_23 = arith.constant dense<0.000000e+00> : vector<64x128xf32>
    %24 = tpu.matmul %21, %23, %cst_23 {dimension_numbers = #tpu.dot_dimension_numbers<[1], [0], [0], [1], [0, 0, 1, 1], [], []>} : vector<64x128xbf16>, vector<128x128xbf16>, vector<64x128xf32> -> vector<64x128xf32>
    %25 = arith.addf %17, %24 : vector<64x128xf32>
    %c2 = arith.constant 2 : index
    %c0_24 = arith.constant 0 : index
    %c1_25 = arith.constant 1 : index
    %c0_26 = arith.constant 0 : index
    %26 = vector.load %arg6[%c2, %c0_24, %c1_25, %c0_26] : memref<4x10x10x128xf32, #tpu.memory_space<vmem>>, vector<1x8x8x128xf32>
    %27 = vector.shape_cast %26 : vector<1x8x8x128xf32> to vector<8x8x128xf32>
    %28 = vector.shape_cast %27 : vector<8x8x128xf32> to vector<64x128xf32>
    %29 = arith.truncf %28 : vector<64x128xf32> to vector<64x128xbf16>
    %c1_27 = arith.constant 1 : index
    %c0_28 = arith.constant 0 : index
    %c0_29 = arith.constant 0 : index
    %30 = vector.load %arg4[%c1_27, %c0_28, %c0_29] : memref<9x128x128xbf16, #tpu.memory_space<vmem>>, vector<1x128x128xbf16>
    %31 = vector.shape_cast %30 : vector<1x128x128xbf16> to vector<128x128xbf16>
    %cst_30 = arith.constant dense<0.000000e+00> : vector<64x128xf32>
    %32 = tpu.matmul %29, %31, %cst_30 {dimension_numbers = #tpu.dot_dimension_numbers<[1], [0], [0], [1], [0, 0, 1, 1], [], []>} : vector<64x128xbf16>, vector<128x128xbf16>, vector<64x128xf32> -> vector<64x128xf32>
    %33 = arith.addf %25, %32 : vector<64x128xf32>
    %c3_31 = arith.constant 3 : index
    %c0_32 = arith.constant 0 : index
    %c1_33 = arith.constant 1 : index
    %c0_34 = arith.constant 0 : index
    %34 = vector.load %arg6[%c3_31, %c0_32, %c1_33, %c0_34] : memref<4x10x10x128xf32, #tpu.memory_space<vmem>>, vector<1x8x8x128xf32>
    %35 = vector.shape_cast %34 : vector<1x8x8x128xf32> to vector<8x8x128xf32>
    %36 = vector.shape_cast %35 : vector<8x8x128xf32> to vector<64x128xf32>
    %37 = arith.truncf %36 : vector<64x128xf32> to vector<64x128xbf16>
    %c2_35 = arith.constant 2 : index
    %c0_36 = arith.constant 0 : index
    %c0_37 = arith.constant 0 : index
    %38 = vector.load %arg4[%c2_35, %c0_36, %c0_37] : memref<9x128x128xbf16, #tpu.memory_space<vmem>>, vector<1x128x128xbf16>
    %39 = vector.shape_cast %38 : vector<1x128x128xbf16> to vector<128x128xbf16>
    %cst_38 = arith.constant dense<0.000000e+00> : vector<64x128xf32>
    %40 = tpu.matmul %37, %39, %cst_38 {dimension_numbers = #tpu.dot_dimension_numbers<[1], [0], [0], [1], [0, 0, 1, 1], [], []>} : vector<64x128xbf16>, vector<128x128xbf16>, vector<64x128xf32> -> vector<64x128xf32>
    %41 = arith.addf %33, %40 : vector<64x128xf32>
    %c1_39 = arith.constant 1 : index
    %c1_40 = arith.constant 1 : index
    %c0_41 = arith.constant 0 : index
    %c0_42 = arith.constant 0 : index
    %42 = vector.load %arg6[%c1_39, %c1_40, %c0_41, %c0_42] : memref<4x10x10x128xf32, #tpu.memory_space<vmem>>, vector<1x8x8x128xf32>
    %43 = vector.shape_cast %42 : vector<1x8x8x128xf32> to vector<8x8x128xf32>
    %44 = vector.shape_cast %43 : vector<8x8x128xf32> to vector<64x128xf32>
    %45 = arith.truncf %44 : vector<64x128xf32> to vector<64x128xbf16>
    %c3_43 = arith.constant 3 : index
    %c0_44 = arith.constant 0 : index
    %c0_45 = arith.constant 0 : index
    %46 = vector.load %arg4[%c3_43, %c0_44, %c0_45] : memref<9x128x128xbf16, #tpu.memory_space<vmem>>, vector<1x128x128xbf16>
    %47 = vector.shape_cast %46 : vector<1x128x128xbf16> to vector<128x128xbf16>
    %cst_46 = arith.constant dense<0.000000e+00> : vector<64x128xf32>
    %48 = tpu.matmul %45, %47, %cst_46 {dimension_numbers = #tpu.dot_dimension_numbers<[1], [0], [0], [1], [0, 0, 1, 1], [], []>} : vector<64x128xbf16>, vector<128x128xbf16>, vector<64x128xf32> -> vector<64x128xf32>
    %49 = arith.addf %41, %48 : vector<64x128xf32>
    %c0_47 = arith.constant 0 : index
    %c1_48 = arith.constant 1 : index
    %c1_49 = arith.constant 1 : index
    %c0_50 = arith.constant 0 : index
    %50 = vector.load %arg6[%c0_47, %c1_48, %c1_49, %c0_50] : memref<4x10x10x128xf32, #tpu.memory_space<vmem>>, vector<1x8x8x128xf32>
    %51 = vector.shape_cast %50 : vector<1x8x8x128xf32> to vector<8x8x128xf32>
    %52 = vector.shape_cast %51 : vector<8x8x128xf32> to vector<64x128xf32>
    %53 = arith.truncf %52 : vector<64x128xf32> to vector<64x128xbf16>
    %c4 = arith.constant 4 : index
    %c0_51 = arith.constant 0 : index
    %c0_52 = arith.constant 0 : index
    %54 = vector.load %arg4[%c4, %c0_51, %c0_52] : memref<9x128x128xbf16, #tpu.memory_space<vmem>>, vector<1x128x128xbf16>
    %55 = vector.shape_cast %54 : vector<1x128x128xbf16> to vector<128x128xbf16>
    %cst_53 = arith.constant dense<0.000000e+00> : vector<64x128xf32>
    %56 = tpu.matmul %53, %55, %cst_53 {dimension_numbers = #tpu.dot_dimension_numbers<[1], [0], [0], [1], [0, 0, 1, 1], [], []>} : vector<64x128xbf16>, vector<128x128xbf16>, vector<64x128xf32> -> vector<64x128xf32>
    %57 = arith.addf %49, %56 : vector<64x128xf32>
    %c1_54 = arith.constant 1 : index
    %c1_55 = arith.constant 1 : index
    %c1_56 = arith.constant 1 : index
    %c0_57 = arith.constant 0 : index
    %58 = vector.load %arg6[%c1_54, %c1_55, %c1_56, %c0_57] : memref<4x10x10x128xf32, #tpu.memory_space<vmem>>, vector<1x8x8x128xf32>
    %59 = vector.shape_cast %58 : vector<1x8x8x128xf32> to vector<8x8x128xf32>
    %60 = vector.shape_cast %59 : vector<8x8x128xf32> to vector<64x128xf32>
    %61 = arith.truncf %60 : vector<64x128xf32> to vector<64x128xbf16>
    %c5 = arith.constant 5 : index
    %c0_58 = arith.constant 0 : index
    %c0_59 = arith.constant 0 : index
    %62 = vector.load %arg4[%c5, %c0_58, %c0_59] : memref<9x128x128xbf16, #tpu.memory_space<vmem>>, vector<1x128x128xbf16>
    %63 = vector.shape_cast %62 : vector<1x128x128xbf16> to vector<128x128xbf16>
    %cst_60 = arith.constant dense<0.000000e+00> : vector<64x128xf32>
    %64 = tpu.matmul %61, %63, %cst_60 {dimension_numbers = #tpu.dot_dimension_numbers<[1], [0], [0], [1], [0, 0, 1, 1], [], []>} : vector<64x128xbf16>, vector<128x128xbf16>, vector<64x128xf32> -> vector<64x128xf32>
    %65 = arith.addf %57, %64 : vector<64x128xf32>
    %c3_61 = arith.constant 3 : index
    %c1_62 = arith.constant 1 : index
    %c0_63 = arith.constant 0 : index
    %c0_64 = arith.constant 0 : index
    %66 = vector.load %arg6[%c3_61, %c1_62, %c0_63, %c0_64] : memref<4x10x10x128xf32, #tpu.memory_space<vmem>>, vector<1x8x8x128xf32>
    %67 = vector.shape_cast %66 : vector<1x8x8x128xf32> to vector<8x8x128xf32>
    %68 = vector.shape_cast %67 : vector<8x8x128xf32> to vector<64x128xf32>
    %69 = arith.truncf %68 : vector<64x128xf32> to vector<64x128xbf16>
    %c6 = arith.constant 6 : index
    %c0_65 = arith.constant 0 : index
    %c0_66 = arith.constant 0 : index
    %70 = vector.load %arg4[%c6, %c0_65, %c0_66] : memref<9x128x128xbf16, #tpu.memory_space<vmem>>, vector<1x128x128xbf16>
    %71 = vector.shape_cast %70 : vector<1x128x128xbf16> to vector<128x128xbf16>
    %cst_67 = arith.constant dense<0.000000e+00> : vector<64x128xf32>
    %72 = tpu.matmul %69, %71, %cst_67 {dimension_numbers = #tpu.dot_dimension_numbers<[1], [0], [0], [1], [0, 0, 1, 1], [], []>} : vector<64x128xbf16>, vector<128x128xbf16>, vector<64x128xf32> -> vector<64x128xf32>
    %73 = arith.addf %65, %72 : vector<64x128xf32>
    %c2_68 = arith.constant 2 : index
    %c1_69 = arith.constant 1 : index
    %c1_70 = arith.constant 1 : index
    %c0_71 = arith.constant 0 : index
    %74 = vector.load %arg6[%c2_68, %c1_69, %c1_70, %c0_71] : memref<4x10x10x128xf32, #tpu.memory_space<vmem>>, vector<1x8x8x128xf32>
    %75 = vector.shape_cast %74 : vector<1x8x8x128xf32> to vector<8x8x128xf32>
    %76 = vector.shape_cast %75 : vector<8x8x128xf32> to vector<64x128xf32>
    %77 = arith.truncf %76 : vector<64x128xf32> to vector<64x128xbf16>
    %c7 = arith.constant 7 : index
    %c0_72 = arith.constant 0 : index
    %c0_73 = arith.constant 0 : index
    %78 = vector.load %arg4[%c7, %c0_72, %c0_73] : memref<9x128x128xbf16, #tpu.memory_space<vmem>>, vector<1x128x128xbf16>
    %79 = vector.shape_cast %78 : vector<1x128x128xbf16> to vector<128x128xbf16>
    %cst_74 = arith.constant dense<0.000000e+00> : vector<64x128xf32>
    %80 = tpu.matmul %77, %79, %cst_74 {dimension_numbers = #tpu.dot_dimension_numbers<[1], [0], [0], [1], [0, 0, 1, 1], [], []>} : vector<64x128xbf16>, vector<128x128xbf16>, vector<64x128xf32> -> vector<64x128xf32>
    %81 = arith.addf %73, %80 : vector<64x128xf32>
    %c3_75 = arith.constant 3 : index
    %c1_76 = arith.constant 1 : index
    %c1_77 = arith.constant 1 : index
    %c0_78 = arith.constant 0 : index
    %82 = vector.load %arg6[%c3_75, %c1_76, %c1_77, %c0_78] : memref<4x10x10x128xf32, #tpu.memory_space<vmem>>, vector<1x8x8x128xf32>
    %83 = vector.shape_cast %82 : vector<1x8x8x128xf32> to vector<8x8x128xf32>
    %84 = vector.shape_cast %83 : vector<8x8x128xf32> to vector<64x128xf32>
    %85 = arith.truncf %84 : vector<64x128xf32> to vector<64x128xbf16>
    %c8 = arith.constant 8 : index
    %c0_79 = arith.constant 0 : index
    %c0_80 = arith.constant 0 : index
    %86 = vector.load %arg4[%c8, %c0_79, %c0_80] : memref<9x128x128xbf16, #tpu.memory_space<vmem>>, vector<1x128x128xbf16>
    %87 = vector.shape_cast %86 : vector<1x128x128xbf16> to vector<128x128xbf16>
    %cst_81 = arith.constant dense<0.000000e+00> : vector<64x128xf32>
    %88 = tpu.matmul %85, %87, %cst_81 {dimension_numbers = #tpu.dot_dimension_numbers<[1], [0], [0], [1], [0, 0, 1, 1], [], []>} : vector<64x128xbf16>, vector<128x128xbf16>, vector<64x128xf32> -> vector<64x128xf32>
    %89 = arith.addf %81, %88 : vector<64x128xf32>
    %90 = vector.shape_cast %89 : vector<64x128xf32> to vector<8x8x128xf32>
    %c0_82 = arith.constant 0 : index
    %c0_83 = arith.constant 0 : index
    %c0_84 = arith.constant 0 : index
    %c0_85 = arith.constant 0 : index
    %91 = vector.load %arg5[%c0_82, %c0_83, %c0_84, %c0_85] : memref<1x8x8x128xf32, #tpu.memory_space<vmem>>, vector<1x8x8x128xf32>
    %92 = vector.shape_cast %91 : vector<1x8x8x128xf32> to vector<8x8x128xf32>
    %93 = vector.shape_cast %90 : vector<8x8x128xf32> to vector<1x8x8x128xf32>
    tpu.vector_store %arg5[%c0_82, %c0_83, %c0_84, %c0_85], %93 {strides = array<i32>} : memref<1x8x8x128xf32, #tpu.memory_space<vmem>>, vector<1x8x8x128xf32>,
    return
  }
  func.func @transform_0(%arg0: i32) -> (i32, i32, i32, i32, i32) {
    %c0_i32 = arith.constant 0 : i32
    %c0_i32_0 = arith.constant 0 : i32
    %c0_i32_1 = arith.constant 0 : i32
    %c0_i32_2 = arith.constant 0 : i32
    %c0_i32_3 = arith.constant 0 : i32
    return %arg0, %c0_i32, %c0_i32_0, %c0_i32_1, %c0_i32_2 : i32, i32, i32, i32, i32
  }
  func.func @transform_1(%arg0: i32) -> (i32, i32) {
    %c0_i32 = arith.constant 0 : i32
    %c0_i32_0 = arith.constant 0 : i32
    %c0_i32_1 = arith.constant 0 : i32
    return %c0_i32, %c0_i32_0 : i32, i32
  }
  func.func @transform_2(%arg0: i32) -> (i32, i32) {
    %c0_i32 = arith.constant 0 : i32
    %c0_i32_0 = arith.constant 0 : i32
    %c0_i32_1 = arith.constant 0 : i32
    return %c0_i32, %c0_i32_0 : i32, i32
  }
  func.func @transform_3(%arg0: i32) -> (i32, i32, i32) {
    %c0_i32 = arith.constant 0 : i32
    %c0_i32_0 = arith.constant 0 : i32
    %c0_i32_1 = arith.constant 0 : i32
    %c0_i32_2 = arith.constant 0 : i32
    return %c0_i32, %c0_i32_0, %c0_i32_1 : i32, i32, i32
  }
  func.func @transform_4(%arg0: i32) -> (i32, i32, i32, i32) {
    %c0_i32 = arith.constant 0 : i32
    %c0_i32_0 = arith.constant 0 : i32
    %c0_i32_1 = arith.constant 0 : i32
    %c0_i32_2 = arith.constant 0 : i32
    return %arg0, %c0_i32, %c0_i32_0, %c0_i32_1 : i32, i32, i32, i32
  }
}

module attributes {stable_mosaic.version = 11 : i64} {
  func.func @kernel(%arg0: i32, %arg1: memref<512x128xf32, #tpu.memory_space<vmem>>, %arg2: memref<1x128xf32, #tpu.memory_space<vmem>>, %arg3: memref<1x128xf32, #tpu.memory_space<vmem>>, %arg4: memref<1x128xf32, #tpu.memory_space<vmem>>, %arg5: memref<1x128xf32, #tpu.memory_space<vmem>>, %arg6: memref<1x128xf32, #tpu.memory_space<vmem>>, %arg7: memref<1x128xf32, #tpu.memory_space<vmem>>) attributes {dimension_semantics = [#tpu.dimension_semantics<arbitrary>], iteration_bounds = array<i64: 1>, scalar_prefetch = 0 : i64, scratch_operands = 2 : i64, tpu.core_type = #tpu.core_type<tc>, window_params = [{transform_indices = @transform_0, window_bounds = array<i64: 512, 128>}, {pipeline_mode = #tpu.pipeline_mode<synchronous>, transform_indices = @transform_1, window_bounds = array<i64: 1, 128>}, {pipeline_mode = #tpu.pipeline_mode<synchronous>, transform_indices = @transform_2, window_bounds = array<i64: 1, 128>}, {pipeline_mode = #tpu.pipeline_mode<synchronous>, transform_indices = @transform_3, window_bounds = array<i64: 1, 128>}, {pipeline_mode = #tpu.pipeline_mode<synchronous>, transform_indices = @transform_4, window_bounds = array<i64: 1, 128>}]} {
    %c0_i32 = arith.constant 0 : i32
    %0 = arith.cmpi eq, %arg0, %c0_i32 : i32
    %1 = arith.extui %0 : i1 to i32
    %c0_i32_0 = arith.constant 0 : i32
    %2 = arith.cmpi ne, %1, %c0_i32_0 : i32
    scf.if %2 {
      %cst_13 = arith.constant 0.000000e+00 : f32
      %18 = vector.broadcast %cst_13 : f32 to vector<1x128xf32>
      %c0_14 = arith.constant 0 : index
      %c0_15 = arith.constant 0 : index
      %19 = vector.load %arg6[%c0_14, %c0_15] : memref<1x128xf32, #tpu.memory_space<vmem>>, vector<1x128xf32>
      tpu.vector_store %arg6[%c0_14, %c0_15], %18 {strides = array<i32>} : memref<1x128xf32, #tpu.memory_space<vmem>>, vector<1x128xf32>,
      %cst_16 = arith.constant 0.000000e+00 : f32
      %20 = vector.broadcast %cst_16 : f32 to vector<1x128xf32>
      %c0_17 = arith.constant 0 : index
      %c0_18 = arith.constant 0 : index
      %21 = vector.load %arg7[%c0_17, %c0_18] : memref<1x128xf32, #tpu.memory_space<vmem>>, vector<1x128xf32>
      tpu.vector_store %arg7[%c0_17, %c0_18], %20 {strides = array<i32>} : memref<1x128xf32, #tpu.memory_space<vmem>>, vector<1x128xf32>,
    } else {
    }
    %c0 = arith.constant 0 : index
    %c0_1 = arith.constant 0 : index
    %3 = vector.load %arg1[%c0, %c0_1] : memref<512x128xf32, #tpu.memory_space<vmem>>, vector<512x128xf32>
    %c0_2 = arith.constant 0 : index
    %c0_3 = arith.constant 0 : index
    %4 = vector.load %arg6[%c0_2, %c0_3] : memref<1x128xf32, #tpu.memory_space<vmem>>, vector<1x128xf32>
    %cst = arith.constant dense<0.000000e+00> : vector<128xf32>
    %5 = vector.multi_reduction <add>, %3, %cst [0] : vector<512x128xf32> to vector<128xf32>
    %6 = vector.shape_cast %5 : vector<128xf32> to vector<1x128xf32>
    %7 = arith.addf %4, %6 : vector<1x128xf32>
    %c0_4 = arith.constant 0 : index
    %c0_5 = arith.constant 0 : index
    %8 = vector.load %arg6[%c0_4, %c0_5] : memref<1x128xf32, #tpu.memory_space<vmem>>, vector<1x128xf32>
    tpu.vector_store %arg6[%c0_4, %c0_5], %7 {strides = array<i32>} : memref<1x128xf32, #tpu.memory_space<vmem>>, vector<1x128xf32>,
    %c0_6 = arith.constant 0 : index
    %c0_7 = arith.constant 0 : index
    %9 = vector.load %arg7[%c0_6, %c0_7] : memref<1x128xf32, #tpu.memory_space<vmem>>, vector<1x128xf32>
    %10 = arith.mulf %3, %3 : vector<512x128xf32>
    %cst_8 = arith.constant dense<0.000000e+00> : vector<128xf32>
    %11 = vector.multi_reduction <add>, %10, %cst_8 [0] : vector<512x128xf32> to vector<128xf32>
    %12 = vector.shape_cast %11 : vector<128xf32> to vector<1x128xf32>
    %13 = arith.addf %9, %12 : vector<1x128xf32>
    %c0_9 = arith.constant 0 : index
    %c0_10 = arith.constant 0 : index
    %14 = vector.load %arg7[%c0_9, %c0_10] : memref<1x128xf32, #tpu.memory_space<vmem>>, vector<1x128xf32>
    tpu.vector_store %arg7[%c0_9, %c0_10], %13 {strides = array<i32>} : memref<1x128xf32, #tpu.memory_space<vmem>>, vector<1x128xf32>,
    %c0_i32_11 = arith.constant 0 : i32
    %15 = arith.cmpi eq, %arg0, %c0_i32_11 : i32
    %16 = arith.extui %15 : i1 to i32
    %c0_i32_12 = arith.constant 0 : i32
    %17 = arith.cmpi ne, %16, %c0_i32_12 : i32
    scf.if %17 {
      %c0_13 = arith.constant 0 : index
      %c0_14 = arith.constant 0 : index
      %18 = vector.load %arg6[%c0_13, %c0_14] : memref<1x128xf32, #tpu.memory_space<vmem>>, vector<1x128xf32>
      %cst_15 = arith.constant 0.001953125 : f32
      %19 = vector.broadcast %cst_15 : f32 to vector<1x128xf32>
      %20 = arith.mulf %18, %19 : vector<1x128xf32>
      %c0_16 = arith.constant 0 : index
      %c0_17 = arith.constant 0 : index
      %21 = vector.load %arg7[%c0_16, %c0_17] : memref<1x128xf32, #tpu.memory_space<vmem>>, vector<1x128xf32>
      %cst_18 = arith.constant 0.001953125 : f32
      %22 = vector.broadcast %cst_18 : f32 to vector<1x128xf32>
      %23 = arith.mulf %21, %22 : vector<1x128xf32>
      %24 = arith.mulf %20, %20 : vector<1x128xf32>
      %25 = arith.subf %23, %24 : vector<1x128xf32>
      %c0_19 = arith.constant 0 : index
      %c0_20 = arith.constant 0 : index
      %26 = vector.load %arg2[%c0_19, %c0_20] : memref<1x128xf32, #tpu.memory_space<vmem>>, vector<1x128xf32>
      %cst_21 = arith.constant 9.99999974E-6 : f32
      %27 = vector.broadcast %cst_21 : f32 to vector<1x128xf32>
      %28 = arith.addf %25, %27 : vector<1x128xf32>
      %29 = math.rsqrt %28 : vector<1x128xf32>
      %30 = arith.mulf %26, %29 : vector<1x128xf32>
      %c0_22 = arith.constant 0 : index
      %c0_23 = arith.constant 0 : index
      %31 = vector.load %arg4[%c0_22, %c0_23] : memref<1x128xf32, #tpu.memory_space<vmem>>, vector<1x128xf32>
      tpu.vector_store %arg4[%c0_22, %c0_23], %30 {strides = array<i32>} : memref<1x128xf32, #tpu.memory_space<vmem>>, vector<1x128xf32>,
      %c0_24 = arith.constant 0 : index
      %c0_25 = arith.constant 0 : index
      %32 = vector.load %arg3[%c0_24, %c0_25] : memref<1x128xf32, #tpu.memory_space<vmem>>, vector<1x128xf32>
      %33 = arith.mulf %20, %30 : vector<1x128xf32>
      %34 = arith.subf %32, %33 : vector<1x128xf32>
      %c0_26 = arith.constant 0 : index
      %c0_27 = arith.constant 0 : index
      %35 = vector.load %arg5[%c0_26, %c0_27] : memref<1x128xf32, #tpu.memory_space<vmem>>, vector<1x128xf32>
      tpu.vector_store %arg5[%c0_26, %c0_27], %34 {strides = array<i32>} : memref<1x128xf32, #tpu.memory_space<vmem>>, vector<1x128xf32>,
    } else {
    }
    return
  }
  func.func @transform_0(%arg0: i32) -> (i32, i32) {
    %c0_i32 = arith.constant 0 : i32
    %c0_i32_0 = arith.constant 0 : i32
    return %arg0, %c0_i32 : i32, i32
  }
  func.func @transform_1(%arg0: i32) -> (i32, i32) {
    %c0_i32 = arith.constant 0 : i32
    %c0_i32_0 = arith.constant 0 : i32
    %c0_i32_1 = arith.constant 0 : i32
    return %c0_i32, %c0_i32_0 : i32, i32
  }
  func.func @transform_2(%arg0: i32) -> (i32, i32) {
    %c0_i32 = arith.constant 0 : i32
    %c0_i32_0 = arith.constant 0 : i32
    %c0_i32_1 = arith.constant 0 : i32
    return %c0_i32, %c0_i32_0 : i32, i32
  }
  func.func @transform_3(%arg0: i32) -> (i32, i32) {
    %c0_i32 = arith.constant 0 : i32
    %c0_i32_0 = arith.constant 0 : i32
    %c0_i32_1 = arith.constant 0 : i32
    return %c0_i32, %c0_i32_0 : i32, i32
  }
  func.func @transform_4(%arg0: i32) -> (i32, i32) {
    %c0_i32 = arith.constant 0 : i32
    %c0_i32_0 = arith.constant 0 : i32
    %c0_i32_1 = arith.constant 0 : i32
    return %c0_i32, %c0_i32_0 : i32, i32
  }
}

module attributes {stable_mosaic.version = 11 : i64} {
  func.func @kernel(%arg0: i32, %arg1: memref<128x128xf32, #tpu.memory_space<vmem>>, %arg2: memref<1x128xf32, #tpu.memory_space<vmem>>, %arg3: memref<1x128xf32, #tpu.memory_space<vmem>>, %arg4: memref<1x128xf32, #tpu.memory_space<vmem>>, %arg5: memref<1x128xf32, #tpu.memory_space<vmem>>, %arg6: memref<1x128xf32, #tpu.memory_space<vmem>>, %arg7: memref<1x128xf32, #tpu.memory_space<vmem>>) attributes {dimension_semantics = [#tpu.dimension_semantics<arbitrary>], iteration_bounds = array<i64: 1>, scalar_prefetch = 0 : i64, scratch_operands = 2 : i64, tpu.core_type = #tpu.core_type<tc>, window_params = [{transform_indices = @transform_0, window_bounds = array<i64: 128, 128>}, {pipeline_mode = #tpu.pipeline_mode<synchronous>, transform_indices = @transform_1, window_bounds = array<i64: 1, 128>}, {pipeline_mode = #tpu.pipeline_mode<synchronous>, transform_indices = @transform_2, window_bounds = array<i64: 1, 128>}, {pipeline_mode = #tpu.pipeline_mode<synchronous>, transform_indices = @transform_3, window_bounds = array<i64: 1, 128>}, {pipeline_mode = #tpu.pipeline_mode<synchronous>, transform_indices = @transform_4, window_bounds = array<i64: 1, 128>}]} {
    %c0_i32 = arith.constant 0 : i32
    %0 = arith.cmpi eq, %arg0, %c0_i32 : i32
    %1 = arith.extui %0 : i1 to i32
    %c0_i32_0 = arith.constant 0 : i32
    %2 = arith.cmpi ne, %1, %c0_i32_0 : i32
    scf.if %2 {
      %cst_13 = arith.constant 0.000000e+00 : f32
      %18 = vector.broadcast %cst_13 : f32 to vector<1x128xf32>
      %c0_14 = arith.constant 0 : index
      %c0_15 = arith.constant 0 : index
      %19 = vector.load %arg6[%c0_14, %c0_15] : memref<1x128xf32, #tpu.memory_space<vmem>>, vector<1x128xf32>
      tpu.vector_store %arg6[%c0_14, %c0_15], %18 {strides = array<i32>} : memref<1x128xf32, #tpu.memory_space<vmem>>, vector<1x128xf32>,
      %cst_16 = arith.constant 0.000000e+00 : f32
      %20 = vector.broadcast %cst_16 : f32 to vector<1x128xf32>
      %c0_17 = arith.constant 0 : index
      %c0_18 = arith.constant 0 : index
      %21 = vector.load %arg7[%c0_17, %c0_18] : memref<1x128xf32, #tpu.memory_space<vmem>>, vector<1x128xf32>
      tpu.vector_store %arg7[%c0_17, %c0_18], %20 {strides = array<i32>} : memref<1x128xf32, #tpu.memory_space<vmem>>, vector<1x128xf32>,
    } else {
    }
    %c0 = arith.constant 0 : index
    %c0_1 = arith.constant 0 : index
    %3 = vector.load %arg1[%c0, %c0_1] : memref<128x128xf32, #tpu.memory_space<vmem>>, vector<128x128xf32>
    %c0_2 = arith.constant 0 : index
    %c0_3 = arith.constant 0 : index
    %4 = vector.load %arg6[%c0_2, %c0_3] : memref<1x128xf32, #tpu.memory_space<vmem>>, vector<1x128xf32>
    %cst = arith.constant dense<0.000000e+00> : vector<128xf32>
    %5 = vector.multi_reduction <add>, %3, %cst [0] : vector<128x128xf32> to vector<128xf32>
    %6 = vector.shape_cast %5 : vector<128xf32> to vector<1x128xf32>
    %7 = arith.addf %4, %6 : vector<1x128xf32>
    %c0_4 = arith.constant 0 : index
    %c0_5 = arith.constant 0 : index
    %8 = vector.load %arg6[%c0_4, %c0_5] : memref<1x128xf32, #tpu.memory_space<vmem>>, vector<1x128xf32>
    tpu.vector_store %arg6[%c0_4, %c0_5], %7 {strides = array<i32>} : memref<1x128xf32, #tpu.memory_space<vmem>>, vector<1x128xf32>,
    %c0_6 = arith.constant 0 : index
    %c0_7 = arith.constant 0 : index
    %9 = vector.load %arg7[%c0_6, %c0_7] : memref<1x128xf32, #tpu.memory_space<vmem>>, vector<1x128xf32>
    %10 = arith.mulf %3, %3 : vector<128x128xf32>
    %cst_8 = arith.constant dense<0.000000e+00> : vector<128xf32>
    %11 = vector.multi_reduction <add>, %10, %cst_8 [0] : vector<128x128xf32> to vector<128xf32>
    %12 = vector.shape_cast %11 : vector<128xf32> to vector<1x128xf32>
    %13 = arith.addf %9, %12 : vector<1x128xf32>
    %c0_9 = arith.constant 0 : index
    %c0_10 = arith.constant 0 : index
    %14 = vector.load %arg7[%c0_9, %c0_10] : memref<1x128xf32, #tpu.memory_space<vmem>>, vector<1x128xf32>
    tpu.vector_store %arg7[%c0_9, %c0_10], %13 {strides = array<i32>} : memref<1x128xf32, #tpu.memory_space<vmem>>, vector<1x128xf32>,
    %c0_i32_11 = arith.constant 0 : i32
    %15 = arith.cmpi eq, %arg0, %c0_i32_11 : i32
    %16 = arith.extui %15 : i1 to i32
    %c0_i32_12 = arith.constant 0 : i32
    %17 = arith.cmpi ne, %16, %c0_i32_12 : i32
    scf.if %17 {
      %c0_13 = arith.constant 0 : index
      %c0_14 = arith.constant 0 : index
      %18 = vector.load %arg6[%c0_13, %c0_14] : memref<1x128xf32, #tpu.memory_space<vmem>>, vector<1x128xf32>
      %cst_15 = arith.constant 7.812500e-03 : f32
      %19 = vector.broadcast %cst_15 : f32 to vector<1x128xf32>
      %20 = arith.mulf %18, %19 : vector<1x128xf32>
      %c0_16 = arith.constant 0 : index
      %c0_17 = arith.constant 0 : index
      %21 = vector.load %arg7[%c0_16, %c0_17] : memref<1x128xf32, #tpu.memory_space<vmem>>, vector<1x128xf32>
      %cst_18 = arith.constant 7.812500e-03 : f32
      %22 = vector.broadcast %cst_18 : f32 to vector<1x128xf32>
      %23 = arith.mulf %21, %22 : vector<1x128xf32>
      %24 = arith.mulf %20, %20 : vector<1x128xf32>
      %25 = arith.subf %23, %24 : vector<1x128xf32>
      %c0_19 = arith.constant 0 : index
      %c0_20 = arith.constant 0 : index
      %26 = vector.load %arg2[%c0_19, %c0_20] : memref<1x128xf32, #tpu.memory_space<vmem>>, vector<1x128xf32>
      %cst_21 = arith.constant 9.99999974E-6 : f32
      %27 = vector.broadcast %cst_21 : f32 to vector<1x128xf32>
      %28 = arith.addf %25, %27 : vector<1x128xf32>
      %29 = math.rsqrt %28 : vector<1x128xf32>
      %30 = arith.mulf %26, %29 : vector<1x128xf32>
      %c0_22 = arith.constant 0 : index
      %c0_23 = arith.constant 0 : index
      %31 = vector.load %arg4[%c0_22, %c0_23] : memref<1x128xf32, #tpu.memory_space<vmem>>, vector<1x128xf32>
      tpu.vector_store %arg4[%c0_22, %c0_23], %30 {strides = array<i32>} : memref<1x128xf32, #tpu.memory_space<vmem>>, vector<1x128xf32>,
      %c0_24 = arith.constant 0 : index
      %c0_25 = arith.constant 0 : index
      %32 = vector.load %arg3[%c0_24, %c0_25] : memref<1x128xf32, #tpu.memory_space<vmem>>, vector<1x128xf32>
      %33 = arith.mulf %20, %30 : vector<1x128xf32>
      %34 = arith.subf %32, %33 : vector<1x128xf32>
      %c0_26 = arith.constant 0 : index
      %c0_27 = arith.constant 0 : index
      %35 = vector.load %arg5[%c0_26, %c0_27] : memref<1x128xf32, #tpu.memory_space<vmem>>, vector<1x128xf32>
      tpu.vector_store %arg5[%c0_26, %c0_27], %34 {strides = array<i32>} : memref<1x128xf32, #tpu.memory_space<vmem>>, vector<1x128xf32>,
    } else {
    }
    return
  }
  func.func @transform_0(%arg0: i32) -> (i32, i32) {
    %c0_i32 = arith.constant 0 : i32
    %c0_i32_0 = arith.constant 0 : i32
    return %arg0, %c0_i32 : i32, i32
  }
  func.func @transform_1(%arg0: i32) -> (i32, i32) {
    %c0_i32 = arith.constant 0 : i32
    %c0_i32_0 = arith.constant 0 : i32
    %c0_i32_1 = arith.constant 0 : i32
    return %c0_i32, %c0_i32_0 : i32, i32
  }
  func.func @transform_2(%arg0: i32) -> (i32, i32) {
    %c0_i32 = arith.constant 0 : i32
    %c0_i32_0 = arith.constant 0 : i32
    %c0_i32_1 = arith.constant 0 : i32
    return %c0_i32, %c0_i32_0 : i32, i32
  }
  func.func @transform_3(%arg0: i32) -> (i32, i32) {
    %c0_i32 = arith.constant 0 : i32
    %c0_i32_0 = arith.constant 0 : i32
    %c0_i32_1 = arith.constant 0 : i32
    return %c0_i32, %c0_i32_0 : i32, i32
  }
  func.func @transform_4(%arg0: i32) -> (i32, i32) {
    %c0_i32 = arith.constant 0 : i32
    %c0_i32_0 = arith.constant 0 : i32
    %c0_i32_1 = arith.constant 0 : i32
    return %c0_i32, %c0_i32_0 : i32, i32
  }
}

module attributes {stable_mosaic.version = 11 : i64} {
  func.func @kernel(%arg0: i32, %arg1: memref<1x1x8x8x128xf32, #tpu.memory_space<vmem>>, %arg2: memref<1x128xf32, #tpu.memory_space<vmem>>, %arg3: memref<1x128xf32, #tpu.memory_space<vmem>>, %arg4: memref<9x128x128xbf16, #tpu.memory_space<vmem>>, %arg5: memref<1x1x8x8x128xf32, #tpu.memory_space<vmem>>, %arg6: memref<128x128xbf16, #tpu.memory_space<vmem>>, %arg7: memref<1x8x8x128xf32, #tpu.memory_space<vmem>>, %arg8: memref<1x10x10x128xf32, #tpu.memory_space<vmem>>) attributes {dimension_semantics = [#tpu.dimension_semantics<parallel>], iteration_bounds = array<i64: 2>, scalar_prefetch = 0 : i64, scratch_operands = 1 : i64, tpu.core_type = #tpu.core_type<tc>, window_params = [{transform_indices = @transform_0, window_bounds = array<i64: 1, 1, 8, 8, 128>}, {pipeline_mode = #tpu.pipeline_mode<synchronous>, transform_indices = @transform_1, window_bounds = array<i64: 1, 128>}, {pipeline_mode = #tpu.pipeline_mode<synchronous>, transform_indices = @transform_2, window_bounds = array<i64: 1, 128>}, {pipeline_mode = #tpu.pipeline_mode<synchronous>, transform_indices = @transform_3, window_bounds = array<i64: 9, 128, 128>}, {transform_indices = @transform_4, window_bounds = array<i64: 1, 1, 8, 8, 128>}, {pipeline_mode = #tpu.pipeline_mode<synchronous>, transform_indices = @transform_5, window_bounds = array<i64: 128, 128>}, {transform_indices = @transform_6, window_bounds = array<i64: 1, 8, 8, 128>}]} {
    %c0 = arith.constant 0 : index
    %c0_0 = arith.constant 0 : index
    %c0_1 = arith.constant 0 : index
    %c0_2 = arith.constant 0 : index
    %c0_3 = arith.constant 0 : index
    %0 = vector.load %arg1[%c0, %c0_0, %c0_1, %c0_2, %c0_3] : memref<1x1x8x8x128xf32, #tpu.memory_space<vmem>>, vector<1x1x8x8x128xf32>
    %1 = vector.shape_cast %0 : vector<1x1x8x8x128xf32> to vector<1x8x8x128xf32>
    %c0_4 = arith.constant 0 : index
    %c0_5 = arith.constant 0 : index
    %2 = vector.load %arg2[%c0_4, %c0_5] : memref<1x128xf32, #tpu.memory_space<vmem>>, vector<1x128xf32>
    %3 = vector.shape_cast %2 : vector<1x128xf32> to vector<128xf32>
    %4 = vector.shape_cast %3 : vector<128xf32> to vector<1x1x1x128xf32>
    %5 = vector.broadcast %4 : vector<1x1x1x128xf32> to vector<1x8x8x128xf32>
    %6 = arith.mulf %1, %5 : vector<1x8x8x128xf32>
    %c0_6 = arith.constant 0 : index
    %c0_7 = arith.constant 0 : index
    %7 = vector.load %arg3[%c0_6, %c0_7] : memref<1x128xf32, #tpu.memory_space<vmem>>, vector<1x128xf32>
    %8 = vector.shape_cast %7 : vector<1x128xf32> to vector<128xf32>
    %9 = vector.shape_cast %8 : vector<128xf32> to vector<1x1x1x128xf32>
    %10 = vector.broadcast %9 : vector<1x1x1x128xf32> to vector<1x8x8x128xf32>
    %11 = arith.addf %6, %10 : vector<1x8x8x128xf32>
    %cst = arith.constant 0.000000e+00 : f32
    %12 = vector.broadcast %cst : f32 to vector<1x8x8x128xf32>
    %13 = arith.maximumf %11, %12 : vector<1x8x8x128xf32>
    %cst_8 = arith.constant 0.000000e+00 : f32
    %14 = vector.broadcast %cst_8 : f32 to vector<1x10x10x128xf32>
    %c0_9 = arith.constant 0 : index
    %c0_10 = arith.constant 0 : index
    %c0_11 = arith.constant 0 : index
    %c0_12 = arith.constant 0 : index
    %15 = vector.load %arg8[%c0_9, %c0_10, %c0_11, %c0_12] : memref<1x10x10x128xf32, #tpu.memory_space<vmem>>, vector<1x10x10x128xf32>
    tpu.vector_store %arg8[%c0_9, %c0_10, %c0_11, %c0_12], %14 {strides = array<i32>} : memref<1x10x10x128xf32, #tpu.memory_space<vmem>>, vector<1x10x10x128xf32>,
    %c0_13 = arith.constant 0 : index
    %c1 = arith.constant 1 : index
    %c1_14 = arith.constant 1 : index
    %c0_15 = arith.constant 0 : index
    %16 = vector.load %arg8[%c0_13, %c1, %c1_14, %c0_15] : memref<1x10x10x128xf32, #tpu.memory_space<vmem>>, vector<1x8x8x128xf32>
    tpu.vector_store %arg8[%c0_13, %c1, %c1_14, %c0_15], %13 {strides = array<i32>} : memref<1x10x10x128xf32, #tpu.memory_space<vmem>>, vector<1x8x8x128xf32>,
    %c0_16 = arith.constant 0 : index
    %c0_17 = arith.constant 0 : index
    %c0_18 = arith.constant 0 : index
    %c0_19 = arith.constant 0 : index
    %c0_20 = arith.constant 0 : index
    %17 = vector.load %arg5[%c0_16, %c0_17, %c0_18, %c0_19, %c0_20] : memref<1x1x8x8x128xf32, #tpu.memory_space<vmem>>, vector<1x1x8x8x128xf32>
    %18 = vector.shape_cast %17 : vector<1x1x8x8x128xf32> to vector<8x8x128xf32>
    %19 = arith.truncf %18 : vector<8x8x128xf32> to vector<8x8x128xbf16>
    %20 = vector.shape_cast %19 : vector<8x8x128xbf16> to vector<64x128xbf16>
    %c0_21 = arith.constant 0 : index
    %c0_22 = arith.constant 0 : index
    %21 = vector.load %arg6[%c0_21, %c0_22] : memref<128x128xbf16, #tpu.memory_space<vmem>>, vector<128x128xbf16>
    %cst_23 = arith.constant dense<0.000000e+00> : vector<64x128xf32>
    %22 = tpu.matmul %20, %21, %cst_23 {dimension_numbers = #tpu.dot_dimension_numbers<[1], [0], [0], [1], [0, 0, 1, 1], [], []>} : vector<64x128xbf16>, vector<128x128xbf16>, vector<64x128xf32> -> vector<64x128xf32>
    %c0_24 = arith.constant 0 : index
    %c0_25 = arith.constant 0 : index
    %c0_26 = arith.constant 0 : index
    %c0_27 = arith.constant 0 : index
    %23 = vector.load %arg8[%c0_24, %c0_25, %c0_26, %c0_27] : memref<1x10x10x128xf32, #tpu.memory_space<vmem>>, vector<1x8x8x128xf32>
    %24 = vector.shape_cast %23 : vector<1x8x8x128xf32> to vector<8x8x128xf32>
    %25 = vector.shape_cast %24 : vector<8x8x128xf32> to vector<64x128xf32>
    %26 = arith.truncf %25 : vector<64x128xf32> to vector<64x128xbf16>
    %c0_28 = arith.constant 0 : index
    %c0_29 = arith.constant 0 : index
    %c0_30 = arith.constant 0 : index
    %27 = vector.load %arg4[%c0_28, %c0_29, %c0_30] : memref<9x128x128xbf16, #tpu.memory_space<vmem>>, vector<1x128x128xbf16>
    %28 = vector.shape_cast %27 : vector<1x128x128xbf16> to vector<128x128xbf16>
    %cst_31 = arith.constant dense<0.000000e+00> : vector<64x128xf32>
    %29 = tpu.matmul %26, %28, %cst_31 {dimension_numbers = #tpu.dot_dimension_numbers<[1], [0], [0], [1], [0, 0, 1, 1], [], []>} : vector<64x128xbf16>, vector<128x128xbf16>, vector<64x128xf32> -> vector<64x128xf32>
    %30 = arith.addf %22, %29 : vector<64x128xf32>
    %c0_32 = arith.constant 0 : index
    %c0_33 = arith.constant 0 : index
    %c1_34 = arith.constant 1 : index
    %c0_35 = arith.constant 0 : index
    %31 = vector.load %arg8[%c0_32, %c0_33, %c1_34, %c0_35] : memref<1x10x10x128xf32, #tpu.memory_space<vmem>>, vector<1x8x8x128xf32>
    %32 = vector.shape_cast %31 : vector<1x8x8x128xf32> to vector<8x8x128xf32>
    %33 = vector.shape_cast %32 : vector<8x8x128xf32> to vector<64x128xf32>
    %34 = arith.truncf %33 : vector<64x128xf32> to vector<64x128xbf16>
    %c1_36 = arith.constant 1 : index
    %c0_37 = arith.constant 0 : index
    %c0_38 = arith.constant 0 : index
    %35 = vector.load %arg4[%c1_36, %c0_37, %c0_38] : memref<9x128x128xbf16, #tpu.memory_space<vmem>>, vector<1x128x128xbf16>
    %36 = vector.shape_cast %35 : vector<1x128x128xbf16> to vector<128x128xbf16>
    %cst_39 = arith.constant dense<0.000000e+00> : vector<64x128xf32>
    %37 = tpu.matmul %34, %36, %cst_39 {dimension_numbers = #tpu.dot_dimension_numbers<[1], [0], [0], [1], [0, 0, 1, 1], [], []>} : vector<64x128xbf16>, vector<128x128xbf16>, vector<64x128xf32> -> vector<64x128xf32>
    %38 = arith.addf %30, %37 : vector<64x128xf32>
    %c0_40 = arith.constant 0 : index
    %c0_41 = arith.constant 0 : index
    %c2 = arith.constant 2 : index
    %c0_42 = arith.constant 0 : index
    %39 = vector.load %arg8[%c0_40, %c0_41, %c2, %c0_42] : memref<1x10x10x128xf32, #tpu.memory_space<vmem>>, vector<1x8x8x128xf32>
    %40 = vector.shape_cast %39 : vector<1x8x8x128xf32> to vector<8x8x128xf32>
    %41 = vector.shape_cast %40 : vector<8x8x128xf32> to vector<64x128xf32>
    %42 = arith.truncf %41 : vector<64x128xf32> to vector<64x128xbf16>
    %c2_43 = arith.constant 2 : index
    %c0_44 = arith.constant 0 : index
    %c0_45 = arith.constant 0 : index
    %43 = vector.load %arg4[%c2_43, %c0_44, %c0_45] : memref<9x128x128xbf16, #tpu.memory_space<vmem>>, vector<1x128x128xbf16>
    %44 = vector.shape_cast %43 : vector<1x128x128xbf16> to vector<128x128xbf16>
    %cst_46 = arith.constant dense<0.000000e+00> : vector<64x128xf32>
    %45 = tpu.matmul %42, %44, %cst_46 {dimension_numbers = #tpu.dot_dimension_numbers<[1], [0], [0], [1], [0, 0, 1, 1], [], []>} : vector<64x128xbf16>, vector<128x128xbf16>, vector<64x128xf32> -> vector<64x128xf32>
    %46 = arith.addf %38, %45 : vector<64x128xf32>
    %c0_47 = arith.constant 0 : index
    %c1_48 = arith.constant 1 : index
    %c0_49 = arith.constant 0 : index
    %c0_50 = arith.constant 0 : index
    %47 = vector.load %arg8[%c0_47, %c1_48, %c0_49, %c0_50] : memref<1x10x10x128xf32, #tpu.memory_space<vmem>>, vector<1x8x8x128xf32>
    %48 = vector.shape_cast %47 : vector<1x8x8x128xf32> to vector<8x8x128xf32>
    %49 = vector.shape_cast %48 : vector<8x8x128xf32> to vector<64x128xf32>
    %50 = arith.truncf %49 : vector<64x128xf32> to vector<64x128xbf16>
    %c3 = arith.constant 3 : index
    %c0_51 = arith.constant 0 : index
    %c0_52 = arith.constant 0 : index
    %51 = vector.load %arg4[%c3, %c0_51, %c0_52] : memref<9x128x128xbf16, #tpu.memory_space<vmem>>, vector<1x128x128xbf16>
    %52 = vector.shape_cast %51 : vector<1x128x128xbf16> to vector<128x128xbf16>
    %cst_53 = arith.constant dense<0.000000e+00> : vector<64x128xf32>
    %53 = tpu.matmul %50, %52, %cst_53 {dimension_numbers = #tpu.dot_dimension_numbers<[1], [0], [0], [1], [0, 0, 1, 1], [], []>} : vector<64x128xbf16>, vector<128x128xbf16>, vector<64x128xf32> -> vector<64x128xf32>
    %54 = arith.addf %46, %53 : vector<64x128xf32>
    %c0_54 = arith.constant 0 : index
    %c1_55 = arith.constant 1 : index
    %c1_56 = arith.constant 1 : index
    %c0_57 = arith.constant 0 : index
    %55 = vector.load %arg8[%c0_54, %c1_55, %c1_56, %c0_57] : memref<1x10x10x128xf32, #tpu.memory_space<vmem>>, vector<1x8x8x128xf32>
    %56 = vector.shape_cast %55 : vector<1x8x8x128xf32> to vector<8x8x128xf32>
    %57 = vector.shape_cast %56 : vector<8x8x128xf32> to vector<64x128xf32>
    %58 = arith.truncf %57 : vector<64x128xf32> to vector<64x128xbf16>
    %c4 = arith.constant 4 : index
    %c0_58 = arith.constant 0 : index
    %c0_59 = arith.constant 0 : index
    %59 = vector.load %arg4[%c4, %c0_58, %c0_59] : memref<9x128x128xbf16, #tpu.memory_space<vmem>>, vector<1x128x128xbf16>
    %60 = vector.shape_cast %59 : vector<1x128x128xbf16> to vector<128x128xbf16>
    %cst_60 = arith.constant dense<0.000000e+00> : vector<64x128xf32>
    %61 = tpu.matmul %58, %60, %cst_60 {dimension_numbers = #tpu.dot_dimension_numbers<[1], [0], [0], [1], [0, 0, 1, 1], [], []>} : vector<64x128xbf16>, vector<128x128xbf16>, vector<64x128xf32> -> vector<64x128xf32>
    %62 = arith.addf %54, %61 : vector<64x128xf32>
    %c0_61 = arith.constant 0 : index
    %c1_62 = arith.constant 1 : index
    %c2_63 = arith.constant 2 : index
    %c0_64 = arith.constant 0 : index
    %63 = vector.load %arg8[%c0_61, %c1_62, %c2_63, %c0_64] : memref<1x10x10x128xf32, #tpu.memory_space<vmem>>, vector<1x8x8x128xf32>
    %64 = vector.shape_cast %63 : vector<1x8x8x128xf32> to vector<8x8x128xf32>
    %65 = vector.shape_cast %64 : vector<8x8x128xf32> to vector<64x128xf32>
    %66 = arith.truncf %65 : vector<64x128xf32> to vector<64x128xbf16>
    %c5 = arith.constant 5 : index
    %c0_65 = arith.constant 0 : index
    %c0_66 = arith.constant 0 : index
    %67 = vector.load %arg4[%c5, %c0_65, %c0_66] : memref<9x128x128xbf16, #tpu.memory_space<vmem>>, vector<1x128x128xbf16>
    %68 = vector.shape_cast %67 : vector<1x128x128xbf16> to vector<128x128xbf16>
    %cst_67 = arith.constant dense<0.000000e+00> : vector<64x128xf32>
    %69 = tpu.matmul %66, %68, %cst_67 {dimension_numbers = #tpu.dot_dimension_numbers<[1], [0], [0], [1], [0, 0, 1, 1], [], []>} : vector<64x128xbf16>, vector<128x128xbf16>, vector<64x128xf32> -> vector<64x128xf32>
    %70 = arith.addf %62, %69 : vector<64x128xf32>
    %c0_68 = arith.constant 0 : index
    %c2_69 = arith.constant 2 : index
    %c0_70 = arith.constant 0 : index
    %c0_71 = arith.constant 0 : index
    %71 = vector.load %arg8[%c0_68, %c2_69, %c0_70, %c0_71] : memref<1x10x10x128xf32, #tpu.memory_space<vmem>>, vector<1x8x8x128xf32>
    %72 = vector.shape_cast %71 : vector<1x8x8x128xf32> to vector<8x8x128xf32>
    %73 = vector.shape_cast %72 : vector<8x8x128xf32> to vector<64x128xf32>
    %74 = arith.truncf %73 : vector<64x128xf32> to vector<64x128xbf16>
    %c6 = arith.constant 6 : index
    %c0_72 = arith.constant 0 : index
    %c0_73 = arith.constant 0 : index
    %75 = vector.load %arg4[%c6, %c0_72, %c0_73] : memref<9x128x128xbf16, #tpu.memory_space<vmem>>, vector<1x128x128xbf16>
    %76 = vector.shape_cast %75 : vector<1x128x128xbf16> to vector<128x128xbf16>
    %cst_74 = arith.constant dense<0.000000e+00> : vector<64x128xf32>
    %77 = tpu.matmul %74, %76, %cst_74 {dimension_numbers = #tpu.dot_dimension_numbers<[1], [0], [0], [1], [0, 0, 1, 1], [], []>} : vector<64x128xbf16>, vector<128x128xbf16>, vector<64x128xf32> -> vector<64x128xf32>
    %78 = arith.addf %70, %77 : vector<64x128xf32>
    %c0_75 = arith.constant 0 : index
    %c2_76 = arith.constant 2 : index
    %c1_77 = arith.constant 1 : index
    %c0_78 = arith.constant 0 : index
    %79 = vector.load %arg8[%c0_75, %c2_76, %c1_77, %c0_78] : memref<1x10x10x128xf32, #tpu.memory_space<vmem>>, vector<1x8x8x128xf32>
    %80 = vector.shape_cast %79 : vector<1x8x8x128xf32> to vector<8x8x128xf32>
    %81 = vector.shape_cast %80 : vector<8x8x128xf32> to vector<64x128xf32>
    %82 = arith.truncf %81 : vector<64x128xf32> to vector<64x128xbf16>
    %c7 = arith.constant 7 : index
    %c0_79 = arith.constant 0 : index
    %c0_80 = arith.constant 0 : index
    %83 = vector.load %arg4[%c7, %c0_79, %c0_80] : memref<9x128x128xbf16, #tpu.memory_space<vmem>>, vector<1x128x128xbf16>
    %84 = vector.shape_cast %83 : vector<1x128x128xbf16> to vector<128x128xbf16>
    %cst_81 = arith.constant dense<0.000000e+00> : vector<64x128xf32>
    %85 = tpu.matmul %82, %84, %cst_81 {dimension_numbers = #tpu.dot_dimension_numbers<[1], [0], [0], [1], [0, 0, 1, 1], [], []>} : vector<64x128xbf16>, vector<128x128xbf16>, vector<64x128xf32> -> vector<64x128xf32>
    %86 = arith.addf %78, %85 : vector<64x128xf32>
    %c0_82 = arith.constant 0 : index
    %c2_83 = arith.constant 2 : index
    %c2_84 = arith.constant 2 : index
    %c0_85 = arith.constant 0 : index
    %87 = vector.load %arg8[%c0_82, %c2_83, %c2_84, %c0_85] : memref<1x10x10x128xf32, #tpu.memory_space<vmem>>, vector<1x8x8x128xf32>
    %88 = vector.shape_cast %87 : vector<1x8x8x128xf32> to vector<8x8x128xf32>
    %89 = vector.shape_cast %88 : vector<8x8x128xf32> to vector<64x128xf32>
    %90 = arith.truncf %89 : vector<64x128xf32> to vector<64x128xbf16>
    %c8 = arith.constant 8 : index
    %c0_86 = arith.constant 0 : index
    %c0_87 = arith.constant 0 : index
    %91 = vector.load %arg4[%c8, %c0_86, %c0_87] : memref<9x128x128xbf16, #tpu.memory_space<vmem>>, vector<1x128x128xbf16>
    %92 = vector.shape_cast %91 : vector<1x128x128xbf16> to vector<128x128xbf16>
    %cst_88 = arith.constant dense<0.000000e+00> : vector<64x128xf32>
    %93 = tpu.matmul %90, %92, %cst_88 {dimension_numbers = #tpu.dot_dimension_numbers<[1], [0], [0], [1], [0, 0, 1, 1], [], []>} : vector<64x128xbf16>, vector<128x128xbf16>, vector<64x128xf32> -> vector<64x128xf32>
    %94 = arith.addf %86, %93 : vector<64x128xf32>
    %95 = vector.shape_cast %94 : vector<64x128xf32> to vector<8x8x128xf32>
    %c0_89 = arith.constant 0 : index
    %c0_90 = arith.constant 0 : index
    %c0_91 = arith.constant 0 : index
    %c0_92 = arith.constant 0 : index
    %96 = vector.load %arg7[%c0_89, %c0_90, %c0_91, %c0_92] : memref<1x8x8x128xf32, #tpu.memory_space<vmem>>, vector<1x8x8x128xf32>
    %97 = vector.shape_cast %96 : vector<1x8x8x128xf32> to vector<8x8x128xf32>
    %98 = vector.shape_cast %95 : vector<8x8x128xf32> to vector<1x8x8x128xf32>
    tpu.vector_store %arg7[%c0_89, %c0_90, %c0_91, %c0_92], %98 {strides = array<i32>} : memref<1x8x8x128xf32, #tpu.memory_space<vmem>>, vector<1x8x8x128xf32>,
    return
  }
  func.func @transform_0(%arg0: i32) -> (i32, i32, i32, i32, i32) {
    %c0_i32 = arith.constant 0 : i32
    %c0_i32_0 = arith.constant 0 : i32
    %c0_i32_1 = arith.constant 0 : i32
    %c0_i32_2 = arith.constant 0 : i32
    %c0_i32_3 = arith.constant 0 : i32
    return %arg0, %c0_i32, %c0_i32_0, %c0_i32_1, %c0_i32_2 : i32, i32, i32, i32, i32
  }
  func.func @transform_1(%arg0: i32) -> (i32, i32) {
    %c0_i32 = arith.constant 0 : i32
    %c0_i32_0 = arith.constant 0 : i32
    %c0_i32_1 = arith.constant 0 : i32
    return %c0_i32, %c0_i32_0 : i32, i32
  }
  func.func @transform_2(%arg0: i32) -> (i32, i32) {
    %c0_i32 = arith.constant 0 : i32
    %c0_i32_0 = arith.constant 0 : i32
    %c0_i32_1 = arith.constant 0 : i32
    return %c0_i32, %c0_i32_0 : i32, i32
  }
  func.func @transform_3(%arg0: i32) -> (i32, i32, i32) {
    %c0_i32 = arith.constant 0 : i32
    %c0_i32_0 = arith.constant 0 : i32
    %c0_i32_1 = arith.constant 0 : i32
    %c0_i32_2 = arith.constant 0 : i32
    return %c0_i32, %c0_i32_0, %c0_i32_1 : i32, i32, i32
  }
  func.func @transform_4(%arg0: i32) -> (i32, i32, i32, i32, i32) {
    %c0_i32 = arith.constant 0 : i32
    %c0_i32_0 = arith.constant 0 : i32
    %c0_i32_1 = arith.constant 0 : i32
    %c0_i32_2 = arith.constant 0 : i32
    %c0_i32_3 = arith.constant 0 : i32
    return %arg0, %c0_i32, %c0_i32_0, %c0_i32_1, %c0_i32_2 : i32, i32, i32, i32, i32
  }
  func.func @transform_5(%arg0: i32) -> (i32, i32) {
    %c0_i32 = arith.constant 0 : i32
    %c0_i32_0 = arith.constant 0 : i32
    %c0_i32_1 = arith.constant 0 : i32
    return %c0_i32, %c0_i32_0 : i32, i32
  }
  func.func @transform_6(%arg0: i32) -> (i32, i32, i32, i32) {
    %c0_i32 = arith.constant 0 : i32
    %c0_i32_0 = arith.constant 0 : i32
    %c0_i32_1 = arith.constant 0 : i32
    %c0_i32_2 = arith.constant 0 : i32
    return %arg0, %c0_i32, %c0_i32_0, %c0_i32_1 : i32, i32, i32, i32
  }
}

</mosaic_0001>

<llo_original>
// kernel: _lambda_.6
$region0: #{_lambda_.6}
  #allocation0 [shape = 'u32[]', space=smem, size = 0x4, offset = 0x4, fixed_abs, tag = 'smem constant byte address 0x4 - core index']
  #allocation1 [shape = 'u32[144,128]{1,0:T(1,128)}', space=vmem, size = 0x12000, scoped, tag = 'internal scratch']
  #allocation2 [shape = 'f32[1,128]{1,0:T(1,128)}', space=vmem, size = 0x200, scoped, tag = 'scratch operand']
  #allocation3 [shape = 'f32[1,128]{1,0:T(1,128)}', space=vmem, size = 0x200, scoped, tag = 'scratch operand']
  %s0 = inlined_call_operand.vmem [shape: f32[128,128], index: 0, kind: input, shape index: {}]
  %s1 = inlined_call_operand.vmem [shape: f32[1,128], index: 1, kind: input, shape index: {}]
  %s2 = inlined_call_operand.vmem [shape: f32[1,128], index: 2, kind: input, shape index: {}]
  %s3 = inlined_call_operand.vmem [shape: f32[1,128], index: 3, kind: output, shape index: {0}]
  %s4 = inlined_call_operand.vmem [shape: f32[1,128], index: 4, kind: output, shape index: {1}]
  %5 = xla_tuple %s3, %s4
  %s6 = sld [smem:[#allocation0]]
  $region38: #{_lambda_.6} parent=0
    _
  %s8 = ssub.s32 1, %s6
  %s9 = scalar_select 0, %s8, %s6
  // Predicated region
  $region2: #{_lambda_.6} parent=0 // pred_check
    _
  $region3: #{_lambda_.6} parent=0 // pred_check_branch
    %11 = sbr.rel (0) target = $region5
  $region4: #{_lambda_.6} parent=0 // pred_region
    _
  $region5: #{_lambda_.6} parent=0 // pred_fallthru
    _
  // Predicated region
  $region6: #{_lambda_.6} parent=0 // pred_check
    _
  $region7: #{_lambda_.6} parent=0 // pred_check_branch
    %13 = sbr.rel (0) target = $region9
  $region8: #{_lambda_.6} parent=0 // pred_region
    _
  $region9: #{_lambda_.6} parent=0 // pred_fallthru
    _
  // Predicated region
  $region10: #{_lambda_.6} parent=0 // pred_check
    _
  $region11: #{_lambda_.6} parent=0 // pred_check_branch
    %15 = sbr.rel (0) target = $region13
  $region12: #{_lambda_.6} parent=0 // pred_region
    _
  $region13: #{_lambda_.6} parent=0 // pred_fallthru
    _
  %p16 = scmp.eq.s32.totalorder 0, 0
  // Predicated region
  $region14: #{_lambda_.6} parent=0 // pred_check
    %p17 = pneg %p16
  $region15: #{_lambda_.6} parent=0 // pred_check_branch
    %19 = sbr.rel (%p17) target = $region17
  $region16: #{_lambda_.6} parent=0 // pred_region
    %20 = vst [vmem:[#allocation2] sm:$0x1] 0.0
    %21 = vst [vmem:[#allocation3] sm:$0x1] 0.0
  $region17: #{_lambda_.6} parent=0 // pred_fallthru
    _
  %v22 = vld [vmem:[%s0] sm:$0xff]
  %v23 = vld [vmem:[%s0 + $0x8] sm:$0xff]
  %v24 = vld [vmem:[%s0 + $0x10] sm:$0xff]
  %v25 = vld [vmem:[%s0 + $0x18] sm:$0xff]
  %v26 = vld [vmem:[%s0 + $0x20] sm:$0xff]
  %v27 = vld [vmem:[%s0 + $0x28] sm:$0xff]
  %v28 = vld [vmem:[%s0 + $0x30] sm:$0xff]
  %v29 = vld [vmem:[%s0 + $0x38] sm:$0xff]
  %v30 = vld [vmem:[%s0 + $0x40] sm:$0xff]
  %v31 = vld [vmem:[%s0 + $0x48] sm:$0xff]
  %v32 = vld [vmem:[%s0 + $0x50] sm:$0xff]
  %v33 = vld [vmem:[%s0 + $0x58] sm:$0xff]
  %v34 = vld [vmem:[%s0 + $0x60] sm:$0xff]
  %v35 = vld [vmem:[%s0 + $0x68] sm:$0xff]
  %v36 = vld [vmem:[%s0 + $0x70] sm:$0xff]
  %v37 = vld [vmem:[%s0 + $0x78] sm:$0xff]
  %v38 = vld [vmem:[#allocation2] sm:$0x1]
  %v39 = vadd.f32 %v22, %v23
  %v40 = vadd.f32 %v39, %v24
  %v41 = vadd.f32 %v40, %v25
  %v42 = vadd.f32 %v41, %v26
  %v43 = vadd.f32 %v42, %v27
  %v44 = vadd.f32 %v43, %v28
  %v45 = vadd.f32 %v44, %v29
  %v46 = vadd.f32 %v45, %v30
  %v47 = vadd.f32 %v46, %v31
  %v48 = vadd.f32 %v47, %v32
  %v49 = vadd.f32 %v48, %v33
  %v50 = vadd.f32 %v49, %v34
  %v51 = vadd.f32 %v50, %v35
  %v52 = vadd.f32 %v51, %v36
  %v53 = vadd.f32 %v52, %v37
  %v54 = vrot.slane %v53, 4
  %v55 = vadd.f32 %v53, %v54
  %v56 = vrot.slane %v55, 2
  %v57 = vadd.f32 %v55, %v56
  %v58 = vrot.slane %v57, 1
  %v59 = vadd.f32 %v57, %v58
  %v60 = vadd.f32 %v38, %v59
  %61 = vst [vmem:[#allocation2] sm:$0x1] %v60
  %v62 = vld [vmem:[#allocation3] sm:$0x1]
  %v63 = vmul.f32 %v22, %v22
  %v64 = vmul.f32 %v23, %v23
  %v65 = vmul.f32 %v24, %v24
  %v66 = vmul.f32 %v25, %v25
  %v67 = vmul.f32 %v26, %v26
  %v68 = vmul.f32 %v27, %v27
  %v69 = vmul.f32 %v28, %v28
  %v70 = vmul.f32 %v29, %v29
  %v71 = vmul.f32 %v30, %v30
  %v72 = vmul.f32 %v31, %v31
  %v73 = vmul.f32 %v32, %v32
  %v74 = vmul.f32 %v33, %v33
  %v75 = vmul.f32 %v34, %v34
  %v76 = vmul.f32 %v35, %v35
  %v77 = vmul.f32 %v36, %v36
  %v78 = vmul.f32 %v37, %v37
  %v79 = vadd.f32 %v63, %v64
  %v80 = vadd.f32 %v79, %v65
  %v81 = vadd.f32 %v80, %v66
  %v82 = vadd.f32 %v81, %v67
  %v83 = vadd.f32 %v82, %v68
  %v84 = vadd.f32 %v83, %v69
  %v85 = vadd.f32 %v84, %v70
  %v86 = vadd.f32 %v85, %v71
  %v87 = vadd.f32 %v86, %v72
  %v88 = vadd.f32 %v87, %v73
  %v89 = vadd.f32 %v88, %v74
  %v90 = vadd.f32 %v89, %v75
  %v91 = vadd.f32 %v90, %v76
  %v92 = vadd.f32 %v91, %v77
  %v93 = vadd.f32 %v92, %v78
  %v94 = vrot.slane %v93, 4
  %v95 = vadd.f32 %v93, %v94
  %v96 = vrot.slane %v95, 2
  %v97 = vadd.f32 %v95, %v96
  %v98 = vrot.slane %v97, 1
  %v99 = vadd.f32 %v97, %v98
  %v100 = vadd.f32 %v62, %v99
  %101 = vst [vmem:[#allocation3] sm:$0x1] %v100
  // Predicated region
  $region18: #{_lambda_.6} parent=0 // pred_check
    %p102 = pneg %p16
  $region19: #{_lambda_.6} parent=0 // pred_check_branch
    %104 = sbr.rel (%p102) target = $region21
  $region20: #{_lambda_.6} parent=0 // pred_region
    %v105 = vld [vmem:[#allocation2] sm:$0x1]
    %v106 = vmul.f32 %v105, 0.0078125
    %v107 = vld [vmem:[#allocation3] sm:$0x1]
    %v108 = vmul.f32 %v107, 0.0078125
    %v109 = vmul.f32 %v106, %v106
    %v110 = vsub.f32 %v108, %v109
    %v111 = vld [vmem:[%s1] sm:$0x1]
    %v112 = vadd.f32 %v110, 1e-05
    %v113 = vrsqrt.pop %v112
    %v114 = vmul.f32 %v111, %v113
    %115 = vst [vmem:[%s3] sm:$0x1] %v114
    %v116 = vld [vmem:[%s2] sm:$0x1]
    %v117 = vmul.f32 %v106, %v114
    %v118 = vsub.f32 %v116, %v117
    %119 = vst [vmem:[%s4] sm:$0x1] %v118
  $region21: #{_lambda_.6} parent=0 // pred_fallthru
    _
  // Predicated region
  $region22: #{_lambda_.6} parent=0 // pred_check
    _
  $region23: #{_lambda_.6} parent=0 // pred_check_branch
    %121 = sbr.rel (0) target = $region25
  $region24: #{_lambda_.6} parent=0 // pred_region
    _
  $region25: #{_lambda_.6} parent=0 // pred_fallthru
    _
  // Predicated region
  $region26: #{_lambda_.6} parent=0 // pred_check
    _
  $region27: #{_lambda_.6} parent=0 // pred_check_branch
    %123 = sbr.rel (0) target = $region29
  $region28: #{_lambda_.6} parent=0 // pred_region
    _
  $region29: #{_lambda_.6} parent=0 // pred_fallthru
    _
  // Predicated region
  $region30: #{_lambda_.6} parent=0 // pred_check
    _
  $region31: #{_lambda_.6} parent=0 // pred_check_branch
    %125 = sbr.rel (0) target = $region33
  $region32: #{_lambda_.6} parent=0 // pred_region
    _
  $region33: #{_lambda_.6} parent=0 // pred_fallthru
    _
  // Predicated region
  $region34: #{_lambda_.6} parent=0 // pred_check
    _
  $region35: #{_lambda_.6} parent=0 // pred_check_branch
    %127 = sbr.rel (0) target = $region37
  $region36: #{_lambda_.6} parent=0 // pred_region
    _
  $region37: #{_lambda_.6} parent=0 // pred_fallthru
    _

// kernel: _lambda_.4
$region0: #{_lambda_.4}
  #allocation0 [shape = 'u32[]', space=smem, size = 0x4, offset = 0x4, fixed_abs, tag = 'smem constant byte address 0x4 - core index']
  #allocation1 [shape = 'u32[144,128]{1,0:T(1,128)}', space=vmem, size = 0x12000, scoped, tag = 'internal scratch']
  #allocation2 [shape = 'f32[1,128]{1,0:T(1,128)}', space=vmem, size = 0x200, scoped, tag = 'scratch operand']
  #allocation3 [shape = 'f32[1,128]{1,0:T(1,128)}', space=vmem, size = 0x200, scoped, tag = 'scratch operand']
  %s0 = inlined_call_operand.vmem [shape: f32[512,128], index: 0, kind: input, shape index: {}]
  %s1 = inlined_call_operand.vmem [shape: f32[1,128], index: 1, kind: input, shape index: {}]
  %s2 = inlined_call_operand.vmem [shape: f32[1,128], index: 2, kind: input, shape index: {}]
  %s3 = inlined_call_operand.vmem [shape: f32[1,128], index: 3, kind: output, shape index: {0}]
  %s4 = inlined_call_operand.vmem [shape: f32[1,128], index: 4, kind: output, shape index: {1}]
  %5 = xla_tuple %s3, %s4
  %s6 = sld [smem:[#allocation0]]
  $region38: #{_lambda_.4} parent=0
    _
  %s8 = ssub.s32 1, %s6
  %s9 = scalar_select 0, %s8, %s6
  // Predicated region
  $region2: #{_lambda_.4} parent=0 // pred_check
    _
  $region3: #{_lambda_.4} parent=0 // pred_check_branch
    %11 = sbr.rel (0) target = $region5
  $region4: #{_lambda_.4} parent=0 // pred_region
    _
  $region5: #{_lambda_.4} parent=0 // pred_fallthru
    _
  // Predicated region
  $region6: #{_lambda_.4} parent=0 // pred_check
    _
  $region7: #{_lambda_.4} parent=0 // pred_check_branch
    %13 = sbr.rel (0) target = $region9
  $region8: #{_lambda_.4} parent=0 // pred_region
    _
  $region9: #{_lambda_.4} parent=0 // pred_fallthru
    _
  // Predicated region
  $region10: #{_lambda_.4} parent=0 // pred_check
    _
  $region11: #{_lambda_.4} parent=0 // pred_check_branch
    %15 = sbr.rel (0) target = $region13
  $region12: #{_lambda_.4} parent=0 // pred_region
    _
  $region13: #{_lambda_.4} parent=0 // pred_fallthru
    _
  %p16 = scmp.eq.s32.totalorder 0, 0
  // Predicated region
  $region14: #{_lambda_.4} parent=0 // pred_check
    %p17 = pneg %p16
  $region15: #{_lambda_.4} parent=0 // pred_check_branch
    %19 = sbr.rel (%p17) target = $region17
  $region16: #{_lambda_.4} parent=0 // pred_region
    %20 = vst [vmem:[#allocation2] sm:$0x1] 0.0
    %21 = vst [vmem:[#allocation3] sm:$0x1] 0.0
  $region17: #{_lambda_.4} parent=0 // pred_fallthru
    _
  %v22 = vld [vmem:[%s0] sm:$0xff]
  %v23 = vld [vmem:[%s0 + $0x8] sm:$0xff]
  %v24 = vld [vmem:[%s0 + $0x10] sm:$0xff]
  %v25 = vld [vmem:[%s0 + $0x18] sm:$0xff]
  %v26 = vld [vmem:[%s0 + $0x20] sm:$0xff]
  %v27 = vld [vmem:[%s0 + $0x28] sm:$0xff]
  %v28 = vld [vmem:[%s0 + $0x30] sm:$0xff]
  %v29 = vld [vmem:[%s0 + $0x38] sm:$0xff]
  %v30 = vld [vmem:[%s0 + $0x40] sm:$0xff]
  %v31 = vld [vmem:[%s0 + $0x48] sm:$0xff]
  %v32 = vld [vmem:[%s0 + $0x50] sm:$0xff]
  %v33 = vld [vmem:[%s0 + $0x58] sm:$0xff]
  %v34 = vld [vmem:[%s0 + $0x60] sm:$0xff]
  %v35 = vld [vmem:[%s0 + $0x68] sm:$0xff]
  %v36 = vld [vmem:[%s0 + $0x70] sm:$0xff]
  %v37 = vld [vmem:[%s0 + $0x78] sm:$0xff]
  %v38 = vld [vmem:[%s0 + $0x80] sm:$0xff]
  %v39 = vld [vmem:[%s0 + $0x88] sm:$0xff]
  %v40 = vld [vmem:[%s0 + $0x90] sm:$0xff]
  %v41 = vld [vmem:[%s0 + $0x98] sm:$0xff]
  %v42 = vld [vmem:[%s0 + $0xa0] sm:$0xff]
  %v43 = vld [vmem:[%s0 + $0xa8] sm:$0xff]
  %v44 = vld [vmem:[%s0 + $0xb0] sm:$0xff]
  %v45 = vld [vmem:[%s0 + $0xb8] sm:$0xff]
  %v46 = vld [vmem:[%s0 + $0xc0] sm:$0xff]
  %v47 = vld [vmem:[%s0 + $0xc8] sm:$0xff]
  %v48 = vld [vmem:[%s0 + $0xd0] sm:$0xff]
  %v49 = vld [vmem:[%s0 + $0xd8] sm:$0xff]
  %v50 = vld [vmem:[%s0 + $0xe0] sm:$0xff]
  %v51 = vld [vmem:[%s0 + $0xe8] sm:$0xff]
  %v52 = vld [vmem:[%s0 + $0xf0] sm:$0xff]
  %v53 = vld [vmem:[%s0 + $0xf8] sm:$0xff]
  %v54 = vld [vmem:[%s0 + $0x100] sm:$0xff]
  %v55 = vld [vmem:[%s0 + $0x108] sm:$0xff]
  %v56 = vld [vmem:[%s0 + $0x110] sm:$0xff]
  %v57 = vld [vmem:[%s0 + $0x118] sm:$0xff]
  %v58 = vld [vmem:[%s0 + $0x120] sm:$0xff]
  %v59 = vld [vmem:[%s0 + $0x128] sm:$0xff]
  %v60 = vld [vmem:[%s0 + $0x130] sm:$0xff]
  %v61 = vld [vmem:[%s0 + $0x138] sm:$0xff]
  %v62 = vld [vmem:[%s0 + $0x140] sm:$0xff]
  %v63 = vld [vmem:[%s0 + $0x148] sm:$0xff]
  %v64 = vld [vmem:[%s0 + $0x150] sm:$0xff]
  %v65 = vld [vmem:[%s0 + $0x158] sm:$0xff]
  %v66 = vld [vmem:[%s0 + $0x160] sm:$0xff]
  %v67 = vld [vmem:[%s0 + $0x168] sm:$0xff]
  %v68 = vld [vmem:[%s0 + $0x170] sm:$0xff]
  %v69 = vld [vmem:[%s0 + $0x178] sm:$0xff]
  %v70 = vld [vmem:[%s0 + $0x180] sm:$0xff]
  %v71 = vld [vmem:[%s0 + $0x188] sm:$0xff]
  %v72 = vld [vmem:[%s0 + $0x190] sm:$0xff]
  %v73 = vld [vmem:[%s0 + $0x198] sm:$0xff]
  %v74 = vld [vmem:[%s0 + $0x1a0] sm:$0xff]
  %v75 = vld [vmem:[%s0 + $0x1a8] sm:$0xff]
  %v76 = vld [vmem:[%s0 + $0x1b0] sm:$0xff]
  %v77 = vld [vmem:[%s0 + $0x1b8] sm:$0xff]
  %v78 = vld [vmem:[%s0 + $0x1c0] sm:$0xff]
  %v79 = vld [vmem:[%s0 + $0x1c8] sm:$0xff]
  %v80 = vld [vmem:[%s0 + $0x1d0] sm:$0xff]
  %v81 = vld [vmem:[%s0 + $0x1d8] sm:$0xff]
  %v82 = vld [vmem:[%s0 + $0x1e0] sm:$0xff]
  %v83 = vld [vmem:[%s0 + $0x1e8] sm:$0xff]
  %v84 = vld [vmem:[%s0 + $0x1f0] sm:$0xff]
  %v85 = vld [vmem:[%s0 + $0x1f8] sm:$0xff]
  %v86 = vld [vmem:[#allocation2] sm:$0x1]
  %v87 = vadd.f32 %v22, %v23
  %v88 = vadd.f32 %v87, %v24
  %v89 = vadd.f32 %v88, %v25
  %v90 = vadd.f32 %v89, %v26
  %v91 = vadd.f32 %v90, %v27
  %v92 = vadd.f32 %v91, %v28
  %v93 = vadd.f32 %v92, %v29
  %v94 = vadd.f32 %v93, %v30
  %v95 = vadd.f32 %v94, %v31
  %v96 = vadd.f32 %v95, %v32
  %v97 = vadd.f32 %v96, %v33
  %v98 = vadd.f32 %v97, %v34
  %v99 = vadd.f32 %v98, %v35
  %v100 = vadd.f32 %v99, %v36
  %v101 = vadd.f32 %v100, %v37
  %v102 = vadd.f32 %v101, %v38
  %v103 = vadd.f32 %v102, %v39
  %v104 = vadd.f32 %v103, %v40
  %v105 = vadd.f32 %v104, %v41
  %v106 = vadd.f32 %v105, %v42
  %v107 = vadd.f32 %v106, %v43
  %v108 = vadd.f32 %v107, %v44
  %v109 = vadd.f32 %v108, %v45
  %v110 = vadd.f32 %v109, %v46
  %v111 = vadd.f32 %v110, %v47
  %v112 = vadd.f32 %v111, %v48
  %v113 = vadd.f32 %v112, %v49
  %v114 = vadd.f32 %v113, %v50
  %v115 = vadd.f32 %v114, %v51
  %v116 = vadd.f32 %v115, %v52
  %v117 = vadd.f32 %v116, %v53
  %v118 = vadd.f32 %v117, %v54
  %v119 = vadd.f32 %v118, %v55
  %v120 = vadd.f32 %v119, %v56
  %v121 = vadd.f32 %v120, %v57
  %v122 = vadd.f32 %v121, %v58
  %v123 = vadd.f32 %v122, %v59
  %v124 = vadd.f32 %v123, %v60
  %v125 = vadd.f32 %v124, %v61
  %v126 = vadd.f32 %v125, %v62
  %v127 = vadd.f32 %v126, %v63
  %v128 = vadd.f32 %v127, %v64
  %v129 = vadd.f32 %v128, %v65
  %v130 = vadd.f32 %v129, %v66
  %v131 = vadd.f32 %v130, %v67
  %v132 = vadd.f32 %v131, %v68
  %v133 = vadd.f32 %v132, %v69
  %v134 = vadd.f32 %v133, %v70
  %v135 = vadd.f32 %v134, %v71
  %v136 = vadd.f32 %v135, %v72
  %v137 = vadd.f32 %v136, %v73
  %v138 = vadd.f32 %v137, %v74
  %v139 = vadd.f32 %v138, %v75
  %v140 = vadd.f32 %v139, %v76
  %v141 = vadd.f32 %v140, %v77
  %v142 = vadd.f32 %v141, %v78
  %v143 = vadd.f32 %v142, %v79
  %v144 = vadd.f32 %v143, %v80
  %v145 = vadd.f32 %v144, %v81
  %v146 = vadd.f32 %v145, %v82
  %v147 = vadd.f32 %v146, %v83
  %v148 = vadd.f32 %v147, %v84
  %v149 = vadd.f32 %v148, %v85
  %v150 = vrot.slane %v149, 4
  %v151 = vadd.f32 %v149, %v150
  %v152 = vrot.slane %v151, 2
  %v153 = vadd.f32 %v151, %v152
  %v154 = vrot.slane %v153, 1
  %v155 = vadd.f32 %v153, %v154
  %v156 = vadd.f32 %v86, %v155
  %157 = vst [vmem:[#allocation2] sm:$0x1] %v156
  %v158 = vld [vmem:[#allocation3] sm:$0x1]
  %v159 = vmul.f32 %v22, %v22
  %v160 = vmul.f32 %v23, %v23
  %v161 = vmul.f32 %v24, %v24
  %v162 = vmul.f32 %v25, %v25
  %v163 = vmul.f32 %v26, %v26
  %v164 = vmul.f32 %v27, %v27
  %v165 = vmul.f32 %v28, %v28
  %v166 = vmul.f32 %v29, %v29
  %v167 = vmul.f32 %v30, %v30
  %v168 = vmul.f32 %v31, %v31
  %v169 = vmul.f32 %v32, %v32
  %v170 = vmul.f32 %v33, %v33
  %v171 = vmul.f32 %v34, %v34
  %v172 = vmul.f32 %v35, %v35
  %v173 = vmul.f32 %v36, %v36
  %v174 = vmul.f32 %v37, %v37
  %v175 = vmul.f32 %v38, %v38
  %v176 = vmul.f32 %v39, %v39
  %v177 = vmul.f32 %v40, %v40
  %v178 = vmul.f32 %v41, %v41
  %v179 = vmul.f32 %v42, %v42
  %v180 = vmul.f32 %v43, %v43
  %v181 = vmul.f32 %v44, %v44
  %v182 = vmul.f32 %v45, %v45
  %v183 = vmul.f32 %v46, %v46
  %v184 = vmul.f32 %v47, %v47
  %v185 = vmul.f32 %v48, %v48
  %v186 = vmul.f32 %v49, %v49
  %v187 = vmul.f32 %v50, %v50
  %v188 = vmul.f32 %v51, %v51
  %v189 = vmul.f32 %v52, %v52
  %v190 = vmul.f32 %v53, %v53
  %v191 = vmul.f32 %v54, %v54
  %v192 = vmul.f32 %v55, %v55
  %v193 = vmul.f32 %v56, %v56
  %v194 = vmul.f32 %v57, %v57
  %v195 = vmul.f32 %v58, %v58
  %v196 = vmul.f32 %v59, %v59
  %v197 = vmul.f32 %v60, %v60
  %v198 = vmul.f32 %v61, %v61
  %v199 = vmul.f32 %v62, %v62
  %v200 = vmul.f32 %v63, %v63
  %v201 = vmul.f32 %v64, %v64
  %v202 = vmul.f32 %v65, %v65
  %v203 = vmul.f32 %v66, %v66
  %v204 = vmul.f32 %v67, %v67
  %v205 = vmul.f32 %v68, %v68
  %v206 = vmul.f32 %v69, %v69
  %v207 = vmul.f32 %v70, %v70
  %v208 = vmul.f32 %v71, %v71
  %v209 = vmul.f32 %v72, %v72
  %v210 = vmul.f32 %v73, %v73
  %v211 = vmul.f32 %v74, %v74
  %v212 = vmul.f32 %v75, %v75
  %v213 = vmul.f32 %v76, %v76
  %v214 = vmul.f32 %v77, %v77
  %v215 = vmul.f32 %v78, %v78
  %v216 = vmul.f32 %v79, %v79
  %v217 = vmul.f32 %v80, %v80
  %v218 = vmul.f32 %v81, %v81
  %v219 = vmul.f32 %v82, %v82
  %v220 = vmul.f32 %v83, %v83
  %v221 = vmul.f32 %v84, %v84
  %v222 = vmul.f32 %v85, %v85
  %v223 = vadd.f32 %v159, %v160
  %v224 = vadd.f32 %v223, %v161
  %v225 = vadd.f32 %v224, %v162
  %v226 = vadd.f32 %v225, %v163
  %v227 = vadd.f32 %v226, %v164
  %v228 = vadd.f32 %v227, %v165
  %v229 = vadd.f32 %v228, %v166
  %v230 = vadd.f32 %v229, %v167
  %v231 = vadd.f32 %v230, %v168
  %v232 = vadd.f32 %v231, %v169
  %v233 = vadd.f32 %v232, %v170
  %v234 = vadd.f32 %v233, %v171
  %v235 = vadd.f32 %v234, %v172
  %v236 = vadd.f32 %v235, %v173
  %v237 = vadd.f32 %v236, %v174
  %v238 = vadd.f32 %v237, %v175
  %v239 = vadd.f32 %v238, %v176
  %v240 = vadd.f32 %v239, %v177
  %v241 = vadd.f32 %v240, %v178
  %v242 = vadd.f32 %v241, %v179
  %v243 = vadd.f32 %v242, %v180
  %v244 = vadd.f32 %v243, %v181
  %v245 = vadd.f32 %v244, %v182
  %v246 = vadd.f32 %v245, %v183
  %v247 = vadd.f32 %v246, %v184
  %v248 = vadd.f32 %v247, %v185
  %v249 = vadd.f32 %v248, %v186
  %v250 = vadd.f32 %v249, %v187
  %v251 = vadd.f32 %v250, %v188
  %v252 = vadd.f32 %v251, %v189
  %v253 = vadd.f32 %v252, %v190
  %v254 = vadd.f32 %v253, %v191
  %v255 = vadd.f32 %v254, %v192
  %v256 = vadd.f32 %v255, %v193
  %v257 = vadd.f32 %v256, %v194
  %v258 = vadd.f32 %v257, %v195
  %v259 = vadd.f32 %v258, %v196
  %v260 = vadd.f32 %v259, %v197
  %v261 = vadd.f32 %v260, %v198
  %v262 = vadd.f32 %v261, %v199
  %v263 = vadd.f32 %v262, %v200
  %v264 = vadd.f32 %v263, %v201
  %v265 = vadd.f32 %v264, %v202
  %v266 = vadd.f32 %v265, %v203
  %v267 = vadd.f32 %v266, %v204
  %v268 = vadd.f32 %v267, %v205
  %v269 = vadd.f32 %v268, %v206
  %v270 = vadd.f32 %v269, %v207
  %v271 = vadd.f32 %v270, %v208
  %v272 = vadd.f32 %v271, %v209
  %v273 = vadd.f32 %v272, %v210
  %v274 = vadd.f32 %v273, %v211
  %v275 = vadd.f32 %v274, %v212
  %v276 = vadd.f32 %v275, %v213
  %v277 = vadd.f32 %v276, %v214
  %v278 = vadd.f32 %v277, %v215
  %v279 = vadd.f32 %v278, %v216
  %v280 = vadd.f32 %v279, %v217
  %v281 = vadd.f32 %v280, %v218
  %v282 = vadd.f32 %v281, %v219
  %v283 = vadd.f32 %v282, %v220
  %v284 = vadd.f32 %v283, %v221
  %v285 = vadd.f32 %v284, %v222
  %v286 = vrot.slane %v285, 4
  %v287 = vadd.f32 %v285, %v286
  %v288 = vrot.slane %v287, 2
  %v289 = vadd.f32 %v287, %v288
  %v290 = vrot.slane %v289, 1
  %v291 = vadd.f32 %v289, %v290
  %v292 = vadd.f32 %v158, %v291
  %293 = vst [vmem:[#allocation3] sm:$0x1] %v292
  // Predicated region
  $region18: #{_lambda_.4} parent=0 // pred_check
    %p294 = pneg %p16
  $region19: #{_lambda_.4} parent=0 // pred_check_branch
    %296 = sbr.rel (%p294) target = $region21
  $region20: #{_lambda_.4} parent=0 // pred_region
    %v297 = vld [vmem:[#allocation2] sm:$0x1]
    %v298 = vmul.f32 %v297, 0.001953125
    %v299 = vld [vmem:[#allocation3] sm:$0x1]
    %v300 = vmul.f32 %v299, 0.001953125
    %v301 = vmul.f32 %v298, %v298
    %v302 = vsub.f32 %v300, %v301
    %v303 = vld [vmem:[%s1] sm:$0x1]
    %v304 = vadd.f32 %v302, 1e-05
    %v305 = vrsqrt.pop %v304
    %v306 = vmul.f32 %v303, %v305
    %307 = vst [vmem:[%s3] sm:$0x1] %v306
    %v308 = vld [vmem:[%s2] sm:$0x1]
    %v309 = vmul.f32 %v298, %v306
    %v310 = vsub.f32 %v308, %v309
    %311 = vst [vmem:[%s4] sm:$0x1] %v310
  $region21: #{_lambda_.4} parent=0 // pred_fallthru
    _
  // Predicated region
  $region22: #{_lambda_.4} parent=0 // pred_check
    _
  $region23: #{_lambda_.4} parent=0 // pred_check_branch
    %313 = sbr.rel (0) target = $region25
  $region24: #{_lambda_.4} parent=0 // pred_region
    _
  $region25: #{_lambda_.4} parent=0 // pred_fallthru
    _
  // Predicated region
  $region26: #{_lambda_.4} parent=0 // pred_check
    _
  $region27: #{_lambda_.4} parent=0 // pred_check_branch
    %315 = sbr.rel (0) target = $region29
  $region28: #{_lambda_.4} parent=0 // pred_region
    _
  $region29: #{_lambda_.4} parent=0 // pred_fallthru
    _
  // Predicated region
  $region30: #{_lambda_.4} parent=0 // pred_check
    _
  $region31: #{_lambda_.4} parent=0 // pred_check_branch
    %317 = sbr.rel (0) target = $region33
  $region32: #{_lambda_.4} parent=0 // pred_region
    _
  $region33: #{_lambda_.4} parent=0 // pred_fallthru
    _
  // Predicated region
  $region34: #{_lambda_.4} parent=0 // pred_check
    _
  $region35: #{_lambda_.4} parent=0 // pred_check_branch
    %319 = sbr.rel (0) target = $region37
  $region36: #{_lambda_.4} parent=0 // pred_region
    _
  $region37: #{_lambda_.4} parent=0 // pred_fallthru
    _

// kernel: _lambda_.5
$region0: #{_lambda_.5}
  #allocation0 [shape = 'u32[]', space=smem, size = 0x4, offset = 0x4, fixed_abs, tag = 'smem constant byte address 0x4 - core index']
  #allocation1 [shape = 'u32[144,128]{1,0:T(1,128)}', space=vmem, size = 0x12000, scoped, tag = 'internal scratch']
  #allocation2 [shape = 'f32[4,10,10,128]{3,2,1,0:T(8,128)}', space=vmem, size = 0x50000, scoped, tag = 'scratch operand']
  %s0 = inlined_call_operand.vmem [shape: f32[2,4,8,8,128], index: 0, kind: input, shape index: {}]
  %s1 = inlined_call_operand.vmem [shape: f32[1,128], index: 1, kind: input, shape index: {}]
  %s2 = inlined_call_operand.vmem [shape: f32[1,128], index: 2, kind: input, shape index: {}]
  %s3 = inlined_call_operand.vmem [shape: bf16[9,128,128], index: 3, kind: input, shape index: {}]
  %s4 = inlined_call_operand.vmem [shape: f32[2,8,8,128], index: 4, kind: output, shape index: {}]
  %s5 = sld [smem:[#allocation0]]
  $region49: #{_lambda_.5} parent=0
    _
  %s7 = ssub.s32 1, %s5
  %s8 = scalar_select 0, %s7, %s5
  loop: start=0, step=1, limit=4
  $region2: #{_lambda_.5} parent=0 // loop_pre_header
    _
  $region3: #{_lambda_.5} parent=0 // loop_header
    %s10 = sphi 0, %s14
    %p11 = scmp.ge.s32.totalorder %s10, 4
    %s20 = sphi 0, %s22
    %s23 = sphi 0, %s20
    %s24 = sphi 0, %s23
    %s40 = sphi 0, %s24
    %s44 = sphi 0, %s44
    %s46 = sphi 0, %s44
    %s47 = sphi 0, %s46
    %s61 = sphi 0, %s47
    %s65 = sphi 0, %s65
    %s67 = sphi 0, %s65
    %s68 = sphi 0, %s67
    %s82 = sphi 0, %s68
    %s86 = sphi 0, %s86
    %s88 = sphi 0, %s86
    %s89 = sphi 0, %s88
    %s103 = sphi 0, %s89
    %s109 = sphi 0, %s111
    %s112 = sphi 0, %s109
    %s113 = sphi 0, %s112
    %s129 = sphi 0, %s113
  $region4: #{_lambda_.5} parent=0 // loop_header_branch
    %13 = sbr.rel (%p11) target = $region8
  $region5: #{_lambda_.5} parent=0 // loop_body
    %s15 = ssub.s32 %s10, 1
    %s16 = ssub.s32 %s10, 2
    %s17 = sadd.s32 %s10, 1
    %s18 = ssub.s32 %s10, %s17
    %p19 = scmp.eq.s32.totalorder %s18, 0
    %s21 = sadd.s32 %s20, 1
    %s22 = scalar_select %p19, %s20, %s21
    %p25 = pneg %p19
    %p26 = scmp.eq.s32.totalorder %s10, 1
    %p27 = por %p25, %p26
    %p28 = scmp.ne.s32.totalorder %s20, %s23
    %p29 = scmp.eq.s32.totalorder %s10, 0
    %p30 = por %p28, %p29
    %p31 = scmp.ne.s32.totalorder %s20, %s23
    %p32 = scmp.eq.s32.totalorder %s15, 1
    %p33 = por %p31, %p32
    %p34 = scmp.ne.s32.totalorder %s23, %s24
    %p35 = scmp.eq.s32.totalorder %s15, 0
    %p36 = por %p34, %p35
    %p37 = scmp.ne.s32.totalorder %s23, %s24
    %p38 = scmp.eq.s32.totalorder %s16, 1
    %p39 = por %p37, %p38
    %p41 = scmp.ne.s32.totalorder %s24, %s40
    %p42 = scmp.eq.s32.totalorder %s16, 0
    %p43 = por %p41, %p42
    %s45 = sadd.s32 %s44, 1
    %p48 = scmp.eq.s32.totalorder %s10, 1
    %p49 = scmp.ne.s32.totalorder %s44, %s46
    %p50 = scmp.eq.s32.totalorder %s10, 0
    %p51 = por %p49, %p50
    %p52 = scmp.ne.s32.totalorder %s44, %s46
    %p53 = scmp.eq.s32.totalorder %s15, 1
    %p54 = por %p52, %p53
    %p55 = scmp.ne.s32.totalorder %s46, %s47
    %p56 = scmp.eq.s32.totalorder %s15, 0
    %p57 = por %p55, %p56
    %p58 = scmp.ne.s32.totalorder %s46, %s47
    %p59 = scmp.eq.s32.totalorder %s16, 1
    %p60 = por %p58, %p59
    %p62 = scmp.ne.s32.totalorder %s47, %s61
    %p63 = scmp.eq.s32.totalorder %s16, 0
    %p64 = por %p62, %p63
    %s66 = sadd.s32 %s65, 1
    %p69 = scmp.eq.s32.totalorder %s10, 1
    %p70 = scmp.ne.s32.totalorder %s65, %s67
    %p71 = scmp.eq.s32.totalorder %s10, 0
    %p72 = por %p70, %p71
    %p73 = scmp.ne.s32.totalorder %s65, %s67
    %p74 = scmp.eq.s32.totalorder %s15, 1
    %p75 = por %p73, %p74
    %p76 = scmp.ne.s32.totalorder %s67, %s68
    %p77 = scmp.eq.s32.totalorder %s15, 0
    %p78 = por %p76, %p77
    %p79 = scmp.ne.s32.totalorder %s67, %s68
    %p80 = scmp.eq.s32.totalorder %s16, 1
    %p81 = por %p79, %p80
    %p83 = scmp.ne.s32.totalorder %s68, %s82
    %p84 = scmp.eq.s32.totalorder %s16, 0
    %p85 = por %p83, %p84
    %s87 = sadd.s32 %s86, 1
    %p90 = scmp.eq.s32.totalorder %s10, 1
    %p91 = scmp.ne.s32.totalorder %s86, %s88
    %p92 = scmp.eq.s32.totalorder %s10, 0
    %p93 = por %p91, %p92
    %p94 = scmp.ne.s32.totalorder %s86, %s88
    %p95 = scmp.eq.s32.totalorder %s15, 1
    %p96 = por %p94, %p95
    %p97 = scmp.ne.s32.totalorder %s88, %s89
    %p98 = scmp.eq.s32.totalorder %s15, 0
    %p99 = por %p97, %p98
    %p100 = scmp.ne.s32.totalorder %s88, %s89
    %p101 = scmp.eq.s32.totalorder %s16, 1
    %p102 = por %p100, %p101
    %p104 = scmp.ne.s32.totalorder %s89, %s103
    %p105 = scmp.eq.s32.totalorder %s16, 0
    %p106 = por %p104, %p105
    %s107 = ssub.s32 %s10, %s17
    %p108 = scmp.eq.s32.totalorder %s107, 0
    %s110 = sadd.s32 %s109, 1
    %s111 = scalar_select %p108, %s109, %s110
    %p114 = pneg %p108
    %p115 = scmp.eq.s32.totalorder %s10, 1
    %p116 = por %p114, %p115
    %p117 = scmp.ne.s32.totalorder %s109, %s112
    %p118 = scmp.eq.s32.totalorder %s10, 0
    %p119 = por %p117, %p118
    %p120 = scmp.ne.s32.totalorder %s109, %s112
    %p121 = scmp.eq.s32.totalorder %s15, 1
    %p122 = por %p120, %p121
    %p123 = scmp.ne.s32.totalorder %s112, %s113
    %p124 = scmp.eq.s32.totalorder %s15, 0
    %p125 = por %p123, %p124
    %p126 = scmp.ne.s32.totalorder %s112, %s113
    %p127 = scmp.eq.s32.totalorder %s16, 1
    %p128 = por %p126, %p127
    %p130 = scmp.ne.s32.totalorder %s113, %s129
    %p131 = scmp.eq.s32.totalorder %s16, 0
    %p132 = por %p130, %p131
    %p133 = scmp.le.s32.totalorder 1, %s10
    %p134 = scmp.lt.s32.totalorder %s10, 3
    %p135 = pnand %p133, %p134
    %p136 = pneg %p135
    // Predicated region
    $region9: #{_lambda_.5} parent=5 // pred_check
      _
    $region10: #{_lambda_.5} parent=5 // pred_check_branch
      %138 = sbr.rel (%p135) target = $region12
    $region11: #{_lambda_.5} parent=5 // pred_region
      %s139 = ssub.s32 %s10, 1
      // Predicated region
      $region13: #{_lambda_.5} parent=11 // pred_check
        %p140 = pneg %p57
      $region14: #{_lambda_.5} parent=11 // pred_check_branch
        %142 = sbr.rel (%p140) target = $region16
      $region15: #{_lambda_.5} parent=11 // pred_region
        _
      $region16: #{_lambda_.5} parent=11 // pred_fallthru
        _
      // Predicated region
      $region17: #{_lambda_.5} parent=11 // pred_check
        %p143 = pneg %p78
      $region18: #{_lambda_.5} parent=11 // pred_check_branch
        %145 = sbr.rel (%p143) target = $region20
      $region19: #{_lambda_.5} parent=11 // pred_region
        _
      $region20: #{_lambda_.5} parent=11 // pred_fallthru
        _
      // Predicated region
      $region21: #{_lambda_.5} parent=11 // pred_check
        %p146 = pneg %p99
      $region22: #{_lambda_.5} parent=11 // pred_check_branch
        %148 = sbr.rel (%p146) target = $region24
      $region23: #{_lambda_.5} parent=11 // pred_region
        _
      $region24: #{_lambda_.5} parent=11 // pred_fallthru
        _
    $region12: #{_lambda_.5} parent=5 // pred_fallthru
      _
    %p149 = scmp.lt.s32.totalorder %s10, 2
    // Predicated region
    $region25: #{_lambda_.5} parent=5 // pred_check
      %p150 = pneg %p149
    $region26: #{_lambda_.5} parent=5 // pred_check_branch
      %152 = sbr.rel (%p150) target = $region28
    $region27: #{_lambda_.5} parent=5 // pred_region
      // Predicated region
      $region29: #{_lambda_.5} parent=27 // pred_check
        %p153 = pneg %p30
      $region30: #{_lambda_.5} parent=27 // pred_check_branch
        %155 = sbr.rel (%p153) target = $region32
      $region31: #{_lambda_.5} parent=27 // pred_region
        %p156 = scmp.lt.s32.totalorder %s10, 1
        %s157 = scalar_select %p156, %s10, 1
        %s158 = smul.addr %s157, 32
        %s159 = smul.addr %s158, 8
        %s160 = scalar_lea.vmem %s0, %s159
      $region32: #{_lambda_.5} parent=27 // pred_fallthru
        _
    $region28: #{_lambda_.5} parent=5 // pred_fallthru
      _
    %p161 = scmp.le.s32.totalorder 1, %s10
    %p162 = scmp.lt.s32.totalorder %s10, 3
    %p163 = pnand %p161, %p162
    %p164 = pneg %p163
    // Predicated region
    $region33: #{_lambda_.5} parent=5 // pred_check
      _
    $region34: #{_lambda_.5} parent=5 // pred_check_branch
      %166 = sbr.rel (%p163) target = $region36
    $region35: #{_lambda_.5} parent=5 // pred_region
      %s167 = ssub.s32 %s10, 1
      %p168 = scmp.lt.s32.totalorder %s15, 1
      %s169 = scalar_select %p168, %s15, 1
      %s170 = smul.addr %s169, 32
      %s171 = smul.addr %s170, 8
      %s172 = scalar_lea.vmem %s0, %s171
      %p173 = pneg %p36
      %p174 = pneg %p33
      %p175 = pneg %p57
      %p176 = pneg %p54
      %p177 = pneg %p78
      %p178 = pneg %p75
      %p179 = pneg %p99
      %p180 = pneg %p96
      %p181 = pneg %p125
      %p182 = pneg %p122
      %p183 = scmp.lt.s32.totalorder %s15, 1
      %s184 = scalar_select %p183, %s15, 1
      %s185 = smul.addr %s184, 8
      %s186 = smul.addr %s185, 8
      %s187 = scalar_lea.vmem %s4, %s186
      %p188 = scmp.lt.s32.totalorder %s15, 1
      %s189 = scalar_select %p188, %s15, 1
      %s190 = smul.addr %s189, 32
      %s191 = smul.addr %s190, 8
      %s192 = scalar_lea.vmem %s0, %s191
      %p193 = scmp.lt.s32.totalorder %s15, 1
      %s194 = scalar_select %p193, %s15, 1
      %s195 = smul.addr %s194, 8
      %s196 = smul.addr %s195, 8
      %s197 = scalar_lea.vmem %s4, %s196
      %v199 = vld [vmem:[%s192] sm:$0xff]
      %v200 = vld [vmem:[%s192 + $0x8] sm:$0xff]
      %v201 = vld [vmem:[%s192 + $0x10] sm:$0xff]
      %v202 = vld [vmem:[%s192 + $0x18] sm:$0xff]
      %v203 = vld [vmem:[%s192 + $0x20] sm:$0xff]
      %v204 = vld [vmem:[%s192 + $0x28] sm:$0xff]
      %v205 = vld [vmem:[%s192 + $0x30] sm:$0xff]
      %v206 = vld [vmem:[%s192 + $0x38] sm:$0xff]
      %v207 = vld [vmem:[%s192 + $0x40] sm:$0xff]
      %v208 = vld [vmem:[%s192 + $0x48] sm:$0xff]
      %v209 = vld [vmem:[%s192 + $0x50] sm:$0xff]
      %v210 = vld [vmem:[%s192 + $0x58] sm:$0xff]
      %v211 = vld [vmem:[%s192 + $0x60] sm:$0xff]
      %v212 = vld [vmem:[%s192 + $0x68] sm:$0xff]
      %v213 = vld [vmem:[%s192 + $0x70] sm:$0xff]
      %v214 = vld [vmem:[%s192 + $0x78] sm:$0xff]
      %v215 = vld [vmem:[%s192 + $0x80] sm:$0xff]
      %v216 = vld [vmem:[%s192 + $0x88] sm:$0xff]
      %v217 = vld [vmem:[%s192 + $0x90] sm:$0xff]
      %v218 = vld [vmem:[%s192 + $0x98] sm:$0xff]
      %v219 = vld [vmem:[%s192 + $0xa0] sm:$0xff]
      %v220 = vld [vmem:[%s192 + $0xa8] sm:$0xff]
      %v221 = vld [vmem:[%s192 + $0xb0] sm:$0xff]
      %v222 = vld [vmem:[%s192 + $0xb8] sm:$0xff]
      %v223 = vld [vmem:[%s192 + $0xc0] sm:$0xff]
      %v224 = vld [vmem:[%s192 + $0xc8] sm:$0xff]
      %v225 = vld [vmem:[%s192 + $0xd0] sm:$0xff]
      %v226 = vld [vmem:[%s192 + $0xd8] sm:$0xff]
      %v227 = vld [vmem:[%s192 + $0xe0] sm:$0xff]
      %v228 = vld [vmem:[%s192 + $0xe8] sm:$0xff]
      %v229 = vld [vmem:[%s192 + $0xf0] sm:$0xff]
      %v230 = vld [vmem:[%s192 + $0xf8] sm:$0xff]
      %v231 = vld [vmem:[%s1] sm:$0x1]
      %v233 = vlaneseq
      %v234 = vshrl.u32 %v233, 7
      %v235 = vsub.s32 0, %v234
      %v236 = vrot.slane %v231, %v235
      %v238 = vmul.f32 %v199, %v236
      %v239 = vmul.f32 %v200, %v236
      %v240 = vmul.f32 %v201, %v236
      %v241 = vmul.f32 %v202, %v236
      %v242 = vmul.f32 %v203, %v236
      %v243 = vmul.f32 %v204, %v236
      %v244 = vmul.f32 %v205, %v236
      %v245 = vmul.f32 %v206, %v236
      %v246 = vmul.f32 %v207, %v236
      %v247 = vmul.f32 %v208, %v236
      %v248 = vmul.f32 %v209, %v236
      %v249 = vmul.f32 %v210, %v236
      %v250 = vmul.f32 %v211, %v236
      %v251 = vmul.f32 %v212, %v236
      %v252 = vmul.f32 %v213, %v236
      %v253 = vmul.f32 %v214, %v236
      %v254 = vmul.f32 %v215, %v236
      %v255 = vmul.f32 %v216, %v236
      %v256 = vmul.f32 %v217, %v236
      %v257 = vmul.f32 %v218, %v236
      %v258 = vmul.f32 %v219, %v236
      %v259 = vmul.f32 %v220, %v236
      %v260 = vmul.f32 %v221, %v236
      %v261 = vmul.f32 %v222, %v236
      %v262 = vmul.f32 %v223, %v236
      %v263 = vmul.f32 %v224, %v236
      %v264 = vmul.f32 %v225, %v236
      %v265 = vmul.f32 %v226, %v236
      %v266 = vmul.f32 %v227, %v236
      %v267 = vmul.f32 %v228, %v236
      %v268 = vmul.f32 %v229, %v236
      %v269 = vmul.f32 %v230, %v236
      %v270 = vld [vmem:[%s2] sm:$0x1]
      %v272 = vlaneseq
      %v273 = vshrl.u32 %v272, 7
      %v274 = vsub.s32 0, %v273
      %v275 = vrot.slane %v270, %v274
      %v277 = vadd.f32 %v238, %v275
      %v278 = vadd.f32 %v239, %v275
      %v279 = vadd.f32 %v240, %v275
      %v280 = vadd.f32 %v241, %v275
      %v281 = vadd.f32 %v242, %v275
      %v282 = vadd.f32 %v243, %v275
      %v283 = vadd.f32 %v244, %v275
      %v284 = vadd.f32 %v245, %v275
      %v285 = vadd.f32 %v246, %v275
      %v286 = vadd.f32 %v247, %v275
      %v287 = vadd.f32 %v248, %v275
      %v288 = vadd.f32 %v249, %v275
      %v289 = vadd.f32 %v250, %v275
      %v290 = vadd.f32 %v251, %v275
      %v291 = vadd.f32 %v252, %v275
      %v292 = vadd.f32 %v253, %v275
      %v293 = vadd.f32 %v254, %v275
      %v294 = vadd.f32 %v255, %v275
      %v295 = vadd.f32 %v256, %v275
      %v296 = vadd.f32 %v257, %v275
      %v297 = vadd.f32 %v258, %v275
      %v298 = vadd.f32 %v259, %v275
      %v299 = vadd.f32 %v260, %v275
      %v300 = vadd.f32 %v261, %v275
      %v301 = vadd.f32 %v262, %v275
      %v302 = vadd.f32 %v263, %v275
      %v303 = vadd.f32 %v264, %v275
      %v304 = vadd.f32 %v265, %v275
      %v305 = vadd.f32 %v266, %v275
      %v306 = vadd.f32 %v267, %v275
      %v307 = vadd.f32 %v268, %v275
      %v308 = vadd.f32 %v269, %v275
      %v309 = vmax.f32 %v277, 0.0
      %v310 = vmax.f32 %v278, 0.0
      %v311 = vmax.f32 %v279, 0.0
      %v312 = vmax.f32 %v280, 0.0
      %v313 = vmax.f32 %v281, 0.0
      %v314 = vmax.f32 %v282, 0.0
      %v315 = vmax.f32 %v283, 0.0
      %v316 = vmax.f32 %v284, 0.0
      %v317 = vmax.f32 %v285, 0.0
      %v318 = vmax.f32 %v286, 0.0
      %v319 = vmax.f32 %v287, 0.0
      %v320 = vmax.f32 %v288, 0.0
      %v321 = vmax.f32 %v289, 0.0
      %v322 = vmax.f32 %v290, 0.0
      %v323 = vmax.f32 %v291, 0.0
      %v324 = vmax.f32 %v292, 0.0
      %v325 = vmax.f32 %v293, 0.0
      %v326 = vmax.f32 %v294, 0.0
      %v327 = vmax.f32 %v295, 0.0
      %v328 = vmax.f32 %v296, 0.0
      %v329 = vmax.f32 %v297, 0.0
      %v330 = vmax.f32 %v298, 0.0
      %v331 = vmax.f32 %v299, 0.0
      %v332 = vmax.f32 %v300, 0.0
      %v333 = vmax.f32 %v301, 0.0
      %v334 = vmax.f32 %v302, 0.0
      %v335 = vmax.f32 %v303, 0.0
      %v336 = vmax.f32 %v304, 0.0
      %v337 = vmax.f32 %v305, 0.0
      %v338 = vmax.f32 %v306, 0.0
      %v339 = vmax.f32 %v307, 0.0
      %v340 = vmax.f32 %v308, 0.0
      %341 = vst [vmem:[#allocation2] sm:$0xff] 0.0
      %342 = vst [vmem:[#allocation2 + $0x8] sm:$0x3] 0.0
      %343 = vst [vmem:[#allocation2 + $0x10] sm:$0xff] 0.0
      %344 = vst [vmem:[#allocation2 + $0x18] sm:$0x3] 0.0
      %345 = vst [vmem:[#allocation2 + $0x20] sm:$0xff] 0.0
      %346 = vst [vmem:[#allocation2 + $0x28] sm:$0x3] 0.0
      %347 = vst [vmem:[#allocation2 + $0x30] sm:$0xff] 0.0
      %348 = vst [vmem:[#allocation2 + $0x38] sm:$0x3] 0.0
      %349 = vst [vmem:[#allocation2 + $0x40] sm:$0xff] 0.0
      %350 = vst [vmem:[#allocation2 + $0x48] sm:$0x3] 0.0
      %351 = vst [vmem:[#allocation2 + $0x50] sm:$0xff] 0.0
      %352 = vst [vmem:[#allocation2 + $0x58] sm:$0x3] 0.0
      %353 = vst [vmem:[#allocation2 + $0x60] sm:$0xff] 0.0
      %354 = vst [vmem:[#allocation2 + $0x68] sm:$0x3] 0.0
      %355 = vst [vmem:[#allocation2 + $0x70] sm:$0xff] 0.0
      %356 = vst [vmem:[#allocation2 + $0x78] sm:$0x3] 0.0
      %357 = vst [vmem:[#allocation2 + $0x80] sm:$0xff] 0.0
      %358 = vst [vmem:[#allocation2 + $0x88] sm:$0x3] 0.0
      %359 = vst [vmem:[#allocation2 + $0x90] sm:$0xff] 0.0
      %360 = vst [vmem:[#allocation2 + $0x98] sm:$0x3] 0.0
      %361 = vst [vmem:[#allocation2 + $0xa0] sm:$0xff] 0.0
      %362 = vst [vmem:[#allocation2 + $0xa8] sm:$0x3] 0.0
      %363 = vst [vmem:[#allocation2 + $0xb0] sm:$0xff] 0.0
      %364 = vst [vmem:[#allocation2 + $0xb8] sm:$0x3] 0.0
      %365 = vst [vmem:[#allocation2 + $0xc0] sm:$0xff] 0.0
      %366 = vst [vmem:[#allocation2 + $0xc8] sm:$0x3] 0.0
      %367 = vst [vmem:[#allocation2 + $0xd0] sm:$0xff] 0.0
      %368 = vst [vmem:[#allocation2 + $0xd8] sm:$0x3] 0.0
      %369 = vst [vmem:[#allocation2 + $0xe0] sm:$0xff] 0.0
      %370 = vst [vmem:[#allocation2 + $0xe8] sm:$0x3] 0.0
      %371 = vst [vmem:[#allocation2 + $0xf0] sm:$0xff] 0.0
      %372 = vst [vmem:[#allocation2 + $0xf8] sm:$0x3] 0.0
      %373 = vst [vmem:[#allocation2 + $0x100] sm:$0xff] 0.0
      %374 = vst [vmem:[#allocation2 + $0x108] sm:$0x3] 0.0
      %375 = vst [vmem:[#allocation2 + $0x110] sm:$0xff] 0.0
      %376 = vst [vmem:[#allocation2 + $0x118] sm:$0x3] 0.0
      %377 = vst [vmem:[#allocation2 + $0x120] sm:$0xff] 0.0
      %378 = vst [vmem:[#allocation2 + $0x128] sm:$0x3] 0.0
      %379 = vst [vmem:[#allocation2 + $0x130] sm:$0xff] 0.0
      %380 = vst [vmem:[#allocation2 + $0x138] sm:$0x3] 0.0
      %381 = vst [vmem:[#allocation2 + $0x140] sm:$0xff] 0.0
      %382 = vst [vmem:[#allocation2 + $0x148] sm:$0x3] 0.0
      %383 = vst [vmem:[#allocation2 + $0x150] sm:$0xff] 0.0
      %384 = vst [vmem:[#allocation2 + $0x158] sm:$0x3] 0.0
      %385 = vst [vmem:[#allocation2 + $0x160] sm:$0xff] 0.0
      %386 = vst [vmem:[#allocation2 + $0x168] sm:$0x3] 0.0
      %387 = vst [vmem:[#allocation2 + $0x170] sm:$0xff] 0.0
      %388 = vst [vmem:[#allocation2 + $0x178] sm:$0x3] 0.0
      %389 = vst [vmem:[#allocation2 + $0x180] sm:$0xff] 0.0
      %390 = vst [vmem:[#allocation2 + $0x188] sm:$0x3] 0.0
      %391 = vst [vmem:[#allocation2 + $0x190] sm:$0xff] 0.0
      %392 = vst [vmem:[#allocation2 + $0x198] sm:$0x3] 0.0
      %393 = vst [vmem:[#allocation2 + $0x1a0] sm:$0xff] 0.0
      %394 = vst [vmem:[#allocation2 + $0x1a8] sm:$0x3] 0.0
      %395 = vst [vmem:[#allocation2 + $0x1b0] sm:$0xff] 0.0
      %396 = vst [vmem:[#allocation2 + $0x1b8] sm:$0x3] 0.0
      %397 = vst [vmem:[#allocation2 + $0x1c0] sm:$0xff] 0.0
      %398 = vst [vmem:[#allocation2 + $0x1c8] sm:$0x3] 0.0
      %399 = vst [vmem:[#allocation2 + $0x1d0] sm:$0xff] 0.0
      %400 = vst [vmem:[#allocation2 + $0x1d8] sm:$0x3] 0.0
      %401 = vst [vmem:[#allocation2 + $0x1e0] sm:$0xff] 0.0
      %402 = vst [vmem:[#allocation2 + $0x1e8] sm:$0x3] 0.0
      %403 = vst [vmem:[#allocation2 + $0x1f0] sm:$0xff] 0.0
      %404 = vst [vmem:[#allocation2 + $0x1f8] sm:$0x3] 0.0
      %405 = vst [vmem:[#allocation2 + $0x200] sm:$0xff] 0.0
      %406 = vst [vmem:[#allocation2 + $0x208] sm:$0x3] 0.0
      %407 = vst [vmem:[#allocation2 + $0x210] sm:$0xff] 0.0
      %408 = vst [vmem:[#allocation2 + $0x218] sm:$0x3] 0.0
      %409 = vst [vmem:[#allocation2 + $0x220] sm:$0xff] 0.0
      %410 = vst [vmem:[#allocation2 + $0x228] sm:$0x3] 0.0
      %411 = vst [vmem:[#allocation2 + $0x230] sm:$0xff] 0.0
      %412 = vst [vmem:[#allocation2 + $0x238] sm:$0x3] 0.0
      %413 = vst [vmem:[#allocation2 + $0x240] sm:$0xff] 0.0
      %414 = vst [vmem:[#allocation2 + $0x248] sm:$0x3] 0.0
      %415 = vst [vmem:[#allocation2 + $0x250] sm:$0xff] 0.0
      %416 = vst [vmem:[#allocation2 + $0x258] sm:$0x3] 0.0
      %417 = vst [vmem:[#allocation2 + $0x260] sm:$0xff] 0.0
      %418 = vst [vmem:[#allocation2 + $0x268] sm:$0x3] 0.0
      %419 = vst [vmem:[#allocation2 + $0x270] sm:$0xff] 0.0
      %420 = vst [vmem:[#allocation2 + $0x278] sm:$0x3] 0.0
      %s421 = scalar_lea.vmem [#allocation2], 16
      %422 = vst [vmem:[%s421 + $0x1] sm:$0xff] %v309
      %423 = vst [vmem:[%s421 + $0x11] sm:$0xff] %v310
      %424 = vst [vmem:[%s421 + $0x21] sm:$0xff] %v311
      %425 = vst [vmem:[%s421 + $0x31] sm:$0xff] %v312
      %426 = vst [vmem:[%s421 + $0x41] sm:$0xff] %v313
      %427 = vst [vmem:[%s421 + $0x51] sm:$0xff] %v314
      %428 = vst [vmem:[%s421 + $0x61] sm:$0xff] %v315
      %429 = vst [vmem:[%s421 + $0x71] sm:$0xff] %v316
      %430 = vst [vmem:[%s421 + $0xa1] sm:$0xff] %v317
      %431 = vst [vmem:[%s421 + $0xb1] sm:$0xff] %v318
      %432 = vst [vmem:[%s421 + $0xc1] sm:$0xff] %v319
      %433 = vst [vmem:[%s421 + $0xd1] sm:$0xff] %v320
      %434 = vst [vmem:[%s421 + $0xe1] sm:$0xff] %v321
      %435 = vst [vmem:[%s421 + $0xf1] sm:$0xff] %v322
      %436 = vst [vmem:[%s421 + $0x101] sm:$0xff] %v323
      %437 = vst [vmem:[%s421 + $0x111] sm:$0xff] %v324
      %438 = vst [vmem:[%s421 + $0x141] sm:$0xff] %v325
      %439 = vst [vmem:[%s421 + $0x151] sm:$0xff] %v326
      %440 = vst [vmem:[%s421 + $0x161] sm:$0xff] %v327
      %441 = vst [vmem:[%s421 + $0x171] sm:$0xff] %v328
      %442 = vst [vmem:[%s421 + $0x181] sm:$0xff] %v329
      %443 = vst [vmem:[%s421 + $0x191] sm:$0xff] %v330
      %444 = vst [vmem:[%s421 + $0x1a1] sm:$0xff] %v331
      %445 = vst [vmem:[%s421 + $0x1b1] sm:$0xff] %v332
      %446 = vst [vmem:[%s421 + $0x1e1] sm:$0xff] %v333
      %447 = vst [vmem:[%s421 + $0x1f1] sm:$0xff] %v334
      %448 = vst [vmem:[%s421 + $0x201] sm:$0xff] %v335
      %449 = vst [vmem:[%s421 + $0x211] sm:$0xff] %v336
      %450 = vst [vmem:[%s421 + $0x221] sm:$0xff] %v337
      %451 = vst [vmem:[%s421 + $0x231] sm:$0xff] %v338
      %452 = vst [vmem:[%s421 + $0x241] sm:$0xff] %v339
      %453 = vst [vmem:[%s421 + $0x251] sm:$0xff] %v340
      %s454 = scalar_lea.vmem [#allocation2], 480
      %v455 = vld [vmem:[%s454] sm:$0xff]
      %v456 = vld [vmem:[%s454 + $0x10] sm:$0xff]
      %v457 = vld [vmem:[%s454 + $0x20] sm:$0xff]
      %v458 = vld [vmem:[%s454 + $0x30] sm:$0xff]
      %v459 = vld [vmem:[%s454 + $0x40] sm:$0xff]
      %v460 = vld [vmem:[%s454 + $0x50] sm:$0xff]
      %v461 = vld [vmem:[%s454 + $0x60] sm:$0xff]
      %v462 = vld [vmem:[%s454 + $0x70] sm:$0xff]
      %v463 = vpack.c.bf16 %v456, %v455
      %v464 = vpack.c.bf16 %v458, %v457
      %v465 = vpack.c.bf16 %v460, %v459
      %v466 = vpack.c.bf16 %v462, %v461
      %v467 = vld [vmem:[%s3] sm:$0xf]
      %v468 = vld [vmem:[%s3 + $0x4] sm:$0xf]
      %v469 = vld [vmem:[%s3 + $0x8] sm:$0xf]
      %v470 = vld [vmem:[%s3 + $0xc] sm:$0xf]
      %v471 = vld [vmem:[%s3 + $0x10] sm:$0xf]
      %v472 = vld [vmem:[%s3 + $0x14] sm:$0xf]
      %v473 = vld [vmem:[%s3 + $0x18] sm:$0xf]
      %v474 = vld [vmem:[%s3 + $0x1c] sm:$0xf]
      %v475 = vld [vmem:[%s3 + $0x20] sm:$0xf]
      %v476 = vld [vmem:[%s3 + $0x24] sm:$0xf]
      %v477 = vld [vmem:[%s3 + $0x28] sm:$0xf]
      %v478 = vld [vmem:[%s3 + $0x2c] sm:$0xf]
      %v479 = vld [vmem:[%s3 + $0x30] sm:$0xf]
      %v480 = vld [vmem:[%s3 + $0x34] sm:$0xf]
      %v481 = vld [vmem:[%s3 + $0x38] sm:$0xf]
      %v482 = vld [vmem:[%s3 + $0x3c] sm:$0xf]
      %s483 = scalar_lea.vmem [#allocation2], 320
      %v484 = vld [vmem:[%s483 + $0x1] sm:$0xff]
      %v485 = vld [vmem:[%s483 + $0x11] sm:$0xff]
      %v486 = vld [vmem:[%s483 + $0x21] sm:$0xff]
      %v487 = vld [vmem:[%s483 + $0x31] sm:$0xff]
      %v488 = vld [vmem:[%s483 + $0x41] sm:$0xff]
      %v489 = vld [vmem:[%s483 + $0x51] sm:$0xff]
      %v490 = vld [vmem:[%s483 + $0x61] sm:$0xff]
      %v491 = vld [vmem:[%s483 + $0x71] sm:$0xff]
      %v492 = vpack.c.bf16 %v485, %v484
      %v493 = vpack.c.bf16 %v487, %v486
      %v494 = vpack.c.bf16 %v489, %v488
      %v495 = vpack.c.bf16 %v491, %v490
      %s496 = scalar_lea.vmem %s3, 64
      %v497 = vld [vmem:[%s496] sm:$0xf]
      %v498 = vld [vmem:[%s496 + $0x4] sm:$0xf]
      %v499 = vld [vmem:[%s496 + $0x8] sm:$0xf]
      %v500 = vld [vmem:[%s496 + $0xc] sm:$0xf]
      %v501 = vld [vmem:[%s496 + $0x10] sm:$0xf]
      %v502 = vld [vmem:[%s496 + $0x14] sm:$0xf]
      %v503 = vld [vmem:[%s496 + $0x18] sm:$0xf]
      %v504 = vld [vmem:[%s496 + $0x1c] sm:$0xf]
      %v505 = vld [vmem:[%s496 + $0x20] sm:$0xf]
      %v506 = vld [vmem:[%s496 + $0x24] sm:$0xf]
      %v507 = vld [vmem:[%s496 + $0x28] sm:$0xf]
      %v508 = vld [vmem:[%s496 + $0x2c] sm:$0xf]
      %v509 = vld [vmem:[%s496 + $0x30] sm:$0xf]
      %v510 = vld [vmem:[%s496 + $0x34] sm:$0xf]
      %v511 = vld [vmem:[%s496 + $0x38] sm:$0xf]
      %v512 = vld [vmem:[%s496 + $0x3c] sm:$0xf]
      %v529 = vunpack.c.l.b16 %v497
      %v530 = vunpack.c.l.b16 %v498
      %v531 = vunpack.c.l.b16 %v499
      %v532 = vunpack.c.l.b16 %v500
      %v533 = vunpack.c.l.b16 %v501
      %v534 = vunpack.c.l.b16 %v502
      %v535 = vunpack.c.l.b16 %v503
      %v536 = vunpack.c.l.b16 %v504
      %v537 = vunpack.c.l.b16 %v505
      %v538 = vunpack.c.l.b16 %v506
      %v539 = vunpack.c.l.b16 %v507
      %v540 = vunpack.c.l.b16 %v508
      %v541 = vunpack.c.l.b16 %v509
      %v542 = vunpack.c.l.b16 %v510
      %v543 = vunpack.c.l.b16 %v511
      %v544 = vunpack.c.l.b16 %v512
      %v545 = vpack.c.b16 %v530, %v529
      %v546 = vpack.c.b16 %v532, %v531
      %v547 = vpack.c.b16 %v534, %v533
      %v548 = vpack.c.b16 %v536, %v535
      %v549 = vpack.c.b16 %v538, %v537
      %v550 = vpack.c.b16 %v540, %v539
      %v551 = vpack.c.b16 %v542, %v541
      %v552 = vpack.c.b16 %v544, %v543
      %561 = vmatprep.subr.bf16.mxu0 0
      %562 = vmatpush1.bf16.msra.mxu0 %v552
      %563 = vmatprep.subr.bf16.mxu0 0
      %564 = vmatpush1.bf16.msra.mxu0 %v551
      %565 = vmatprep.subr.bf16.mxu0 0
      %566 = vmatpush1.bf16.msra.mxu0 %v550
      %567 = vmatprep.subr.bf16.mxu0 0
      %568 = vmatpush1.bf16.msra.mxu0 %v549
      %569 = vmatprep.subr.bf16.mxu0 0
      %570 = vmatpush1.bf16.msra.mxu0 %v548
      %571 = vmatprep.subr.bf16.mxu0 0
      %572 = vmatpush1.bf16.msra.mxu0 %v547
      %573 = vmatprep.subr.bf16.mxu0 0
      %574 = vmatpush1.bf16.msra.mxu0 %v546
      %575 = vmatprep.subr.bf16.mxu0 0
      %576 = vmatpush1.bf16.msra.mxu0 %v545
      %577 = vmatprep.subr.bf16.mxu0 0
      %578 = vmatpush2.bf16.msra.mxu0 0
      %579 = vmatprep.subr.bf16.mxu0 0
      %580 = vmatpush2.bf16.msra.mxu0 0
      %581 = vmatprep.subr.bf16.mxu0 0
      %582 = vmatpush2.bf16.msra.mxu0 0
      %583 = vmatprep.subr.bf16.mxu0 0
      %584 = vmatpush2.bf16.msra.mxu0 0
      %585 = vmatprep.subr.bf16.mxu0 0
      %586 = vmatpush2.bf16.msra.mxu0 0
      %587 = vmatprep.subr.bf16.mxu0 0
      %588 = vmatpush2.bf16.msra.mxu0 0
      %589 = vmatprep.subr.bf16.mxu0 0
      %590 = vmatpush2.bf16.msra.mxu0 0
      %591 = vmatprep.subr.bf16.mxu0 0
      %592 = vmatpush2.bf16.msra.mxu0 0
      %593 = vmatprep.mubr.bf16.mxu0 0
      %594 = vmatmul.mubr.bf16.gmra.mxu0 %v492
      %v595 = vpop.f32.mrf.mxu0
      %v596 = vadd.f32 0.0, %v595
      %v597 = vpop.f32.mrf.mxu0
      %v598 = vpop.f32.mrf.mxu0
      %v599 = vadd.f32 0.0, %v598
      %v600 = vpop.f32.mrf.mxu0
      %601 = vmatprep.mubr.bf16.mxu0 0
      %602 = vmatmul.mubr.bf16.gmra.mxu0 %v493
      %v603 = vpop.f32.mrf.mxu0
      %v604 = vadd.f32 0.0, %v603
      %v605 = vpop.f32.mrf.mxu0
      %v606 = vpop.f32.mrf.mxu0
      %v607 = vadd.f32 0.0, %v606
      %v608 = vpop.f32.mrf.mxu0
      %609 = vmatprep.mubr.bf16.mxu0 0
      %610 = vmatmul.mubr.bf16.gmra.mxu0 %v494
      %v611 = vpop.f32.mrf.mxu0
      %v612 = vadd.f32 0.0, %v611
      %v613 = vpop.f32.mrf.mxu0
      %v614 = vpop.f32.mrf.mxu0
      %v615 = vadd.f32 0.0, %v614
      %v616 = vpop.f32.mrf.mxu0
      %617 = vmatprep.mubr.bf16.mxu0 0
      %618 = vmatmul.mubr.bf16.gmra.mxu0 %v495
      %v619 = vpop.f32.mrf.mxu0
      %v620 = vadd.f32 0.0, %v619
      %v621 = vpop.f32.mrf.mxu0
      %v622 = vpop.f32.mrf.mxu0
      %v623 = vadd.f32 0.0, %v622
      %v624 = vpop.f32.mrf.mxu0
      %625 = vdwg.mxu0
      %v642 = vunpack.c.l.b16 %v467
      %v643 = vunpack.c.l.b16 %v468
      %v644 = vunpack.c.l.b16 %v469
      %v645 = vunpack.c.l.b16 %v470
      %v646 = vunpack.c.l.b16 %v471
      %v647 = vunpack.c.l.b16 %v472
      %v648 = vunpack.c.l.b16 %v473
      %v649 = vunpack.c.l.b16 %v474
      %v650 = vunpack.c.l.b16 %v475
      %v651 = vunpack.c.l.b16 %v476
      %v652 = vunpack.c.l.b16 %v477
      %v653 = vunpack.c.l.b16 %v478
      %v654 = vunpack.c.l.b16 %v479
      %v655 = vunpack.c.l.b16 %v480
      %v656 = vunpack.c.l.b16 %v481
      %v657 = vunpack.c.l.b16 %v482
      %v658 = vpack.c.b16 %v643, %v642
      %v659 = vpack.c.b16 %v645, %v644
      %v660 = vpack.c.b16 %v647, %v646
      %v661 = vpack.c.b16 %v649, %v648
      %v662 = vpack.c.b16 %v651, %v650
      %v663 = vpack.c.b16 %v653, %v652
      %v664 = vpack.c.b16 %v655, %v654
      %v665 = vpack.c.b16 %v657, %v656
      %674 = vmatprep.subr.bf16.mxu0 0
      %675 = vmatpush1.bf16.msra.mxu0 %v665
      %676 = vmatprep.subr.bf16.mxu0 0
      %677 = vmatpush1.bf16.msra.mxu0 %v664
      %678 = vmatprep.subr.bf16.mxu0 0
      %679 = vmatpush1.bf16.msra.mxu0 %v663
      %680 = vmatprep.subr.bf16.mxu0 0
      %681 = vmatpush1.bf16.msra.mxu0 %v662
      %682 = vmatprep.subr.bf16.mxu0 0
      %683 = vmatpush1.bf16.msra.mxu0 %v661
      %684 = vmatprep.subr.bf16.mxu0 0
      %685 = vmatpush1.bf16.msra.mxu0 %v660
      %686 = vmatprep.subr.bf16.mxu0 0
      %687 = vmatpush1.bf16.msra.mxu0 %v659
      %688 = vmatprep.subr.bf16.mxu0 0
      %689 = vmatpush1.bf16.msra.mxu0 %v658
      %690 = vmatprep.subr.bf16.mxu0 0
      %691 = vmatpush2.bf16.msra.mxu0 0
      %692 = vmatprep.subr.bf16.mxu0 0
      %693 = vmatpush2.bf16.msra.mxu0 0
      %694 = vmatprep.subr.bf16.mxu0 0
      %695 = vmatpush2.bf16.msra.mxu0 0
      %696 = vmatprep.subr.bf16.mxu0 0
      %697 = vmatpush2.bf16.msra.mxu0 0
      %698 = vmatprep.subr.bf16.mxu0 0
      %699 = vmatpush2.bf16.msra.mxu0 0
      %700 = vmatprep.subr.bf16.mxu0 0
      %701 = vmatpush2.bf16.msra.mxu0 0
      %702 = vmatprep.subr.bf16.mxu0 0
      %703 = vmatpush2.bf16.msra.mxu0 0
      %704 = vmatprep.subr.bf16.mxu0 0
      %705 = vmatpush2.bf16.msra.mxu0 0
      %706 = vmatprep.mubr.bf16.mxu0 0
      %707 = vmatmul.mubr.bf16.gmra.mxu0 %v463
      %v708 = vpop.f32.mrf.mxu0
      %v709 = vadd.f32 %v596, %v708
      %v710 = vpop.f32.mrf.mxu0
      %v711 = vpop.f32.mrf.mxu0
      %v712 = vadd.f32 %v599, %v711
      %v713 = vpop.f32.mrf.mxu0
      %714 = vmatprep.mubr.bf16.mxu0 0
      %715 = vmatmul.mubr.bf16.gmra.mxu0 %v464
      %v716 = vpop.f32.mrf.mxu0
      %v717 = vadd.f32 %v604, %v716
      %v718 = vpop.f32.mrf.mxu0
      %v719 = vpop.f32.mrf.mxu0
      %v720 = vadd.f32 %v607, %v719
      %v721 = vpop.f32.mrf.mxu0
      %722 = vmatprep.mubr.bf16.mxu0 0
      %723 = vmatmul.mubr.bf16.gmra.mxu0 %v465
      %v724 = vpop.f32.mrf.mxu0
      %v725 = vadd.f32 %v612, %v724
      %v726 = vpop.f32.mrf.mxu0
      %v727 = vpop.f32.mrf.mxu0
      %v728 = vadd.f32 %v615, %v727
      %v729 = vpop.f32.mrf.mxu0
      %730 = vmatprep.mubr.bf16.mxu0 0
      %731 = vmatmul.mubr.bf16.gmra.mxu0 %v466
      %v732 = vpop.f32.mrf.mxu0
      %v733 = vadd.f32 %v620, %v732
      %v734 = vpop.f32.mrf.mxu0
      %v735 = vpop.f32.mrf.mxu0
      %v736 = vadd.f32 %v623, %v735
      %v737 = vpop.f32.mrf.mxu0
      %738 = vdwg.mxu0
      %v739 = vld [vmem:[%s454 + $0x1] sm:$0xff]
      %v740 = vld [vmem:[%s454 + $0x11] sm:$0xff]
      %v741 = vld [vmem:[%s454 + $0x21] sm:$0xff]
      %v742 = vld [vmem:[%s454 + $0x31] sm:$0xff]
      %v743 = vld [vmem:[%s454 + $0x41] sm:$0xff]
      %v744 = vld [vmem:[%s454 + $0x51] sm:$0xff]
      %v745 = vld [vmem:[%s454 + $0x61] sm:$0xff]
      %v746 = vld [vmem:[%s454 + $0x71] sm:$0xff]
      %v747 = vpack.c.bf16 %v740, %v739
      %v748 = vpack.c.bf16 %v742, %v741
      %v749 = vpack.c.bf16 %v744, %v743
      %v750 = vpack.c.bf16 %v746, %v745
      %s751 = scalar_lea.vmem %s3, 128
      %v752 = vld [vmem:[%s751] sm:$0xf]
      %v753 = vld [vmem:[%s751 + $0x4] sm:$0xf]
      %v754 = vld [vmem:[%s751 + $0x8] sm:$0xf]
      %v755 = vld [vmem:[%s751 + $0xc] sm:$0xf]
      %v756 = vld [vmem:[%s751 + $0x10] sm:$0xf]
      %v757 = vld [vmem:[%s751 + $0x14] sm:$0xf]
      %v758 = vld [vmem:[%s751 + $0x18] sm:$0xf]
      %v759 = vld [vmem:[%s751 + $0x1c] sm:$0xf]
      %v760 = vld [vmem:[%s751 + $0x20] sm:$0xf]
      %v761 = vld [vmem:[%s751 + $0x24] sm:$0xf]
      %v762 = vld [vmem:[%s751 + $0x28] sm:$0xf]
      %v763 = vld [vmem:[%s751 + $0x2c] sm:$0xf]
      %v764 = vld [vmem:[%s751 + $0x30] sm:$0xf]
      %v765 = vld [vmem:[%s751 + $0x34] sm:$0xf]
      %v766 = vld [vmem:[%s751 + $0x38] sm:$0xf]
      %v767 = vld [vmem:[%s751 + $0x3c] sm:$0xf]
      %v784 = vunpack.c.l.b16 %v752
      %v785 = vunpack.c.l.b16 %v753
      %v786 = vunpack.c.l.b16 %v754
      %v787 = vunpack.c.l.b16 %v755
      %v788 = vunpack.c.l.b16 %v756
      %v789 = vunpack.c.l.b16 %v757
      %v790 = vunpack.c.l.b16 %v758
      %v791 = vunpack.c.l.b16 %v759
      %v792 = vunpack.c.l.b16 %v760
      %v793 = vunpack.c.l.b16 %v761
      %v794 = vunpack.c.l.b16 %v762
      %v795 = vunpack.c.l.b16 %v763
      %v796 = vunpack.c.l.b16 %v764
      %v797 = vunpack.c.l.b16 %v765
      %v798 = vunpack.c.l.b16 %v766
      %v799 = vunpack.c.l.b16 %v767
      %v800 = vpack.c.b16 %v785, %v784
      %v801 = vpack.c.b16 %v787, %v786
      %v802 = vpack.c.b16 %v789, %v788
      %v803 = vpack.c.b16 %v791, %v790
      %v804 = vpack.c.b16 %v793, %v792
      %v805 = vpack.c.b16 %v795, %v794
      %v806 = vpack.c.b16 %v797, %v796
      %v807 = vpack.c.b16 %v799, %v798
      %816 = vmatprep.subr.bf16.mxu0 0
      %817 = vmatpush1.bf16.msra.mxu0 %v807
      %818 = vmatprep.subr.bf16.mxu0 0
      %819 = vmatpush1.bf16.msra.mxu0 %v806
      %820 = vmatprep.subr.bf16.mxu0 0
      %821 = vmatpush1.bf16.msra.mxu0 %v805
      %822 = vmatprep.subr.bf16.mxu0 0
      %823 = vmatpush1.bf16.msra.mxu0 %v804
      %824 = vmatprep.subr.bf16.mxu0 0
      %825 = vmatpush1.bf16.msra.mxu0 %v803
      %826 = vmatprep.subr.bf16.mxu0 0
      %827 = vmatpush1.bf16.msra.mxu0 %v802
      %828 = vmatprep.subr.bf16.mxu0 0
      %829 = vmatpush1.bf16.msra.mxu0 %v801
      %830 = vmatprep.subr.bf16.mxu0 0
      %831 = vmatpush1.bf16.msra.mxu0 %v800
      %832 = vmatprep.subr.bf16.mxu0 0
      %833 = vmatpush2.bf16.msra.mxu0 0
      %834 = vmatprep.subr.bf16.mxu0 0
      %835 = vmatpush2.bf16.msra.mxu0 0
      %836 = vmatprep.subr.bf16.mxu0 0
      %837 = vmatpush2.bf16.msra.mxu0 0
      %838 = vmatprep.subr.bf16.mxu0 0
      %839 = vmatpush2.bf16.msra.mxu0 0
      %840 = vmatprep.subr.bf16.mxu0 0
      %841 = vmatpush2.bf16.msra.mxu0 0
      %842 = vmatprep.subr.bf16.mxu0 0
      %843 = vmatpush2.bf16.msra.mxu0 0
      %844 = vmatprep.subr.bf16.mxu0 0
      %845 = vmatpush2.bf16.msra.mxu0 0
      %846 = vmatprep.subr.bf16.mxu0 0
      %847 = vmatpush2.bf16.msra.mxu0 0
      %848 = vmatprep.mubr.bf16.mxu0 0
      %849 = vmatmul.mubr.bf16.gmra.mxu0 %v747
      %v850 = vpop.f32.mrf.mxu0
      %v851 = vadd.f32 0.0, %v850
      %v852 = vpop.f32.mrf.mxu0
      %v853 = vpop.f32.mrf.mxu0
      %v854 = vadd.f32 0.0, %v853
      %v855 = vpop.f32.mrf.mxu0
      %856 = vmatprep.mubr.bf16.mxu0 0
      %857 = vmatmul.mubr.bf16.gmra.mxu0 %v748
      %v858 = vpop.f32.mrf.mxu0
      %v859 = vadd.f32 0.0, %v858
      %v860 = vpop.f32.mrf.mxu0
      %v861 = vpop.f32.mrf.mxu0
      %v862 = vadd.f32 0.0, %v861
      %v863 = vpop.f32.mrf.mxu0
      %864 = vmatprep.mubr.bf16.mxu0 0
      %865 = vmatmul.mubr.bf16.gmra.mxu0 %v749
      %v866 = vpop.f32.mrf.mxu0
      %v867 = vadd.f32 0.0, %v866
      %v868 = vpop.f32.mrf.mxu0
      %v869 = vpop.f32.mrf.mxu0
      %v870 = vadd.f32 0.0, %v869
      %v871 = vpop.f32.mrf.mxu0
      %872 = vmatprep.mubr.bf16.mxu0 0
      %873 = vmatmul.mubr.bf16.gmra.mxu0 %v750
      %v874 = vpop.f32.mrf.mxu0
      %v875 = vadd.f32 0.0, %v874
      %v876 = vpop.f32.mrf.mxu0
      %v877 = vpop.f32.mrf.mxu0
      %v878 = vadd.f32 0.0, %v877
      %v879 = vpop.f32.mrf.mxu0
      %880 = vdwg.mxu0
      %v881 = vadd.f32 %v709, %v851
      %v882 = vadd.f32 %v712, %v854
      %v883 = vadd.f32 %v717, %v859
      %v884 = vadd.f32 %v720, %v862
      %v885 = vadd.f32 %v725, %v867
      %v886 = vadd.f32 %v728, %v870
      %v887 = vadd.f32 %v733, %v875
      %v888 = vadd.f32 %v736, %v878
      %s889 = scalar_lea.vmem [#allocation2], 176
      %v890 = vld [vmem:[%s889] sm:$0xff]
      %v891 = vld [vmem:[%s889 + $0x10] sm:$0xff]
      %v892 = vld [vmem:[%s889 + $0x20] sm:$0xff]
      %v893 = vld [vmem:[%s889 + $0x30] sm:$0xff]
      %v894 = vld [vmem:[%s889 + $0x40] sm:$0xff]
      %v895 = vld [vmem:[%s889 + $0x50] sm:$0xff]
      %v896 = vld [vmem:[%s889 + $0x60] sm:$0xff]
      %v897 = vld [vmem:[%s889 + $0x70] sm:$0xff]
      %v898 = vpack.c.bf16 %v891, %v890
      %v899 = vpack.c.bf16 %v893, %v892
      %v900 = vpack.c.bf16 %v895, %v894
      %v901 = vpack.c.bf16 %v897, %v896
      %s902 = scalar_lea.vmem %s3, 192
      %v903 = vld [vmem:[%s902] sm:$0xf]
      %v904 = vld [vmem:[%s902 + $0x4] sm:$0xf]
      %v905 = vld [vmem:[%s902 + $0x8] sm:$0xf]
      %v906 = vld [vmem:[%s902 + $0xc] sm:$0xf]
      %v907 = vld [vmem:[%s902 + $0x10] sm:$0xf]
      %v908 = vld [vmem:[%s902 + $0x14] sm:$0xf]
      %v909 = vld [vmem:[%s902 + $0x18] sm:$0xf]
      %v910 = vld [vmem:[%s902 + $0x1c] sm:$0xf]
      %v911 = vld [vmem:[%s902 + $0x20] sm:$0xf]
      %v912 = vld [vmem:[%s902 + $0x24] sm:$0xf]
      %v913 = vld [vmem:[%s902 + $0x28] sm:$0xf]
      %v914 = vld [vmem:[%s902 + $0x2c] sm:$0xf]
      %v915 = vld [vmem:[%s902 + $0x30] sm:$0xf]
      %v916 = vld [vmem:[%s902 + $0x34] sm:$0xf]
      %v917 = vld [vmem:[%s902 + $0x38] sm:$0xf]
      %v918 = vld [vmem:[%s902 + $0x3c] sm:$0xf]
      %v935 = vunpack.c.l.b16 %v903
      %v936 = vunpack.c.l.b16 %v904
      %v937 = vunpack.c.l.b16 %v905
      %v938 = vunpack.c.l.b16 %v906
      %v939 = vunpack.c.l.b16 %v907
      %v940 = vunpack.c.l.b16 %v908
      %v941 = vunpack.c.l.b16 %v909
      %v942 = vunpack.c.l.b16 %v910
      %v943 = vunpack.c.l.b16 %v911
      %v944 = vunpack.c.l.b16 %v912
      %v945 = vunpack.c.l.b16 %v913
      %v946 = vunpack.c.l.b16 %v914
      %v947 = vunpack.c.l.b16 %v915
      %v948 = vunpack.c.l.b16 %v916
      %v949 = vunpack.c.l.b16 %v917
      %v950 = vunpack.c.l.b16 %v918
      %v951 = vpack.c.b16 %v936, %v935
      %v952 = vpack.c.b16 %v938, %v937
      %v953 = vpack.c.b16 %v940, %v939
      %v954 = vpack.c.b16 %v942, %v941
      %v955 = vpack.c.b16 %v944, %v943
      %v956 = vpack.c.b16 %v946, %v945
      %v957 = vpack.c.b16 %v948, %v947
      %v958 = vpack.c.b16 %v950, %v949
      %967 = vmatprep.subr.bf16.mxu0 0
      %968 = vmatpush1.bf16.msra.mxu0 %v958
      %969 = vmatprep.subr.bf16.mxu0 0
      %970 = vmatpush1.bf16.msra.mxu0 %v957
      %971 = vmatprep.subr.bf16.mxu0 0
      %972 = vmatpush1.bf16.msra.mxu0 %v956
      %973 = vmatprep.subr.bf16.mxu0 0
      %974 = vmatpush1.bf16.msra.mxu0 %v955
      %975 = vmatprep.subr.bf16.mxu0 0
      %976 = vmatpush1.bf16.msra.mxu0 %v954
      %977 = vmatprep.subr.bf16.mxu0 0
      %978 = vmatpush1.bf16.msra.mxu0 %v953
      %979 = vmatprep.subr.bf16.mxu0 0
      %980 = vmatpush1.bf16.msra.mxu0 %v952
      %981 = vmatprep.subr.bf16.mxu0 0
      %982 = vmatpush1.bf16.msra.mxu0 %v951
      %983 = vmatprep.subr.bf16.mxu0 0
      %984 = vmatpush2.bf16.msra.mxu0 0
      %985 = vmatprep.subr.bf16.mxu0 0
      %986 = vmatpush2.bf16.msra.mxu0 0
      %987 = vmatprep.subr.bf16.mxu0 0
      %988 = vmatpush2.bf16.msra.mxu0 0
      %989 = vmatprep.subr.bf16.mxu0 0
      %990 = vmatpush2.bf16.msra.mxu0 0
      %991 = vmatprep.subr.bf16.mxu0 0
      %992 = vmatpush2.bf16.msra.mxu0 0
      %993 = vmatprep.subr.bf16.mxu0 0
      %994 = vmatpush2.bf16.msra.mxu0 0
      %995 = vmatprep.subr.bf16.mxu0 0
      %996 = vmatpush2.bf16.msra.mxu0 0
      %997 = vmatprep.subr.bf16.mxu0 0
      %998 = vmatpush2.bf16.msra.mxu0 0
      %999 = vmatprep.mubr.bf16.mxu0 0
      %1000 = vmatmul.mubr.bf16.gmra.mxu0 %v898
      %v1001 = vpop.f32.mrf.mxu0
      %v1002 = vadd.f32 0.0, %v1001
      %v1003 = vpop.f32.mrf.mxu0
      %v1004 = vpop.f32.mrf.mxu0
      %v1005 = vadd.f32 0.0, %v1004
      %v1006 = vpop.f32.mrf.mxu0
      %1007 = vmatprep.mubr.bf16.mxu0 0
      %1008 = vmatmul.mubr.bf16.gmra.mxu0 %v899
      %v1009 = vpop.f32.mrf.mxu0
      %v1010 = vadd.f32 0.0, %v1009
      %v1011 = vpop.f32.mrf.mxu0
      %v1012 = vpop.f32.mrf.mxu0
      %v1013 = vadd.f32 0.0, %v1012
      %v1014 = vpop.f32.mrf.mxu0
      %1015 = vmatprep.mubr.bf16.mxu0 0
      %1016 = vmatmul.mubr.bf16.gmra.mxu0 %v900
      %v1017 = vpop.f32.mrf.mxu0
      %v1018 = vadd.f32 0.0, %v1017
      %v1019 = vpop.f32.mrf.mxu0
      %v1020 = vpop.f32.mrf.mxu0
      %v1021 = vadd.f32 0.0, %v1020
      %v1022 = vpop.f32.mrf.mxu0
      %1023 = vmatprep.mubr.bf16.mxu0 0
      %1024 = vmatmul.mubr.bf16.gmra.mxu0 %v901
      %v1025 = vpop.f32.mrf.mxu0
      %v1026 = vadd.f32 0.0, %v1025
      %v1027 = vpop.f32.mrf.mxu0
      %v1028 = vpop.f32.mrf.mxu0
      %v1029 = vadd.f32 0.0, %v1028
      %v1030 = vpop.f32.mrf.mxu0
      %1031 = vdwg.mxu0
      %v1032 = vadd.f32 %v881, %v1002
      %v1033 = vadd.f32 %v882, %v1005
      %v1034 = vadd.f32 %v883, %v1010
      %v1035 = vadd.f32 %v884, %v1013
      %v1036 = vadd.f32 %v885, %v1018
      %v1037 = vadd.f32 %v886, %v1021
      %v1038 = vadd.f32 %v887, %v1026
      %v1039 = vadd.f32 %v888, %v1029
      %v1040 = vld [vmem:[%s421 + $0x1] sm:$0xff]
      %v1041 = vld [vmem:[%s421 + $0x11] sm:$0xff]
      %v1042 = vld [vmem:[%s421 + $0x21] sm:$0xff]
      %v1043 = vld [vmem:[%s421 + $0x31] sm:$0xff]
      %v1044 = vld [vmem:[%s421 + $0x41] sm:$0xff]
      %v1045 = vld [vmem:[%s421 + $0x51] sm:$0xff]
      %v1046 = vld [vmem:[%s421 + $0x61] sm:$0xff]
      %v1047 = vld [vmem:[%s421 + $0x71] sm:$0xff]
      %v1048 = vpack.c.bf16 %v1041, %v1040
      %v1049 = vpack.c.bf16 %v1043, %v1042
      %v1050 = vpack.c.bf16 %v1045, %v1044
      %v1051 = vpack.c.bf16 %v1047, %v1046
      %s1052 = scalar_lea.vmem %s3, 256
      %v1053 = vld [vmem:[%s1052] sm:$0xf]
      %v1054 = vld [vmem:[%s1052 + $0x4] sm:$0xf]
      %v1055 = vld [vmem:[%s1052 + $0x8] sm:$0xf]
      %v1056 = vld [vmem:[%s1052 + $0xc] sm:$0xf]
      %v1057 = vld [vmem:[%s1052 + $0x10] sm:$0xf]
      %v1058 = vld [vmem:[%s1052 + $0x14] sm:$0xf]
      %v1059 = vld [vmem:[%s1052 + $0x18] sm:$0xf]
      %v1060 = vld [vmem:[%s1052 + $0x1c] sm:$0xf]
      %v1061 = vld [vmem:[%s1052 + $0x20] sm:$0xf]
      %v1062 = vld [vmem:[%s1052 + $0x24] sm:$0xf]
      %v1063 = vld [vmem:[%s1052 + $0x28] sm:$0xf]
      %v1064 = vld [vmem:[%s1052 + $0x2c] sm:$0xf]
      %v1065 = vld [vmem:[%s1052 + $0x30] sm:$0xf]
      %v1066 = vld [vmem:[%s1052 + $0x34] sm:$0xf]
      %v1067 = vld [vmem:[%s1052 + $0x38] sm:$0xf]
      %v1068 = vld [vmem:[%s1052 + $0x3c] sm:$0xf]
      %v1085 = vunpack.c.l.b16 %v1053
      %v1086 = vunpack.c.l.b16 %v1054
      %v1087 = vunpack.c.l.b16 %v1055
      %v1088 = vunpack.c.l.b16 %v1056
      %v1089 = vunpack.c.l.b16 %v1057
      %v1090 = vunpack.c.l.b16 %v1058
      %v1091 = vunpack.c.l.b16 %v1059
      %v1092 = vunpack.c.l.b16 %v1060
      %v1093 = vunpack.c.l.b16 %v1061
      %v1094 = vunpack.c.l.b16 %v1062
      %v1095 = vunpack.c.l.b16 %v1063
      %v1096 = vunpack.c.l.b16 %v1064
      %v1097 = vunpack.c.l.b16 %v1065
      %v1098 = vunpack.c.l.b16 %v1066
      %v1099 = vunpack.c.l.b16 %v1067
      %v1100 = vunpack.c.l.b16 %v1068
      %v1101 = vpack.c.b16 %v1086, %v1085
      %v1102 = vpack.c.b16 %v1088, %v1087
      %v1103 = vpack.c.b16 %v1090, %v1089
      %v1104 = vpack.c.b16 %v1092, %v1091
      %v1105 = vpack.c.b16 %v1094, %v1093
      %v1106 = vpack.c.b16 %v1096, %v1095
      %v1107 = vpack.c.b16 %v1098, %v1097
      %v1108 = vpack.c.b16 %v1100, %v1099
      %1117 = vmatprep.subr.bf16.mxu0 0
      %1118 = vmatpush1.bf16.msra.mxu0 %v1108
      %1119 = vmatprep.subr.bf16.mxu0 0
      %1120 = vmatpush1.bf16.msra.mxu0 %v1107
      %1121 = vmatprep.subr.bf16.mxu0 0
      %1122 = vmatpush1.bf16.msra.mxu0 %v1106
      %1123 = vmatprep.subr.bf16.mxu0 0
      %1124 = vmatpush1.bf16.msra.mxu0 %v1105
      %1125 = vmatprep.subr.bf16.mxu0 0
      %1126 = vmatpush1.bf16.msra.mxu0 %v1104
      %1127 = vmatprep.subr.bf16.mxu0 0
      %1128 = vmatpush1.bf16.msra.mxu0 %v1103
      %1129 = vmatprep.subr.bf16.mxu0 0
      %1130 = vmatpush1.bf16.msra.mxu0 %v1102
      %1131 = vmatprep.subr.bf16.mxu0 0
      %1132 = vmatpush1.bf16.msra.mxu0 %v1101
      %1133 = vmatprep.subr.bf16.mxu0 0
      %1134 = vmatpush2.bf16.msra.mxu0 0
      %1135 = vmatprep.subr.bf16.mxu0 0
      %1136 = vmatpush2.bf16.msra.mxu0 0
      %1137 = vmatprep.subr.bf16.mxu0 0
      %1138 = vmatpush2.bf16.msra.mxu0 0
      %1139 = vmatprep.subr.bf16.mxu0 0
      %1140 = vmatpush2.bf16.msra.mxu0 0
      %1141 = vmatprep.subr.bf16.mxu0 0
      %1142 = vmatpush2.bf16.msra.mxu0 0
      %1143 = vmatprep.subr.bf16.mxu0 0
      %1144 = vmatpush2.bf16.msra.mxu0 0
      %1145 = vmatprep.subr.bf16.mxu0 0
      %1146 = vmatpush2.bf16.msra.mxu0 0
      %1147 = vmatprep.subr.bf16.mxu0 0
      %1148 = vmatpush2.bf16.msra.mxu0 0
      %1149 = vmatprep.mubr.bf16.mxu0 0
      %1150 = vmatmul.mubr.bf16.gmra.mxu0 %v1048
      %v1151 = vpop.f32.mrf.mxu0
      %v1152 = vadd.f32 0.0, %v1151
      %v1153 = vpop.f32.mrf.mxu0
      %v1154 = vpop.f32.mrf.mxu0
      %v1155 = vadd.f32 0.0, %v1154
      %v1156 = vpop.f32.mrf.mxu0
      %1157 = vmatprep.mubr.bf16.mxu0 0
      %1158 = vmatmul.mubr.bf16.gmra.mxu0 %v1049
      %v1159 = vpop.f32.mrf.mxu0
      %v1160 = vadd.f32 0.0, %v1159
      %v1161 = vpop.f32.mrf.mxu0
      %v1162 = vpop.f32.mrf.mxu0
      %v1163 = vadd.f32 0.0, %v1162
      %v1164 = vpop.f32.mrf.mxu0
      %1165 = vmatprep.mubr.bf16.mxu0 0
      %1166 = vmatmul.mubr.bf16.gmra.mxu0 %v1050
      %v1167 = vpop.f32.mrf.mxu0
      %v1168 = vadd.f32 0.0, %v1167
      %v1169 = vpop.f32.mrf.mxu0
      %v1170 = vpop.f32.mrf.mxu0
      %v1171 = vadd.f32 0.0, %v1170
      %v1172 = vpop.f32.mrf.mxu0
      %1173 = vmatprep.mubr.bf16.mxu0 0
      %1174 = vmatmul.mubr.bf16.gmra.mxu0 %v1051
      %v1175 = vpop.f32.mrf.mxu0
      %v1176 = vadd.f32 0.0, %v1175
      %v1177 = vpop.f32.mrf.mxu0
      %v1178 = vpop.f32.mrf.mxu0
      %v1179 = vadd.f32 0.0, %v1178
      %v1180 = vpop.f32.mrf.mxu0
      %1181 = vdwg.mxu0
      %v1182 = vadd.f32 %v1032, %v1152
      %v1183 = vadd.f32 %v1033, %v1155
      %v1184 = vadd.f32 %v1034, %v1160
      %v1185 = vadd.f32 %v1035, %v1163
      %v1186 = vadd.f32 %v1036, %v1168
      %v1187 = vadd.f32 %v1037, %v1171
      %v1188 = vadd.f32 %v1038, %v1176
      %v1189 = vadd.f32 %v1039, %v1179
      %v1190 = vld [vmem:[%s889 + $0x1] sm:$0xff]
      %v1191 = vld [vmem:[%s889 + $0x11] sm:$0xff]
      %v1192 = vld [vmem:[%s889 + $0x21] sm:$0xff]
      %v1193 = vld [vmem:[%s889 + $0x31] sm:$0xff]
      %v1194 = vld [vmem:[%s889 + $0x41] sm:$0xff]
      %v1195 = vld [vmem:[%s889 + $0x51] sm:$0xff]
      %v1196 = vld [vmem:[%s889 + $0x61] sm:$0xff]
      %v1197 = vld [vmem:[%s889 + $0x71] sm:$0xff]
      %v1198 = vpack.c.bf16 %v1191, %v1190
      %v1199 = vpack.c.bf16 %v1193, %v1192
      %v1200 = vpack.c.bf16 %v1195, %v1194
      %v1201 = vpack.c.bf16 %v1197, %v1196
      %s1202 = scalar_lea.vmem %s3, 320
      %v1203 = vld [vmem:[%s1202] sm:$0xf]
      %v1204 = vld [vmem:[%s1202 + $0x4] sm:$0xf]
      %v1205 = vld [vmem:[%s1202 + $0x8] sm:$0xf]
      %v1206 = vld [vmem:[%s1202 + $0xc] sm:$0xf]
      %v1207 = vld [vmem:[%s1202 + $0x10] sm:$0xf]
      %v1208 = vld [vmem:[%s1202 + $0x14] sm:$0xf]
      %v1209 = vld [vmem:[%s1202 + $0x18] sm:$0xf]
      %v1210 = vld [vmem:[%s1202 + $0x1c] sm:$0xf]
      %v1211 = vld [vmem:[%s1202 + $0x20] sm:$0xf]
      %v1212 = vld [vmem:[%s1202 + $0x24] sm:$0xf]
      %v1213 = vld [vmem:[%s1202 + $0x28] sm:$0xf]
      %v1214 = vld [vmem:[%s1202 + $0x2c] sm:$0xf]
      %v1215 = vld [vmem:[%s1202 + $0x30] sm:$0xf]
      %v1216 = vld [vmem:[%s1202 + $0x34] sm:$0xf]
      %v1217 = vld [vmem:[%s1202 + $0x38] sm:$0xf]
      %v1218 = vld [vmem:[%s1202 + $0x3c] sm:$0xf]
      %v1235 = vunpack.c.l.b16 %v1203
      %v1236 = vunpack.c.l.b16 %v1204
      %v1237 = vunpack.c.l.b16 %v1205
      %v1238 = vunpack.c.l.b16 %v1206
      %v1239 = vunpack.c.l.b16 %v1207
      %v1240 = vunpack.c.l.b16 %v1208
      %v1241 = vunpack.c.l.b16 %v1209
      %v1242 = vunpack.c.l.b16 %v1210
      %v1243 = vunpack.c.l.b16 %v1211
      %v1244 = vunpack.c.l.b16 %v1212
      %v1245 = vunpack.c.l.b16 %v1213
      %v1246 = vunpack.c.l.b16 %v1214
      %v1247 = vunpack.c.l.b16 %v1215
      %v1248 = vunpack.c.l.b16 %v1216
      %v1249 = vunpack.c.l.b16 %v1217
      %v1250 = vunpack.c.l.b16 %v1218
      %v1251 = vpack.c.b16 %v1236, %v1235
      %v1252 = vpack.c.b16 %v1238, %v1237
      %v1253 = vpack.c.b16 %v1240, %v1239
      %v1254 = vpack.c.b16 %v1242, %v1241
      %v1255 = vpack.c.b16 %v1244, %v1243
      %v1256 = vpack.c.b16 %v1246, %v1245
      %v1257 = vpack.c.b16 %v1248, %v1247
      %v1258 = vpack.c.b16 %v1250, %v1249
      %1267 = vmatprep.subr.bf16.mxu0 0
      %1268 = vmatpush1.bf16.msra.mxu0 %v1258
      %1269 = vmatprep.subr.bf16.mxu0 0
      %1270 = vmatpush1.bf16.msra.mxu0 %v1257
      %1271 = vmatprep.subr.bf16.mxu0 0
      %1272 = vmatpush1.bf16.msra.mxu0 %v1256
      %1273 = vmatprep.subr.bf16.mxu0 0
      %1274 = vmatpush1.bf16.msra.mxu0 %v1255
      %1275 = vmatprep.subr.bf16.mxu0 0
      %1276 = vmatpush1.bf16.msra.mxu0 %v1254
      %1277 = vmatprep.subr.bf16.mxu0 0
      %1278 = vmatpush1.bf16.msra.mxu0 %v1253
      %1279 = vmatprep.subr.bf16.mxu0 0
      %1280 = vmatpush1.bf16.msra.mxu0 %v1252
      %1281 = vmatprep.subr.bf16.mxu0 0
      %1282 = vmatpush1.bf16.msra.mxu0 %v1251
      %1283 = vmatprep.subr.bf16.mxu0 0
      %1284 = vmatpush2.bf16.msra.mxu0 0
      %1285 = vmatprep.subr.bf16.mxu0 0
      %1286 = vmatpush2.bf16.msra.mxu0 0
      %1287 = vmatprep.subr.bf16.mxu0 0
      %1288 = vmatpush2.bf16.msra.mxu0 0
      %1289 = vmatprep.subr.bf16.mxu0 0
      %1290 = vmatpush2.bf16.msra.mxu0 0
      %1291 = vmatprep.subr.bf16.mxu0 0
      %1292 = vmatpush2.bf16.msra.mxu0 0
      %1293 = vmatprep.subr.bf16.mxu0 0
      %1294 = vmatpush2.bf16.msra.mxu0 0
      %1295 = vmatprep.subr.bf16.mxu0 0
      %1296 = vmatpush2.bf16.msra.mxu0 0
      %1297 = vmatprep.subr.bf16.mxu0 0
      %1298 = vmatpush2.bf16.msra.mxu0 0
      %1299 = vmatprep.mubr.bf16.mxu0 0
      %1300 = vmatmul.mubr.bf16.gmra.mxu0 %v1198
      %v1301 = vpop.f32.mrf.mxu0
      %v1302 = vadd.f32 0.0, %v1301
      %v1303 = vpop.f32.mrf.mxu0
      %v1304 = vpop.f32.mrf.mxu0
      %v1305 = vadd.f32 0.0, %v1304
      %v1306 = vpop.f32.mrf.mxu0
      %1307 = vmatprep.mubr.bf16.mxu0 0
      %1308 = vmatmul.mubr.bf16.gmra.mxu0 %v1199
      %v1309 = vpop.f32.mrf.mxu0
      %v1310 = vadd.f32 0.0, %v1309
      %v1311 = vpop.f32.mrf.mxu0
      %v1312 = vpop.f32.mrf.mxu0
      %v1313 = vadd.f32 0.0, %v1312
      %v1314 = vpop.f32.mrf.mxu0
      %1315 = vmatprep.mubr.bf16.mxu0 0
      %1316 = vmatmul.mubr.bf16.gmra.mxu0 %v1200
      %v1317 = vpop.f32.mrf.mxu0
      %v1318 = vadd.f32 0.0, %v1317
      %v1319 = vpop.f32.mrf.mxu0
      %v1320 = vpop.f32.mrf.mxu0
      %v1321 = vadd.f32 0.0, %v1320
      %v1322 = vpop.f32.mrf.mxu0
      %1323 = vmatprep.mubr.bf16.mxu0 0
      %1324 = vmatmul.mubr.bf16.gmra.mxu0 %v1201
      %v1325 = vpop.f32.mrf.mxu0
      %v1326 = vadd.f32 0.0, %v1325
      %v1327 = vpop.f32.mrf.mxu0
      %v1328 = vpop.f32.mrf.mxu0
      %v1329 = vadd.f32 0.0, %v1328
      %v1330 = vpop.f32.mrf.mxu0
      %1331 = vdwg.mxu0
      %v1332 = vadd.f32 %v1182, %v1302
      %v1333 = vadd.f32 %v1183, %v1305
      %v1334 = vadd.f32 %v1184, %v1310
      %v1335 = vadd.f32 %v1185, %v1313
      %v1336 = vadd.f32 %v1186, %v1318
      %v1337 = vadd.f32 %v1187, %v1321
      %v1338 = vadd.f32 %v1188, %v1326
      %v1339 = vadd.f32 %v1189, %v1329
      %s1340 = scalar_lea.vmem [#allocation2], 496
      %v1341 = vld [vmem:[%s1340] sm:$0xff]
      %v1342 = vld [vmem:[%s1340 + $0x10] sm:$0xff]
      %v1343 = vld [vmem:[%s1340 + $0x20] sm:$0xff]
      %v1344 = vld [vmem:[%s1340 + $0x30] sm:$0xff]
      %v1345 = vld [vmem:[%s1340 + $0x40] sm:$0xff]
      %v1346 = vld [vmem:[%s1340 + $0x50] sm:$0xff]
      %v1347 = vld [vmem:[%s1340 + $0x60] sm:$0xff]
      %v1348 = vld [vmem:[%s1340 + $0x70] sm:$0xff]
      %v1349 = vpack.c.bf16 %v1342, %v1341
      %v1350 = vpack.c.bf16 %v1344, %v1343
      %v1351 = vpack.c.bf16 %v1346, %v1345
      %v1352 = vpack.c.bf16 %v1348, %v1347
      %s1353 = scalar_lea.vmem %s3, 384
      %v1354 = vld [vmem:[%s1353] sm:$0xf]
      %v1355 = vld [vmem:[%s1353 + $0x4] sm:$0xf]
      %v1356 = vld [vmem:[%s1353 + $0x8] sm:$0xf]
      %v1357 = vld [vmem:[%s1353 + $0xc] sm:$0xf]
      %v1358 = vld [vmem:[%s1353 + $0x10] sm:$0xf]
      %v1359 = vld [vmem:[%s1353 + $0x14] sm:$0xf]
      %v1360 = vld [vmem:[%s1353 + $0x18] sm:$0xf]
      %v1361 = vld [vmem:[%s1353 + $0x1c] sm:$0xf]
      %v1362 = vld [vmem:[%s1353 + $0x20] sm:$0xf]
      %v1363 = vld [vmem:[%s1353 + $0x24] sm:$0xf]
      %v1364 = vld [vmem:[%s1353 + $0x28] sm:$0xf]
      %v1365 = vld [vmem:[%s1353 + $0x2c] sm:$0xf]
      %v1366 = vld [vmem:[%s1353 + $0x30] sm:$0xf]
      %v1367 = vld [vmem:[%s1353 + $0x34] sm:$0xf]
      %v1368 = vld [vmem:[%s1353 + $0x38] sm:$0xf]
      %v1369 = vld [vmem:[%s1353 + $0x3c] sm:$0xf]
      %v1386 = vunpack.c.l.b16 %v1354
      %v1387 = vunpack.c.l.b16 %v1355
      %v1388 = vunpack.c.l.b16 %v1356
      %v1389 = vunpack.c.l.b16 %v1357
      %v1390 = vunpack.c.l.b16 %v1358
      %v1391 = vunpack.c.l.b16 %v1359
      %v1392 = vunpack.c.l.b16 %v1360
      %v1393 = vunpack.c.l.b16 %v1361
      %v1394 = vunpack.c.l.b16 %v1362
      %v1395 = vunpack.c.l.b16 %v1363
      %v1396 = vunpack.c.l.b16 %v1364
      %v1397 = vunpack.c.l.b16 %v1365
      %v1398 = vunpack.c.l.b16 %v1366
      %v1399 = vunpack.c.l.b16 %v1367
      %v1400 = vunpack.c.l.b16 %v1368
      %v1401 = vunpack.c.l.b16 %v1369
      %v1402 = vpack.c.b16 %v1387, %v1386
      %v1403 = vpack.c.b16 %v1389, %v1388
      %v1404 = vpack.c.b16 %v1391, %v1390
      %v1405 = vpack.c.b16 %v1393, %v1392
      %v1406 = vpack.c.b16 %v1395, %v1394
      %v1407 = vpack.c.b16 %v1397, %v1396
      %v1408 = vpack.c.b16 %v1399, %v1398
      %v1409 = vpack.c.b16 %v1401, %v1400
      %1418 = vmatprep.subr.bf16.mxu0 0
      %1419 = vmatpush1.bf16.msra.mxu0 %v1409
      %1420 = vmatprep.subr.bf16.mxu0 0
      %1421 = vmatpush1.bf16.msra.mxu0 %v1408
      %1422 = vmatprep.subr.bf16.mxu0 0
      %1423 = vmatpush1.bf16.msra.mxu0 %v1407
      %1424 = vmatprep.subr.bf16.mxu0 0
      %1425 = vmatpush1.bf16.msra.mxu0 %v1406
      %1426 = vmatprep.subr.bf16.mxu0 0
      %1427 = vmatpush1.bf16.msra.mxu0 %v1405
      %1428 = vmatprep.subr.bf16.mxu0 0
      %1429 = vmatpush1.bf16.msra.mxu0 %v1404
      %1430 = vmatprep.subr.bf16.mxu0 0
      %1431 = vmatpush1.bf16.msra.mxu0 %v1403
      %1432 = vmatprep.subr.bf16.mxu0 0
      %1433 = vmatpush1.bf16.msra.mxu0 %v1402
      %1434 = vmatprep.subr.bf16.mxu0 0
      %1435 = vmatpush2.bf16.msra.mxu0 0
      %1436 = vmatprep.subr.bf16.mxu0 0
      %1437 = vmatpush2.bf16.msra.mxu0 0
      %1438 = vmatprep.subr.bf16.mxu0 0
      %1439 = vmatpush2.bf16.msra.mxu0 0
      %1440 = vmatprep.subr.bf16.mxu0 0
      %1441 = vmatpush2.bf16.msra.mxu0 0
      %1442 = vmatprep.subr.bf16.mxu0 0
      %1443 = vmatpush2.bf16.msra.mxu0 0
      %1444 = vmatprep.subr.bf16.mxu0 0
      %1445 = vmatpush2.bf16.msra.mxu0 0
      %1446 = vmatprep.subr.bf16.mxu0 0
      %1447 = vmatpush2.bf16.msra.mxu0 0
      %1448 = vmatprep.subr.bf16.mxu0 0
      %1449 = vmatpush2.bf16.msra.mxu0 0
      %1450 = vmatprep.mubr.bf16.mxu0 0
      %1451 = vmatmul.mubr.bf16.gmra.mxu0 %v1349
      %v1452 = vpop.f32.mrf.mxu0
      %v1453 = vadd.f32 0.0, %v1452
      %v1454 = vpop.f32.mrf.mxu0
      %v1455 = vpop.f32.mrf.mxu0
      %v1456 = vadd.f32 0.0, %v1455
      %v1457 = vpop.f32.mrf.mxu0
      %1458 = vmatprep.mubr.bf16.mxu0 0
      %1459 = vmatmul.mubr.bf16.gmra.mxu0 %v1350
      %v1460 = vpop.f32.mrf.mxu0
      %v1461 = vadd.f32 0.0, %v1460
      %v1462 = vpop.f32.mrf.mxu0
      %v1463 = vpop.f32.mrf.mxu0
      %v1464 = vadd.f32 0.0, %v1463
      %v1465 = vpop.f32.mrf.mxu0
      %1466 = vmatprep.mubr.bf16.mxu0 0
      %1467 = vmatmul.mubr.bf16.gmra.mxu0 %v1351
      %v1468 = vpop.f32.mrf.mxu0
      %v1469 = vadd.f32 0.0, %v1468
      %v1470 = vpop.f32.mrf.mxu0
      %v1471 = vpop.f32.mrf.mxu0
      %v1472 = vadd.f32 0.0, %v1471
      %v1473 = vpop.f32.mrf.mxu0
      %1474 = vmatprep.mubr.bf16.mxu0 0
      %1475 = vmatmul.mubr.bf16.gmra.mxu0 %v1352
      %v1476 = vpop.f32.mrf.mxu0
      %v1477 = vadd.f32 0.0, %v1476
      %v1478 = vpop.f32.mrf.mxu0
      %v1479 = vpop.f32.mrf.mxu0
      %v1480 = vadd.f32 0.0, %v1479
      %v1481 = vpop.f32.mrf.mxu0
      %1482 = vdwg.mxu0
      %v1483 = vadd.f32 %v1332, %v1453
      %v1484 = vadd.f32 %v1333, %v1456
      %v1485 = vadd.f32 %v1334, %v1461
      %v1486 = vadd.f32 %v1335, %v1464
      %v1487 = vadd.f32 %v1336, %v1469
      %v1488 = vadd.f32 %v1337, %v1472
      %v1489 = vadd.f32 %v1338, %v1477
      %v1490 = vadd.f32 %v1339, %v1480
      %s1491 = scalar_lea.vmem [#allocation2], 336
      %v1492 = vld [vmem:[%s1491 + $0x1] sm:$0xff]
      %v1493 = vld [vmem:[%s1491 + $0x11] sm:$0xff]
      %v1494 = vld [vmem:[%s1491 + $0x21] sm:$0xff]
      %v1495 = vld [vmem:[%s1491 + $0x31] sm:$0xff]
      %v1496 = vld [vmem:[%s1491 + $0x41] sm:$0xff]
      %v1497 = vld [vmem:[%s1491 + $0x51] sm:$0xff]
      %v1498 = vld [vmem:[%s1491 + $0x61] sm:$0xff]
      %v1499 = vld [vmem:[%s1491 + $0x71] sm:$0xff]
      %v1500 = vpack.c.bf16 %v1493, %v1492
      %v1501 = vpack.c.bf16 %v1495, %v1494
      %v1502 = vpack.c.bf16 %v1497, %v1496
      %v1503 = vpack.c.bf16 %v1499, %v1498
      %s1504 = scalar_lea.vmem %s3, 448
      %v1505 = vld [vmem:[%s1504] sm:$0xf]
      %v1506 = vld [vmem:[%s1504 + $0x4] sm:$0xf]
      %v1507 = vld [vmem:[%s1504 + $0x8] sm:$0xf]
      %v1508 = vld [vmem:[%s1504 + $0xc] sm:$0xf]
      %v1509 = vld [vmem:[%s1504 + $0x10] sm:$0xf]
      %v1510 = vld [vmem:[%s1504 + $0x14] sm:$0xf]
      %v1511 = vld [vmem:[%s1504 + $0x18] sm:$0xf]
      %v1512 = vld [vmem:[%s1504 + $0x1c] sm:$0xf]
      %v1513 = vld [vmem:[%s1504 + $0x20] sm:$0xf]
      %v1514 = vld [vmem:[%s1504 + $0x24] sm:$0xf]
      %v1515 = vld [vmem:[%s1504 + $0x28] sm:$0xf]
      %v1516 = vld [vmem:[%s1504 + $0x2c] sm:$0xf]
      %v1517 = vld [vmem:[%s1504 + $0x30] sm:$0xf]
      %v1518 = vld [vmem:[%s1504 + $0x34] sm:$0xf]
      %v1519 = vld [vmem:[%s1504 + $0x38] sm:$0xf]
      %v1520 = vld [vmem:[%s1504 + $0x3c] sm:$0xf]
      %v1537 = vunpack.c.l.b16 %v1505
      %v1538 = vunpack.c.l.b16 %v1506
      %v1539 = vunpack.c.l.b16 %v1507
      %v1540 = vunpack.c.l.b16 %v1508
      %v1541 = vunpack.c.l.b16 %v1509
      %v1542 = vunpack.c.l.b16 %v1510
      %v1543 = vunpack.c.l.b16 %v1511
      %v1544 = vunpack.c.l.b16 %v1512
      %v1545 = vunpack.c.l.b16 %v1513
      %v1546 = vunpack.c.l.b16 %v1514
      %v1547 = vunpack.c.l.b16 %v1515
      %v1548 = vunpack.c.l.b16 %v1516
      %v1549 = vunpack.c.l.b16 %v1517
      %v1550 = vunpack.c.l.b16 %v1518
      %v1551 = vunpack.c.l.b16 %v1519
      %v1552 = vunpack.c.l.b16 %v1520
      %v1553 = vpack.c.b16 %v1538, %v1537
      %v1554 = vpack.c.b16 %v1540, %v1539
      %v1555 = vpack.c.b16 %v1542, %v1541
      %v1556 = vpack.c.b16 %v1544, %v1543
      %v1557 = vpack.c.b16 %v1546, %v1545
      %v1558 = vpack.c.b16 %v1548, %v1547
      %v1559 = vpack.c.b16 %v1550, %v1549
      %v1560 = vpack.c.b16 %v1552, %v1551
      %1569 = vmatprep.subr.bf16.mxu0 0
      %1570 = vmatpush1.bf16.msra.mxu0 %v1560
      %1571 = vmatprep.subr.bf16.mxu0 0
      %1572 = vmatpush1.bf16.msra.mxu0 %v1559
      %1573 = vmatprep.subr.bf16.mxu0 0
      %1574 = vmatpush1.bf16.msra.mxu0 %v1558
      %1575 = vmatprep.subr.bf16.mxu0 0
      %1576 = vmatpush1.bf16.msra.mxu0 %v1557
      %1577 = vmatprep.subr.bf16.mxu0 0
      %1578 = vmatpush1.bf16.msra.mxu0 %v1556
      %1579 = vmatprep.subr.bf16.mxu0 0
      %1580 = vmatpush1.bf16.msra.mxu0 %v1555
      %1581 = vmatprep.subr.bf16.mxu0 0
      %1582 = vmatpush1.bf16.msra.mxu0 %v1554
      %1583 = vmatprep.subr.bf16.mxu0 0
      %1584 = vmatpush1.bf16.msra.mxu0 %v1553
      %1585 = vmatprep.subr.bf16.mxu0 0
      %1586 = vmatpush2.bf16.msra.mxu0 0
      %1587 = vmatprep.subr.bf16.mxu0 0
      %1588 = vmatpush2.bf16.msra.mxu0 0
      %1589 = vmatprep.subr.bf16.mxu0 0
      %1590 = vmatpush2.bf16.msra.mxu0 0
      %1591 = vmatprep.subr.bf16.mxu0 0
      %1592 = vmatpush2.bf16.msra.mxu0 0
      %1593 = vmatprep.subr.bf16.mxu0 0
      %1594 = vmatpush2.bf16.msra.mxu0 0
      %1595 = vmatprep.subr.bf16.mxu0 0
      %1596 = vmatpush2.bf16.msra.mxu0 0
      %1597 = vmatprep.subr.bf16.mxu0 0
      %1598 = vmatpush2.bf16.msra.mxu0 0
      %1599 = vmatprep.subr.bf16.mxu0 0
      %1600 = vmatpush2.bf16.msra.mxu0 0
      %1601 = vmatprep.mubr.bf16.mxu0 0
      %1602 = vmatmul.mubr.bf16.gmra.mxu0 %v1500
      %v1603 = vpop.f32.mrf.mxu0
      %v1604 = vadd.f32 0.0, %v1603
      %v1605 = vpop.f32.mrf.mxu0
      %v1606 = vpop.f32.mrf.mxu0
      %v1607 = vadd.f32 0.0, %v1606
      %v1608 = vpop.f32.mrf.mxu0
      %1609 = vmatprep.mubr.bf16.mxu0 0
      %1610 = vmatmul.mubr.bf16.gmra.mxu0 %v1501
      %v1611 = vpop.f32.mrf.mxu0
      %v1612 = vadd.f32 0.0, %v1611
      %v1613 = vpop.f32.mrf.mxu0
      %v1614 = vpop.f32.mrf.mxu0
      %v1615 = vadd.f32 0.0, %v1614
      %v1616 = vpop.f32.mrf.mxu0
      %1617 = vmatprep.mubr.bf16.mxu0 0
      %1618 = vmatmul.mubr.bf16.gmra.mxu0 %v1502
      %v1619 = vpop.f32.mrf.mxu0
      %v1620 = vadd.f32 0.0, %v1619
      %v1621 = vpop.f32.mrf.mxu0
      %v1622 = vpop.f32.mrf.mxu0
      %v1623 = vadd.f32 0.0, %v1622
      %v1624 = vpop.f32.mrf.mxu0
      %1625 = vmatprep.mubr.bf16.mxu0 0
      %1626 = vmatmul.mubr.bf16.gmra.mxu0 %v1503
      %v1627 = vpop.f32.mrf.mxu0
      %v1628 = vadd.f32 0.0, %v1627
      %v1629 = vpop.f32.mrf.mxu0
      %v1630 = vpop.f32.mrf.mxu0
      %v1631 = vadd.f32 0.0, %v1630
      %v1632 = vpop.f32.mrf.mxu0
      %1633 = vdwg.mxu0
      %v1634 = vadd.f32 %v1483, %v1604
      %v1635 = vadd.f32 %v1484, %v1607
      %v1636 = vadd.f32 %v1485, %v1612
      %v1637 = vadd.f32 %v1486, %v1615
      %v1638 = vadd.f32 %v1487, %v1620
      %v1639 = vadd.f32 %v1488, %v1623
      %v1640 = vadd.f32 %v1489, %v1628
      %v1641 = vadd.f32 %v1490, %v1631
      %v1642 = vld [vmem:[%s1340 + $0x1] sm:$0xff]
      %v1643 = vld [vmem:[%s1340 + $0x11] sm:$0xff]
      %v1644 = vld [vmem:[%s1340 + $0x21] sm:$0xff]
      %v1645 = vld [vmem:[%s1340 + $0x31] sm:$0xff]
      %v1646 = vld [vmem:[%s1340 + $0x41] sm:$0xff]
      %v1647 = vld [vmem:[%s1340 + $0x51] sm:$0xff]
      %v1648 = vld [vmem:[%s1340 + $0x61] sm:$0xff]
      %v1649 = vld [vmem:[%s1340 + $0x71] sm:$0xff]
      %v1650 = vpack.c.bf16 %v1643, %v1642
      %v1651 = vpack.c.bf16 %v1645, %v1644
      %v1652 = vpack.c.bf16 %v1647, %v1646
      %v1653 = vpack.c.bf16 %v1649, %v1648
      %s1654 = scalar_lea.vmem %s3, 512
      %v1655 = vld [vmem:[%s1654] sm:$0xf]
      %v1656 = vld [vmem:[%s1654 + $0x4] sm:$0xf]
      %v1657 = vld [vmem:[%s1654 + $0x8] sm:$0xf]
      %v1658 = vld [vmem:[%s1654 + $0xc] sm:$0xf]
      %v1659 = vld [vmem:[%s1654 + $0x10] sm:$0xf]
      %v1660 = vld [vmem:[%s1654 + $0x14] sm:$0xf]
      %v1661 = vld [vmem:[%s1654 + $0x18] sm:$0xf]
      %v1662 = vld [vmem:[%s1654 + $0x1c] sm:$0xf]
      %v1663 = vld [vmem:[%s1654 + $0x20] sm:$0xf]
      %v1664 = vld [vmem:[%s1654 + $0x24] sm:$0xf]
      %v1665 = vld [vmem:[%s1654 + $0x28] sm:$0xf]
      %v1666 = vld [vmem:[%s1654 + $0x2c] sm:$0xf]
      %v1667 = vld [vmem:[%s1654 + $0x30] sm:$0xf]
      %v1668 = vld [vmem:[%s1654 + $0x34] sm:$0xf]
      %v1669 = vld [vmem:[%s1654 + $0x38] sm:$0xf]
      %v1670 = vld [vmem:[%s1654 + $0x3c] sm:$0xf]
      %v1687 = vunpack.c.l.b16 %v1655
      %v1688 = vunpack.c.l.b16 %v1656
      %v1689 = vunpack.c.l.b16 %v1657
      %v1690 = vunpack.c.l.b16 %v1658
      %v1691 = vunpack.c.l.b16 %v1659
      %v1692 = vunpack.c.l.b16 %v1660
      %v1693 = vunpack.c.l.b16 %v1661
      %v1694 = vunpack.c.l.b16 %v1662
      %v1695 = vunpack.c.l.b16 %v1663
      %v1696 = vunpack.c.l.b16 %v1664
      %v1697 = vunpack.c.l.b16 %v1665
      %v1698 = vunpack.c.l.b16 %v1666
      %v1699 = vunpack.c.l.b16 %v1667
      %v1700 = vunpack.c.l.b16 %v1668
      %v1701 = vunpack.c.l.b16 %v1669
      %v1702 = vunpack.c.l.b16 %v1670
      %v1703 = vpack.c.b16 %v1688, %v1687
      %v1704 = vpack.c.b16 %v1690, %v1689
      %v1705 = vpack.c.b16 %v1692, %v1691
      %v1706 = vpack.c.b16 %v1694, %v1693
      %v1707 = vpack.c.b16 %v1696, %v1695
      %v1708 = vpack.c.b16 %v1698, %v1697
      %v1709 = vpack.c.b16 %v1700, %v1699
      %v1710 = vpack.c.b16 %v1702, %v1701
      %1719 = vmatprep.subr.bf16.mxu0 0
      %1720 = vmatpush1.bf16.msra.mxu0 %v1710
      %1721 = vmatprep.subr.bf16.mxu0 0
      %1722 = vmatpush1.bf16.msra.mxu0 %v1709
      %1723 = vmatprep.subr.bf16.mxu0 0
      %1724 = vmatpush1.bf16.msra.mxu0 %v1708
      %1725 = vmatprep.subr.bf16.mxu0 0
      %1726 = vmatpush1.bf16.msra.mxu0 %v1707
      %1727 = vmatprep.subr.bf16.mxu0 0
      %1728 = vmatpush1.bf16.msra.mxu0 %v1706
      %1729 = vmatprep.subr.bf16.mxu0 0
      %1730 = vmatpush1.bf16.msra.mxu0 %v1705
      %1731 = vmatprep.subr.bf16.mxu0 0
      %1732 = vmatpush1.bf16.msra.mxu0 %v1704
      %1733 = vmatprep.subr.bf16.mxu0 0
      %1734 = vmatpush1.bf16.msra.mxu0 %v1703
      %1735 = vmatprep.subr.bf16.mxu0 0
      %1736 = vmatpush2.bf16.msra.mxu0 0
      %1737 = vmatprep.subr.bf16.mxu0 0
      %1738 = vmatpush2.bf16.msra.mxu0 0
      %1739 = vmatprep.subr.bf16.mxu0 0
      %1740 = vmatpush2.bf16.msra.mxu0 0
      %1741 = vmatprep.subr.bf16.mxu0 0
      %1742 = vmatpush2.bf16.msra.mxu0 0
      %1743 = vmatprep.subr.bf16.mxu0 0
      %1744 = vmatpush2.bf16.msra.mxu0 0
      %1745 = vmatprep.subr.bf16.mxu0 0
      %1746 = vmatpush2.bf16.msra.mxu0 0
      %1747 = vmatprep.subr.bf16.mxu0 0
      %1748 = vmatpush2.bf16.msra.mxu0 0
      %1749 = vmatprep.subr.bf16.mxu0 0
      %1750 = vmatpush2.bf16.msra.mxu0 0
      %1751 = vmatprep.mubr.bf16.mxu0 0
      %1752 = vmatmul.mubr.bf16.gmra.mxu0 %v1650
      %v1753 = vpop.f32.mrf.mxu0
      %v1754 = vadd.f32 0.0, %v1753
      %v1755 = vpop.f32.mrf.mxu0
      %v1756 = vpop.f32.mrf.mxu0
      %v1757 = vadd.f32 0.0, %v1756
      %v1758 = vpop.f32.mrf.mxu0
      %1759 = vmatprep.mubr.bf16.mxu0 0
      %1760 = vmatmul.mubr.bf16.gmra.mxu0 %v1651
      %v1761 = vpop.f32.mrf.mxu0
      %v1762 = vadd.f32 0.0, %v1761
      %v1763 = vpop.f32.mrf.mxu0
      %v1764 = vpop.f32.mrf.mxu0
      %v1765 = vadd.f32 0.0, %v1764
      %v1766 = vpop.f32.mrf.mxu0
      %1767 = vmatprep.mubr.bf16.mxu0 0
      %1768 = vmatmul.mubr.bf16.gmra.mxu0 %v1652
      %v1769 = vpop.f32.mrf.mxu0
      %v1770 = vadd.f32 0.0, %v1769
      %v1771 = vpop.f32.mrf.mxu0
      %v1772 = vpop.f32.mrf.mxu0
      %v1773 = vadd.f32 0.0, %v1772
      %v1774 = vpop.f32.mrf.mxu0
      %1775 = vmatprep.mubr.bf16.mxu0 0
      %1776 = vmatmul.mubr.bf16.gmra.mxu0 %v1653
      %v1777 = vpop.f32.mrf.mxu0
      %v1778 = vadd.f32 0.0, %v1777
      %v1779 = vpop.f32.mrf.mxu0
      %v1780 = vpop.f32.mrf.mxu0
      %v1781 = vadd.f32 0.0, %v1780
      %v1782 = vpop.f32.mrf.mxu0
      %1783 = vdwg.mxu0
      %v1784 = vadd.f32 %v1634, %v1754
      %v1785 = vadd.f32 %v1635, %v1757
      %v1786 = vadd.f32 %v1636, %v1762
      %v1787 = vadd.f32 %v1637, %v1765
      %v1788 = vadd.f32 %v1638, %v1770
      %v1789 = vadd.f32 %v1639, %v1773
      %v1790 = vadd.f32 %v1640, %v1778
      %v1791 = vadd.f32 %v1641, %v1781
      %1792 = vst [vmem:[%s197] sm:$0xff] %v1784
      %1793 = vst [vmem:[%s197 + $0x8] sm:$0xff] %v1785
      %1794 = vst [vmem:[%s197 + $0x10] sm:$0xff] %v1786
      %1795 = vst [vmem:[%s197 + $0x18] sm:$0xff] %v1787
      %1796 = vst [vmem:[%s197 + $0x20] sm:$0xff] %v1788
      %1797 = vst [vmem:[%s197 + $0x28] sm:$0xff] %v1789
      %1798 = vst [vmem:[%s197 + $0x30] sm:$0xff] %v1790
      %1799 = vst [vmem:[%s197 + $0x38] sm:$0xff] %v1791
      %p1800 = scmp.lt.s32.totalorder %s15, 1
      %s1801 = scalar_select %p1800, %s15, 1
      %s1802 = smul.addr %s1801, 8
      %s1803 = smul.addr %s1802, 8
      %s1804 = scalar_lea.vmem %s4, %s1803
      // Predicated region
      $region37: #{_lambda_.5} parent=35 // pred_check
        %p1805 = pneg %p122
      $region38: #{_lambda_.5} parent=35 // pred_check_branch
        %1807 = sbr.rel (%p1805) target = $region40
      $region39: #{_lambda_.5} parent=35 // pred_region
        _
      $region40: #{_lambda_.5} parent=35 // pred_fallthru
        _
    $region36: #{_lambda_.5} parent=5 // pred_fallthru
      _
    %p1808 = scmp.le.s32.totalorder 2, %s10
    // Predicated region
    $region41: #{_lambda_.5} parent=5 // pred_check
      %p1809 = pneg %p1808
    $region42: #{_lambda_.5} parent=5 // pred_check_branch
      %1811 = sbr.rel (%p1809) target = $region44
    $region43: #{_lambda_.5} parent=5 // pred_region
      %s1812 = ssub.s32 %s10, 2
      // Predicated region
      $region45: #{_lambda_.5} parent=43 // pred_check
        %p1813 = pneg %p128
      $region46: #{_lambda_.5} parent=43 // pred_check_branch
        %1815 = sbr.rel (%p1813) target = $region48
      $region47: #{_lambda_.5} parent=43 // pred_region
        %p1816 = scmp.lt.s32.totalorder %s16, 1
        %s1817 = scalar_select %p1816, %s16, 1
        %s1818 = smul.addr %s1817, 8
        %s1819 = smul.addr %s1818, 8
        %s1820 = scalar_lea.vmem %s4, %s1819
      $region48: #{_lambda_.5} parent=43 // pred_fallthru
        _
    $region44: #{_lambda_.5} parent=5 // pred_fallthru
      _
  $region6: #{_lambda_.5} parent=0 // loop_footer
    %s14 = sadd.s32 1, %s10
  $region7: #{_lambda_.5} parent=0 // loop_footer_branch
    %9 = sbr.rel target = $region3
  $region8: #{_lambda_.5} parent=0 // loop_exit
    _

// kernel: _lambda_.7
$region0: #{_lambda_.7}
  #allocation0 [shape = 'u32[]', space=smem, size = 0x4, offset = 0x4, fixed_abs, tag = 'smem constant byte address 0x4 - core index']
  #allocation1 [shape = 'u32[144,128]{1,0:T(1,128)}', space=vmem, size = 0x12000, scoped, tag = 'internal scratch']
  #allocation2 [shape = 'f32[1,10,10,128]{3,2,1,0:T(8,128)}', space=vmem, size = 0x14000, scoped, tag = 'scratch operand']
  %s0 = inlined_call_operand.vmem [shape: f32[2,1,8,8,128], index: 0, kind: input, shape index: {}]
  %s1 = inlined_call_operand.vmem [shape: f32[1,128], index: 1, kind: input, shape index: {}]
  %s2 = inlined_call_operand.vmem [shape: f32[1,128], index: 2, kind: input, shape index: {}]
  %s3 = inlined_call_operand.vmem [shape: bf16[9,128,128], index: 3, kind: input, shape index: {}]
  %s4 = inlined_call_operand.vmem [shape: f32[2,4,8,8,128], index: 4, kind: input, shape index: {}]
  %s5 = inlined_call_operand.vmem [shape: bf16[128,128], index: 5, kind: input, shape index: {}]
  %s6 = inlined_call_operand.vmem [shape: f32[2,8,8,128], index: 6, kind: output, shape index: {}]
  %s7 = sld [smem:[#allocation0]]
  $region57: #{_lambda_.7} parent=0
    _
  %s9 = ssub.s32 1, %s7
  %s10 = scalar_select 0, %s9, %s7
  loop: start=0, step=1, limit=4
  $region2: #{_lambda_.7} parent=0 // loop_pre_header
    _
  $region3: #{_lambda_.7} parent=0 // loop_header
    %s12 = sphi 0, %s16
    %p13 = scmp.ge.s32.totalorder %s12, 4
    %s22 = sphi 0, %s24
    %s25 = sphi 0, %s22
    %s26 = sphi 0, %s25
    %s42 = sphi 0, %s26
    %s46 = sphi 0, %s46
    %s48 = sphi 0, %s46
    %s49 = sphi 0, %s48
    %s63 = sphi 0, %s49
    %s67 = sphi 0, %s67
    %s69 = sphi 0, %s67
    %s70 = sphi 0, %s69
    %s84 = sphi 0, %s70
    %s88 = sphi 0, %s88
    %s90 = sphi 0, %s88
    %s91 = sphi 0, %s90
    %s105 = sphi 0, %s91
    %s111 = sphi 0, %s113
    %s114 = sphi 0, %s111
    %s115 = sphi 0, %s114
    %s131 = sphi 0, %s115
    %s135 = sphi 0, %s135
    %s137 = sphi 0, %s135
    %s138 = sphi 0, %s137
    %s152 = sphi 0, %s138
    %s158 = sphi 0, %s160
    %s161 = sphi 0, %s158
    %s162 = sphi 0, %s161
    %s178 = sphi 0, %s162
  $region4: #{_lambda_.7} parent=0 // loop_header_branch
    %15 = sbr.rel (%p13) target = $region8
  $region5: #{_lambda_.7} parent=0 // loop_body
    %s17 = ssub.s32 %s12, 1
    %s18 = ssub.s32 %s12, 2
    %s19 = sadd.s32 %s12, 1
    %s20 = ssub.s32 %s12, %s19
    %p21 = scmp.eq.s32.totalorder %s20, 0
    %s23 = sadd.s32 %s22, 1
    %s24 = scalar_select %p21, %s22, %s23
    %p27 = pneg %p21
    %p28 = scmp.eq.s32.totalorder %s12, 1
    %p29 = por %p27, %p28
    %p30 = scmp.ne.s32.totalorder %s22, %s25
    %p31 = scmp.eq.s32.totalorder %s12, 0
    %p32 = por %p30, %p31
    %p33 = scmp.ne.s32.totalorder %s22, %s25
    %p34 = scmp.eq.s32.totalorder %s17, 1
    %p35 = por %p33, %p34
    %p36 = scmp.ne.s32.totalorder %s25, %s26
    %p37 = scmp.eq.s32.totalorder %s17, 0
    %p38 = por %p36, %p37
    %p39 = scmp.ne.s32.totalorder %s25, %s26
    %p40 = scmp.eq.s32.totalorder %s18, 1
    %p41 = por %p39, %p40
    %p43 = scmp.ne.s32.totalorder %s26, %s42
    %p44 = scmp.eq.s32.totalorder %s18, 0
    %p45 = por %p43, %p44
    %s47 = sadd.s32 %s46, 1
    %p50 = scmp.eq.s32.totalorder %s12, 1
    %p51 = scmp.ne.s32.totalorder %s46, %s48
    %p52 = scmp.eq.s32.totalorder %s12, 0
    %p53 = por %p51, %p52
    %p54 = scmp.ne.s32.totalorder %s46, %s48
    %p55 = scmp.eq.s32.totalorder %s17, 1
    %p56 = por %p54, %p55
    %p57 = scmp.ne.s32.totalorder %s48, %s49
    %p58 = scmp.eq.s32.totalorder %s17, 0
    %p59 = por %p57, %p58
    %p60 = scmp.ne.s32.totalorder %s48, %s49
    %p61 = scmp.eq.s32.totalorder %s18, 1
    %p62 = por %p60, %p61
    %p64 = scmp.ne.s32.totalorder %s49, %s63
    %p65 = scmp.eq.s32.totalorder %s18, 0
    %p66 = por %p64, %p65
    %s68 = sadd.s32 %s67, 1
    %p71 = scmp.eq.s32.totalorder %s12, 1
    %p72 = scmp.ne.s32.totalorder %s67, %s69
    %p73 = scmp.eq.s32.totalorder %s12, 0
    %p74 = por %p72, %p73
    %p75 = scmp.ne.s32.totalorder %s67, %s69
    %p76 = scmp.eq.s32.totalorder %s17, 1
    %p77 = por %p75, %p76
    %p78 = scmp.ne.s32.totalorder %s69, %s70
    %p79 = scmp.eq.s32.totalorder %s17, 0
    %p80 = por %p78, %p79
    %p81 = scmp.ne.s32.totalorder %s69, %s70
    %p82 = scmp.eq.s32.totalorder %s18, 1
    %p83 = por %p81, %p82
    %p85 = scmp.ne.s32.totalorder %s70, %s84
    %p86 = scmp.eq.s32.totalorder %s18, 0
    %p87 = por %p85, %p86
    %s89 = sadd.s32 %s88, 1
    %p92 = scmp.eq.s32.totalorder %s12, 1
    %p93 = scmp.ne.s32.totalorder %s88, %s90
    %p94 = scmp.eq.s32.totalorder %s12, 0
    %p95 = por %p93, %p94
    %p96 = scmp.ne.s32.totalorder %s88, %s90
    %p97 = scmp.eq.s32.totalorder %s17, 1
    %p98 = por %p96, %p97
    %p99 = scmp.ne.s32.totalorder %s90, %s91
    %p100 = scmp.eq.s32.totalorder %s17, 0
    %p101 = por %p99, %p100
    %p102 = scmp.ne.s32.totalorder %s90, %s91
    %p103 = scmp.eq.s32.totalorder %s18, 1
    %p104 = por %p102, %p103
    %p106 = scmp.ne.s32.totalorder %s91, %s105
    %p107 = scmp.eq.s32.totalorder %s18, 0
    %p108 = por %p106, %p107
    %s109 = ssub.s32 %s12, %s19
    %p110 = scmp.eq.s32.totalorder %s109, 0
    %s112 = sadd.s32 %s111, 1
    %s113 = scalar_select %p110, %s111, %s112
    %p116 = pneg %p110
    %p117 = scmp.eq.s32.totalorder %s12, 1
    %p118 = por %p116, %p117
    %p119 = scmp.ne.s32.totalorder %s111, %s114
    %p120 = scmp.eq.s32.totalorder %s12, 0
    %p121 = por %p119, %p120
    %p122 = scmp.ne.s32.totalorder %s111, %s114
    %p123 = scmp.eq.s32.totalorder %s17, 1
    %p124 = por %p122, %p123
    %p125 = scmp.ne.s32.totalorder %s114, %s115
    %p126 = scmp.eq.s32.totalorder %s17, 0
    %p127 = por %p125, %p126
    %p128 = scmp.ne.s32.totalorder %s114, %s115
    %p129 = scmp.eq.s32.totalorder %s18, 1
    %p130 = por %p128, %p129
    %p132 = scmp.ne.s32.totalorder %s115, %s131
    %p133 = scmp.eq.s32.totalorder %s18, 0
    %p134 = por %p132, %p133
    %s136 = sadd.s32 %s135, 1
    %p139 = scmp.eq.s32.totalorder %s12, 1
    %p140 = scmp.ne.s32.totalorder %s135, %s137
    %p141 = scmp.eq.s32.totalorder %s12, 0
    %p142 = por %p140, %p141
    %p143 = scmp.ne.s32.totalorder %s135, %s137
    %p144 = scmp.eq.s32.totalorder %s17, 1
    %p145 = por %p143, %p144
    %p146 = scmp.ne.s32.totalorder %s137, %s138
    %p147 = scmp.eq.s32.totalorder %s17, 0
    %p148 = por %p146, %p147
    %p149 = scmp.ne.s32.totalorder %s137, %s138
    %p150 = scmp.eq.s32.totalorder %s18, 1
    %p151 = por %p149, %p150
    %p153 = scmp.ne.s32.totalorder %s138, %s152
    %p154 = scmp.eq.s32.totalorder %s18, 0
    %p155 = por %p153, %p154
    %s156 = ssub.s32 %s12, %s19
    %p157 = scmp.eq.s32.totalorder %s156, 0
    %s159 = sadd.s32 %s158, 1
    %s160 = scalar_select %p157, %s158, %s159
    %p163 = pneg %p157
    %p164 = scmp.eq.s32.totalorder %s12, 1
    %p165 = por %p163, %p164
    %p166 = scmp.ne.s32.totalorder %s158, %s161
    %p167 = scmp.eq.s32.totalorder %s12, 0
    %p168 = por %p166, %p167
    %p169 = scmp.ne.s32.totalorder %s158, %s161
    %p170 = scmp.eq.s32.totalorder %s17, 1
    %p171 = por %p169, %p170
    %p172 = scmp.ne.s32.totalorder %s161, %s162
    %p173 = scmp.eq.s32.totalorder %s17, 0
    %p174 = por %p172, %p173
    %p175 = scmp.ne.s32.totalorder %s161, %s162
    %p176 = scmp.eq.s32.totalorder %s18, 1
    %p177 = por %p175, %p176
    %p179 = scmp.ne.s32.totalorder %s162, %s178
    %p180 = scmp.eq.s32.totalorder %s18, 0
    %p181 = por %p179, %p180
    %p182 = scmp.le.s32.totalorder 1, %s12
    %p183 = scmp.lt.s32.totalorder %s12, 3
    %p184 = pnand %p182, %p183
    %p185 = pneg %p184
    // Predicated region
    $region9: #{_lambda_.7} parent=5 // pred_check
      _
    $region10: #{_lambda_.7} parent=5 // pred_check_branch
      %187 = sbr.rel (%p184) target = $region12
    $region11: #{_lambda_.7} parent=5 // pred_region
      %s188 = ssub.s32 %s12, 1
      // Predicated region
      $region13: #{_lambda_.7} parent=11 // pred_check
        %p189 = pneg %p59
      $region14: #{_lambda_.7} parent=11 // pred_check_branch
        %191 = sbr.rel (%p189) target = $region16
      $region15: #{_lambda_.7} parent=11 // pred_region
        _
      $region16: #{_lambda_.7} parent=11 // pred_fallthru
        _
      // Predicated region
      $region17: #{_lambda_.7} parent=11 // pred_check
        %p192 = pneg %p80
      $region18: #{_lambda_.7} parent=11 // pred_check_branch
        %194 = sbr.rel (%p192) target = $region20
      $region19: #{_lambda_.7} parent=11 // pred_region
        _
      $region20: #{_lambda_.7} parent=11 // pred_fallthru
        _
      // Predicated region
      $region21: #{_lambda_.7} parent=11 // pred_check
        %p195 = pneg %p101
      $region22: #{_lambda_.7} parent=11 // pred_check_branch
        %197 = sbr.rel (%p195) target = $region24
      $region23: #{_lambda_.7} parent=11 // pred_region
        _
      $region24: #{_lambda_.7} parent=11 // pred_fallthru
        _
      // Predicated region
      $region25: #{_lambda_.7} parent=11 // pred_check
        %p198 = pneg %p148
      $region26: #{_lambda_.7} parent=11 // pred_check_branch
        %200 = sbr.rel (%p198) target = $region28
      $region27: #{_lambda_.7} parent=11 // pred_region
        _
      $region28: #{_lambda_.7} parent=11 // pred_fallthru
        _
    $region12: #{_lambda_.7} parent=5 // pred_fallthru
      _
    %p201 = scmp.lt.s32.totalorder %s12, 2
    // Predicated region
    $region29: #{_lambda_.7} parent=5 // pred_check
      %p202 = pneg %p201
    $region30: #{_lambda_.7} parent=5 // pred_check_branch
      %204 = sbr.rel (%p202) target = $region32
    $region31: #{_lambda_.7} parent=5 // pred_region
      // Predicated region
      $region33: #{_lambda_.7} parent=31 // pred_check
        %p205 = pneg %p32
      $region34: #{_lambda_.7} parent=31 // pred_check_branch
        %207 = sbr.rel (%p205) target = $region36
      $region35: #{_lambda_.7} parent=31 // pred_region
        %p208 = scmp.lt.s32.totalorder %s12, 1
        %s209 = scalar_select %p208, %s12, 1
        %s210 = smul.addr %s209, 8
        %s211 = smul.addr %s210, 8
        %s212 = scalar_lea.vmem %s0, %s211
      $region36: #{_lambda_.7} parent=31 // pred_fallthru
        _
      // Predicated region
      $region37: #{_lambda_.7} parent=31 // pred_check
        %p213 = pneg %p121
      $region38: #{_lambda_.7} parent=31 // pred_check_branch
        %215 = sbr.rel (%p213) target = $region40
      $region39: #{_lambda_.7} parent=31 // pred_region
        %p216 = scmp.lt.s32.totalorder %s12, 1
        %s217 = scalar_select %p216, %s12, 1
        %s218 = smul.addr %s217, 32
        %s219 = smul.addr %s218, 8
        %s220 = scalar_lea.vmem %s4, %s219
      $region40: #{_lambda_.7} parent=31 // pred_fallthru
        _
    $region32: #{_lambda_.7} parent=5 // pred_fallthru
      _
    %p221 = scmp.le.s32.totalorder 1, %s12
    %p222 = scmp.lt.s32.totalorder %s12, 3
    %p223 = pnand %p221, %p222
    %p224 = pneg %p223
    // Predicated region
    $region41: #{_lambda_.7} parent=5 // pred_check
      _
    $region42: #{_lambda_.7} parent=5 // pred_check_branch
      %226 = sbr.rel (%p223) target = $region44
    $region43: #{_lambda_.7} parent=5 // pred_region
      %s227 = ssub.s32 %s12, 1
      %p228 = scmp.lt.s32.totalorder %s17, 1
      %s229 = scalar_select %p228, %s17, 1
      %s230 = smul.addr %s229, 8
      %s231 = smul.addr %s230, 8
      %s232 = scalar_lea.vmem %s0, %s231
      %p233 = pneg %p38
      %p234 = pneg %p35
      %p235 = pneg %p59
      %p236 = pneg %p56
      %p237 = pneg %p80
      %p238 = pneg %p77
      %p239 = pneg %p101
      %p240 = pneg %p98
      %p241 = scmp.lt.s32.totalorder %s17, 1
      %s242 = scalar_select %p241, %s17, 1
      %s243 = smul.addr %s242, 32
      %s244 = smul.addr %s243, 8
      %s245 = scalar_lea.vmem %s4, %s244
      %p246 = pneg %p127
      %p247 = pneg %p124
      %p248 = pneg %p148
      %p249 = pneg %p145
      %p250 = pneg %p174
      %p251 = pneg %p171
      %p252 = scmp.lt.s32.totalorder %s17, 1
      %s253 = scalar_select %p252, %s17, 1
      %s254 = smul.addr %s253, 8
      %s255 = smul.addr %s254, 8
      %s256 = scalar_lea.vmem %s6, %s255
      %p257 = scmp.lt.s32.totalorder %s17, 1
      %s258 = scalar_select %p257, %s17, 1
      %s259 = smul.addr %s258, 8
      %s260 = smul.addr %s259, 8
      %s261 = scalar_lea.vmem %s0, %s260
      %p262 = scmp.lt.s32.totalorder %s17, 1
      %s263 = scalar_select %p262, %s17, 1
      %s264 = smul.addr %s263, 32
      %s265 = smul.addr %s264, 8
      %s266 = scalar_lea.vmem %s4, %s265
      %p267 = scmp.lt.s32.totalorder %s17, 1
      %s268 = scalar_select %p267, %s17, 1
      %s269 = smul.addr %s268, 8
      %s270 = smul.addr %s269, 8
      %s271 = scalar_lea.vmem %s6, %s270
      %v273 = vld [vmem:[%s261] sm:$0xff]
      %v274 = vld [vmem:[%s261 + $0x8] sm:$0xff]
      %v275 = vld [vmem:[%s261 + $0x10] sm:$0xff]
      %v276 = vld [vmem:[%s261 + $0x18] sm:$0xff]
      %v277 = vld [vmem:[%s261 + $0x20] sm:$0xff]
      %v278 = vld [vmem:[%s261 + $0x28] sm:$0xff]
      %v279 = vld [vmem:[%s261 + $0x30] sm:$0xff]
      %v280 = vld [vmem:[%s261 + $0x38] sm:$0xff]
      %v281 = vld [vmem:[%s1] sm:$0x1]
      %v283 = vlaneseq
      %v284 = vshrl.u32 %v283, 7
      %v285 = vsub.s32 0, %v284
      %v286 = vrot.slane %v281, %v285
      %v288 = vmul.f32 %v273, %v286
      %v289 = vmul.f32 %v274, %v286
      %v290 = vmul.f32 %v275, %v286
      %v291 = vmul.f32 %v276, %v286
      %v292 = vmul.f32 %v277, %v286
      %v293 = vmul.f32 %v278, %v286
      %v294 = vmul.f32 %v279, %v286
      %v295 = vmul.f32 %v280, %v286
      %v296 = vld [vmem:[%s2] sm:$0x1]
      %v298 = vlaneseq
      %v299 = vshrl.u32 %v298, 7
      %v300 = vsub.s32 0, %v299
      %v301 = vrot.slane %v296, %v300
      %v303 = vadd.f32 %v288, %v301
      %v304 = vadd.f32 %v289, %v301
      %v305 = vadd.f32 %v290, %v301
      %v306 = vadd.f32 %v291, %v301
      %v307 = vadd.f32 %v292, %v301
      %v308 = vadd.f32 %v293, %v301
      %v309 = vadd.f32 %v294, %v301
      %v310 = vadd.f32 %v295, %v301
      %v311 = vmax.f32 %v303, 0.0
      %v312 = vmax.f32 %v304, 0.0
      %v313 = vmax.f32 %v305, 0.0
      %v314 = vmax.f32 %v306, 0.0
      %v315 = vmax.f32 %v307, 0.0
      %v316 = vmax.f32 %v308, 0.0
      %v317 = vmax.f32 %v309, 0.0
      %v318 = vmax.f32 %v310, 0.0
      %319 = vst [vmem:[#allocation2] sm:$0xff] 0.0
      %320 = vst [vmem:[#allocation2 + $0x8] sm:$0x3] 0.0
      %321 = vst [vmem:[#allocation2 + $0x10] sm:$0xff] 0.0
      %322 = vst [vmem:[#allocation2 + $0x18] sm:$0x3] 0.0
      %323 = vst [vmem:[#allocation2 + $0x20] sm:$0xff] 0.0
      %324 = vst [vmem:[#allocation2 + $0x28] sm:$0x3] 0.0
      %325 = vst [vmem:[#allocation2 + $0x30] sm:$0xff] 0.0
      %326 = vst [vmem:[#allocation2 + $0x38] sm:$0x3] 0.0
      %327 = vst [vmem:[#allocation2 + $0x40] sm:$0xff] 0.0
      %328 = vst [vmem:[#allocation2 + $0x48] sm:$0x3] 0.0
      %329 = vst [vmem:[#allocation2 + $0x50] sm:$0xff] 0.0
      %330 = vst [vmem:[#allocation2 + $0x58] sm:$0x3] 0.0
      %331 = vst [vmem:[#allocation2 + $0x60] sm:$0xff] 0.0
      %332 = vst [vmem:[#allocation2 + $0x68] sm:$0x3] 0.0
      %333 = vst [vmem:[#allocation2 + $0x70] sm:$0xff] 0.0
      %334 = vst [vmem:[#allocation2 + $0x78] sm:$0x3] 0.0
      %335 = vst [vmem:[#allocation2 + $0x80] sm:$0xff] 0.0
      %336 = vst [vmem:[#allocation2 + $0x88] sm:$0x3] 0.0
      %337 = vst [vmem:[#allocation2 + $0x90] sm:$0xff] 0.0
      %338 = vst [vmem:[#allocation2 + $0x98] sm:$0x3] 0.0
      %s339 = scalar_lea.vmem [#allocation2], 16
      %340 = vst [vmem:[%s339 + $0x1] sm:$0xff] %v311
      %341 = vst [vmem:[%s339 + $0x11] sm:$0xff] %v312
      %342 = vst [vmem:[%s339 + $0x21] sm:$0xff] %v313
      %343 = vst [vmem:[%s339 + $0x31] sm:$0xff] %v314
      %344 = vst [vmem:[%s339 + $0x41] sm:$0xff] %v315
      %345 = vst [vmem:[%s339 + $0x51] sm:$0xff] %v316
      %346 = vst [vmem:[%s339 + $0x61] sm:$0xff] %v317
      %347 = vst [vmem:[%s339 + $0x71] sm:$0xff] %v318
      %v348 = vld [vmem:[%s266] sm:$0xff]
      %v349 = vld [vmem:[%s266 + $0x8] sm:$0xff]
      %v350 = vld [vmem:[%s266 + $0x10] sm:$0xff]
      %v351 = vld [vmem:[%s266 + $0x18] sm:$0xff]
      %v352 = vld [vmem:[%s266 + $0x20] sm:$0xff]
      %v353 = vld [vmem:[%s266 + $0x28] sm:$0xff]
      %v354 = vld [vmem:[%s266 + $0x30] sm:$0xff]
      %v355 = vld [vmem:[%s266 + $0x38] sm:$0xff]
      %v356 = vpack.c.bf16 %v348, %v348
      %v357 = vpack.c.bf16 %v349, %v349
      %v358 = vpack.c.bf16 %v350, %v350
      %v359 = vpack.c.bf16 %v351, %v351
      %v360 = vpack.c.bf16 %v352, %v352
      %v361 = vpack.c.bf16 %v353, %v353
      %v362 = vpack.c.bf16 %v354, %v354
      %v363 = vpack.c.bf16 %v355, %v355
      %v364 = vld [vmem:[%s5] sm:$0xf]
      %v365 = vld [vmem:[%s5 + $0x4] sm:$0xf]
      %v366 = vld [vmem:[%s5 + $0x8] sm:$0xf]
      %v367 = vld [vmem:[%s5 + $0xc] sm:$0xf]
      %v368 = vld [vmem:[%s5 + $0x10] sm:$0xf]
      %v369 = vld [vmem:[%s5 + $0x14] sm:$0xf]
      %v370 = vld [vmem:[%s5 + $0x18] sm:$0xf]
      %v371 = vld [vmem:[%s5 + $0x1c] sm:$0xf]
      %v372 = vld [vmem:[%s5 + $0x20] sm:$0xf]
      %v373 = vld [vmem:[%s5 + $0x24] sm:$0xf]
      %v374 = vld [vmem:[%s5 + $0x28] sm:$0xf]
      %v375 = vld [vmem:[%s5 + $0x2c] sm:$0xf]
      %v376 = vld [vmem:[%s5 + $0x30] sm:$0xf]
      %v377 = vld [vmem:[%s5 + $0x34] sm:$0xf]
      %v378 = vld [vmem:[%s5 + $0x38] sm:$0xf]
      %v379 = vld [vmem:[%s5 + $0x3c] sm:$0xf]
      %v380 = vld [vmem:[#allocation2] sm:$0xff]
      %v381 = vld [vmem:[#allocation2 + $0x10] sm:$0xff]
      %v382 = vld [vmem:[#allocation2 + $0x20] sm:$0xff]
      %v383 = vld [vmem:[#allocation2 + $0x30] sm:$0xff]
      %v384 = vld [vmem:[#allocation2 + $0x40] sm:$0xff]
      %v385 = vld [vmem:[#allocation2 + $0x50] sm:$0xff]
      %v386 = vld [vmem:[#allocation2 + $0x60] sm:$0xff]
      %v387 = vld [vmem:[#allocation2 + $0x70] sm:$0xff]
      %v388 = vpack.c.bf16 %v381, %v380
      %v389 = vpack.c.bf16 %v383, %v382
      %v390 = vpack.c.bf16 %v385, %v384
      %v391 = vpack.c.bf16 %v387, %v386
      %v392 = vld [vmem:[%s3] sm:$0xf]
      %v393 = vld [vmem:[%s3 + $0x4] sm:$0xf]
      %v394 = vld [vmem:[%s3 + $0x8] sm:$0xf]
      %v395 = vld [vmem:[%s3 + $0xc] sm:$0xf]
      %v396 = vld [vmem:[%s3 + $0x10] sm:$0xf]
      %v397 = vld [vmem:[%s3 + $0x14] sm:$0xf]
      %v398 = vld [vmem:[%s3 + $0x18] sm:$0xf]
      %v399 = vld [vmem:[%s3 + $0x1c] sm:$0xf]
      %v400 = vld [vmem:[%s3 + $0x20] sm:$0xf]
      %v401 = vld [vmem:[%s3 + $0x24] sm:$0xf]
      %v402 = vld [vmem:[%s3 + $0x28] sm:$0xf]
      %v403 = vld [vmem:[%s3 + $0x2c] sm:$0xf]
      %v404 = vld [vmem:[%s3 + $0x30] sm:$0xf]
      %v405 = vld [vmem:[%s3 + $0x34] sm:$0xf]
      %v406 = vld [vmem:[%s3 + $0x38] sm:$0xf]
      %v407 = vld [vmem:[%s3 + $0x3c] sm:$0xf]
      %v424 = vunpack.c.l.b16 %v392
      %v425 = vunpack.c.l.b16 %v393
      %v426 = vunpack.c.l.b16 %v394
      %v427 = vunpack.c.l.b16 %v395
      %v428 = vunpack.c.l.b16 %v396
      %v429 = vunpack.c.l.b16 %v397
      %v430 = vunpack.c.l.b16 %v398
      %v431 = vunpack.c.l.b16 %v399
      %v432 = vunpack.c.l.b16 %v400
      %v433 = vunpack.c.l.b16 %v401
      %v434 = vunpack.c.l.b16 %v402
      %v435 = vunpack.c.l.b16 %v403
      %v436 = vunpack.c.l.b16 %v404
      %v437 = vunpack.c.l.b16 %v405
      %v438 = vunpack.c.l.b16 %v406
      %v439 = vunpack.c.l.b16 %v407
      %v440 = vpack.c.b16 %v425, %v424
      %v441 = vpack.c.b16 %v427, %v426
      %v442 = vpack.c.b16 %v429, %v428
      %v443 = vpack.c.b16 %v431, %v430
      %v444 = vpack.c.b16 %v433, %v432
      %v445 = vpack.c.b16 %v435, %v434
      %v446 = vpack.c.b16 %v437, %v436
      %v447 = vpack.c.b16 %v439, %v438
      %456 = vmatprep.subr.bf16.mxu0 0
      %457 = vmatpush1.bf16.msra.mxu0 %v447
      %458 = vmatprep.subr.bf16.mxu0 0
      %459 = vmatpush1.bf16.msra.mxu0 %v446
      %460 = vmatprep.subr.bf16.mxu0 0
      %461 = vmatpush1.bf16.msra.mxu0 %v445
      %462 = vmatprep.subr.bf16.mxu0 0
      %463 = vmatpush1.bf16.msra.mxu0 %v444
      %464 = vmatprep.subr.bf16.mxu0 0
      %465 = vmatpush1.bf16.msra.mxu0 %v443
      %466 = vmatprep.subr.bf16.mxu0 0
      %467 = vmatpush1.bf16.msra.mxu0 %v442
      %468 = vmatprep.subr.bf16.mxu0 0
      %469 = vmatpush1.bf16.msra.mxu0 %v441
      %470 = vmatprep.subr.bf16.mxu0 0
      %471 = vmatpush1.bf16.msra.mxu0 %v440
      %472 = vmatprep.subr.bf16.mxu0 0
      %473 = vmatpush2.bf16.msra.mxu0 0
      %474 = vmatprep.subr.bf16.mxu0 0
      %475 = vmatpush2.bf16.msra.mxu0 0
      %476 = vmatprep.subr.bf16.mxu0 0
      %477 = vmatpush2.bf16.msra.mxu0 0
      %478 = vmatprep.subr.bf16.mxu0 0
      %479 = vmatpush2.bf16.msra.mxu0 0
      %480 = vmatprep.subr.bf16.mxu0 0
      %481 = vmatpush2.bf16.msra.mxu0 0
      %482 = vmatprep.subr.bf16.mxu0 0
      %483 = vmatpush2.bf16.msra.mxu0 0
      %484 = vmatprep.subr.bf16.mxu0 0
      %485 = vmatpush2.bf16.msra.mxu0 0
      %486 = vmatprep.subr.bf16.mxu0 0
      %487 = vmatpush2.bf16.msra.mxu0 0
      %488 = vmatprep.mubr.bf16.mxu0 0
      %489 = vmatmul.mubr.bf16.gmra.mxu0 %v388
      %v490 = vpop.f32.mrf.mxu0
      %v491 = vadd.f32 0.0, %v490
      %v492 = vpop.f32.mrf.mxu0
      %v493 = vpop.f32.mrf.mxu0
      %v494 = vadd.f32 0.0, %v493
      %v495 = vpop.f32.mrf.mxu0
      %496 = vmatprep.mubr.bf16.mxu0 0
      %497 = vmatmul.mubr.bf16.gmra.mxu0 %v389
      %v498 = vpop.f32.mrf.mxu0
      %v499 = vadd.f32 0.0, %v498
      %v500 = vpop.f32.mrf.mxu0
      %v501 = vpop.f32.mrf.mxu0
      %v502 = vadd.f32 0.0, %v501
      %v503 = vpop.f32.mrf.mxu0
      %504 = vmatprep.mubr.bf16.mxu0 0
      %505 = vmatmul.mubr.bf16.gmra.mxu0 %v390
      %v506 = vpop.f32.mrf.mxu0
      %v507 = vadd.f32 0.0, %v506
      %v508 = vpop.f32.mrf.mxu0
      %v509 = vpop.f32.mrf.mxu0
      %v510 = vadd.f32 0.0, %v509
      %v511 = vpop.f32.mrf.mxu0
      %512 = vmatprep.mubr.bf16.mxu0 0
      %513 = vmatmul.mubr.bf16.gmra.mxu0 %v391
      %v514 = vpop.f32.mrf.mxu0
      %v515 = vadd.f32 0.0, %v514
      %v516 = vpop.f32.mrf.mxu0
      %v517 = vpop.f32.mrf.mxu0
      %v518 = vadd.f32 0.0, %v517
      %v519 = vpop.f32.mrf.mxu0
      %520 = vdwg.mxu0
      %v529 = vunpack.c.l.b16 %v356
      %v530 = vunpack.c.l.b16 %v357
      %v531 = vunpack.c.l.b16 %v358
      %v532 = vunpack.c.l.b16 %v359
      %v533 = vunpack.c.l.b16 %v360
      %v534 = vunpack.c.l.b16 %v361
      %v535 = vunpack.c.l.b16 %v362
      %v536 = vunpack.c.l.b16 %v363
      %v537 = vpack.c.b16 %v530, %v529
      %v538 = vpack.c.b16 %v532, %v531
      %v539 = vpack.c.b16 %v534, %v533
      %v540 = vpack.c.b16 %v536, %v535
      %v561 = vunpack.c.l.b16 %v364
      %v562 = vunpack.c.l.b16 %v365
      %v563 = vunpack.c.l.b16 %v366
      %v564 = vunpack.c.l.b16 %v367
      %v565 = vunpack.c.l.b16 %v368
      %v566 = vunpack.c.l.b16 %v369
      %v567 = vunpack.c.l.b16 %v370
      %v568 = vunpack.c.l.b16 %v371
      %v569 = vunpack.c.l.b16 %v372
      %v570 = vunpack.c.l.b16 %v373
      %v571 = vunpack.c.l.b16 %v374
      %v572 = vunpack.c.l.b16 %v375
      %v573 = vunpack.c.l.b16 %v376
      %v574 = vunpack.c.l.b16 %v377
      %v575 = vunpack.c.l.b16 %v378
      %v576 = vunpack.c.l.b16 %v379
      %v577 = vpack.c.b16 %v562, %v561
      %v578 = vpack.c.b16 %v564, %v563
      %v579 = vpack.c.b16 %v566, %v565
      %v580 = vpack.c.b16 %v568, %v567
      %v581 = vpack.c.b16 %v570, %v569
      %v582 = vpack.c.b16 %v572, %v571
      %v583 = vpack.c.b16 %v574, %v573
      %v584 = vpack.c.b16 %v576, %v575
      %593 = vmatprep.subr.bf16.mxu0 0
      %594 = vmatpush1.bf16.msra.mxu0 %v584
      %595 = vmatprep.subr.bf16.mxu0 0
      %596 = vmatpush1.bf16.msra.mxu0 %v583
      %597 = vmatprep.subr.bf16.mxu0 0
      %598 = vmatpush1.bf16.msra.mxu0 %v582
      %599 = vmatprep.subr.bf16.mxu0 0
      %600 = vmatpush1.bf16.msra.mxu0 %v581
      %601 = vmatprep.subr.bf16.mxu0 0
      %602 = vmatpush1.bf16.msra.mxu0 %v580
      %603 = vmatprep.subr.bf16.mxu0 0
      %604 = vmatpush1.bf16.msra.mxu0 %v579
      %605 = vmatprep.subr.bf16.mxu0 0
      %606 = vmatpush1.bf16.msra.mxu0 %v578
      %607 = vmatprep.subr.bf16.mxu0 0
      %608 = vmatpush1.bf16.msra.mxu0 %v577
      %609 = vmatprep.subr.bf16.mxu0 0
      %610 = vmatpush2.bf16.msra.mxu0 0
      %611 = vmatprep.subr.bf16.mxu0 0
      %612 = vmatpush2.bf16.msra.mxu0 0
      %613 = vmatprep.subr.bf16.mxu0 0
      %614 = vmatpush2.bf16.msra.mxu0 0
      %615 = vmatprep.subr.bf16.mxu0 0
      %616 = vmatpush2.bf16.msra.mxu0 0
      %617 = vmatprep.subr.bf16.mxu0 0
      %618 = vmatpush2.bf16.msra.mxu0 0
      %619 = vmatprep.subr.bf16.mxu0 0
      %620 = vmatpush2.bf16.msra.mxu0 0
      %621 = vmatprep.subr.bf16.mxu0 0
      %622 = vmatpush2.bf16.msra.mxu0 0
      %623 = vmatprep.subr.bf16.mxu0 0
      %624 = vmatpush2.bf16.msra.mxu0 0
      %625 = vmatprep.mubr.bf16.mxu0 0
      %626 = vmatmul.mubr.bf16.gmra.mxu0 %v537
      %v627 = vpop.f32.mrf.mxu0
      %v628 = vadd.f32 %v491, %v627
      %v629 = vpop.f32.mrf.mxu0
      %v630 = vpop.f32.mrf.mxu0
      %v631 = vadd.f32 %v494, %v630
      %v632 = vpop.f32.mrf.mxu0
      %633 = vmatprep.mubr.bf16.mxu0 0
      %634 = vmatmul.mubr.bf16.gmra.mxu0 %v538
      %v635 = vpop.f32.mrf.mxu0
      %v636 = vadd.f32 %v499, %v635
      %v637 = vpop.f32.mrf.mxu0
      %v638 = vpop.f32.mrf.mxu0
      %v639 = vadd.f32 %v502, %v638
      %v640 = vpop.f32.mrf.mxu0
      %641 = vmatprep.mubr.bf16.mxu0 0
      %642 = vmatmul.mubr.bf16.gmra.mxu0 %v539
      %v643 = vpop.f32.mrf.mxu0
      %v644 = vadd.f32 %v507, %v643
      %v645 = vpop.f32.mrf.mxu0
      %v646 = vpop.f32.mrf.mxu0
      %v647 = vadd.f32 %v510, %v646
      %v648 = vpop.f32.mrf.mxu0
      %649 = vmatprep.mubr.bf16.mxu0 0
      %650 = vmatmul.mubr.bf16.gmra.mxu0 %v540
      %v651 = vpop.f32.mrf.mxu0
      %v652 = vadd.f32 %v515, %v651
      %v653 = vpop.f32.mrf.mxu0
      %v654 = vpop.f32.mrf.mxu0
      %v655 = vadd.f32 %v518, %v654
      %v656 = vpop.f32.mrf.mxu0
      %657 = vdwg.mxu0
      %v658 = vld [vmem:[#allocation2 + $0x1] sm:$0xff]
      %v659 = vld [vmem:[#allocation2 + $0x11] sm:$0xff]
      %v660 = vld [vmem:[#allocation2 + $0x21] sm:$0xff]
      %v661 = vld [vmem:[#allocation2 + $0x31] sm:$0xff]
      %v662 = vld [vmem:[#allocation2 + $0x41] sm:$0xff]
      %v663 = vld [vmem:[#allocation2 + $0x51] sm:$0xff]
      %v664 = vld [vmem:[#allocation2 + $0x61] sm:$0xff]
      %v665 = vld [vmem:[#allocation2 + $0x71] sm:$0xff]
      %v666 = vpack.c.bf16 %v659, %v658
      %v667 = vpack.c.bf16 %v661, %v660
      %v668 = vpack.c.bf16 %v663, %v662
      %v669 = vpack.c.bf16 %v665, %v664
      %s670 = scalar_lea.vmem %s3, 64
      %v671 = vld [vmem:[%s670] sm:$0xf]
      %v672 = vld [vmem:[%s670 + $0x4] sm:$0xf]
      %v673 = vld [vmem:[%s670 + $0x8] sm:$0xf]
      %v674 = vld [vmem:[%s670 + $0xc] sm:$0xf]
      %v675 = vld [vmem:[%s670 + $0x10] sm:$0xf]
      %v676 = vld [vmem:[%s670 + $0x14] sm:$0xf]
      %v677 = vld [vmem:[%s670 + $0x18] sm:$0xf]
      %v678 = vld [vmem:[%s670 + $0x1c] sm:$0xf]
      %v679 = vld [vmem:[%s670 + $0x20] sm:$0xf]
      %v680 = vld [vmem:[%s670 + $0x24] sm:$0xf]
      %v681 = vld [vmem:[%s670 + $0x28] sm:$0xf]
      %v682 = vld [vmem:[%s670 + $0x2c] sm:$0xf]
      %v683 = vld [vmem:[%s670 + $0x30] sm:$0xf]
      %v684 = vld [vmem:[%s670 + $0x34] sm:$0xf]
      %v685 = vld [vmem:[%s670 + $0x38] sm:$0xf]
      %v686 = vld [vmem:[%s670 + $0x3c] sm:$0xf]
      %v703 = vunpack.c.l.b16 %v671
      %v704 = vunpack.c.l.b16 %v672
      %v705 = vunpack.c.l.b16 %v673
      %v706 = vunpack.c.l.b16 %v674
      %v707 = vunpack.c.l.b16 %v675
      %v708 = vunpack.c.l.b16 %v676
      %v709 = vunpack.c.l.b16 %v677
      %v710 = vunpack.c.l.b16 %v678
      %v711 = vunpack.c.l.b16 %v679
      %v712 = vunpack.c.l.b16 %v680
      %v713 = vunpack.c.l.b16 %v681
      %v714 = vunpack.c.l.b16 %v682
      %v715 = vunpack.c.l.b16 %v683
      %v716 = vunpack.c.l.b16 %v684
      %v717 = vunpack.c.l.b16 %v685
      %v718 = vunpack.c.l.b16 %v686
      %v719 = vpack.c.b16 %v704, %v703
      %v720 = vpack.c.b16 %v706, %v705
      %v721 = vpack.c.b16 %v708, %v707
      %v722 = vpack.c.b16 %v710, %v709
      %v723 = vpack.c.b16 %v712, %v711
      %v724 = vpack.c.b16 %v714, %v713
      %v725 = vpack.c.b16 %v716, %v715
      %v726 = vpack.c.b16 %v718, %v717
      %735 = vmatprep.subr.bf16.mxu0 0
      %736 = vmatpush1.bf16.msra.mxu0 %v726
      %737 = vmatprep.subr.bf16.mxu0 0
      %738 = vmatpush1.bf16.msra.mxu0 %v725
      %739 = vmatprep.subr.bf16.mxu0 0
      %740 = vmatpush1.bf16.msra.mxu0 %v724
      %741 = vmatprep.subr.bf16.mxu0 0
      %742 = vmatpush1.bf16.msra.mxu0 %v723
      %743 = vmatprep.subr.bf16.mxu0 0
      %744 = vmatpush1.bf16.msra.mxu0 %v722
      %745 = vmatprep.subr.bf16.mxu0 0
      %746 = vmatpush1.bf16.msra.mxu0 %v721
      %747 = vmatprep.subr.bf16.mxu0 0
      %748 = vmatpush1.bf16.msra.mxu0 %v720
      %749 = vmatprep.subr.bf16.mxu0 0
      %750 = vmatpush1.bf16.msra.mxu0 %v719
      %751 = vmatprep.subr.bf16.mxu0 0
      %752 = vmatpush2.bf16.msra.mxu0 0
      %753 = vmatprep.subr.bf16.mxu0 0
      %754 = vmatpush2.bf16.msra.mxu0 0
      %755 = vmatprep.subr.bf16.mxu0 0
      %756 = vmatpush2.bf16.msra.mxu0 0
      %757 = vmatprep.subr.bf16.mxu0 0
      %758 = vmatpush2.bf16.msra.mxu0 0
      %759 = vmatprep.subr.bf16.mxu0 0
      %760 = vmatpush2.bf16.msra.mxu0 0
      %761 = vmatprep.subr.bf16.mxu0 0
      %762 = vmatpush2.bf16.msra.mxu0 0
      %763 = vmatprep.subr.bf16.mxu0 0
      %764 = vmatpush2.bf16.msra.mxu0 0
      %765 = vmatprep.subr.bf16.mxu0 0
      %766 = vmatpush2.bf16.msra.mxu0 0
      %767 = vmatprep.mubr.bf16.mxu0 0
      %768 = vmatmul.mubr.bf16.gmra.mxu0 %v666
      %v769 = vpop.f32.mrf.mxu0
      %v770 = vadd.f32 0.0, %v769
      %v771 = vpop.f32.mrf.mxu0
      %v772 = vpop.f32.mrf.mxu0
      %v773 = vadd.f32 0.0, %v772
      %v774 = vpop.f32.mrf.mxu0
      %775 = vmatprep.mubr.bf16.mxu0 0
      %776 = vmatmul.mubr.bf16.gmra.mxu0 %v667
      %v777 = vpop.f32.mrf.mxu0
      %v778 = vadd.f32 0.0, %v777
      %v779 = vpop.f32.mrf.mxu0
      %v780 = vpop.f32.mrf.mxu0
      %v781 = vadd.f32 0.0, %v780
      %v782 = vpop.f32.mrf.mxu0
      %783 = vmatprep.mubr.bf16.mxu0 0
      %784 = vmatmul.mubr.bf16.gmra.mxu0 %v668
      %v785 = vpop.f32.mrf.mxu0
      %v786 = vadd.f32 0.0, %v785
      %v787 = vpop.f32.mrf.mxu0
      %v788 = vpop.f32.mrf.mxu0
      %v789 = vadd.f32 0.0, %v788
      %v790 = vpop.f32.mrf.mxu0
      %791 = vmatprep.mubr.bf16.mxu0 0
      %792 = vmatmul.mubr.bf16.gmra.mxu0 %v669
      %v793 = vpop.f32.mrf.mxu0
      %v794 = vadd.f32 0.0, %v793
      %v795 = vpop.f32.mrf.mxu0
      %v796 = vpop.f32.mrf.mxu0
      %v797 = vadd.f32 0.0, %v796
      %v798 = vpop.f32.mrf.mxu0
      %799 = vdwg.mxu0
      %v800 = vadd.f32 %v628, %v770
      %v801 = vadd.f32 %v631, %v773
      %v802 = vadd.f32 %v636, %v778
      %v803 = vadd.f32 %v639, %v781
      %v804 = vadd.f32 %v644, %v786
      %v805 = vadd.f32 %v647, %v789
      %v806 = vadd.f32 %v652, %v794
      %v807 = vadd.f32 %v655, %v797
      %v808 = vld [vmem:[#allocation2 + $0x2] sm:$0xff]
      %v809 = vld [vmem:[#allocation2 + $0x12] sm:$0xff]
      %v810 = vld [vmem:[#allocation2 + $0x22] sm:$0xff]
      %v811 = vld [vmem:[#allocation2 + $0x32] sm:$0xff]
      %v812 = vld [vmem:[#allocation2 + $0x42] sm:$0xff]
      %v813 = vld [vmem:[#allocation2 + $0x52] sm:$0xff]
      %v814 = vld [vmem:[#allocation2 + $0x62] sm:$0xff]
      %v815 = vld [vmem:[#allocation2 + $0x72] sm:$0xff]
      %v816 = vpack.c.bf16 %v809, %v808
      %v817 = vpack.c.bf16 %v811, %v810
      %v818 = vpack.c.bf16 %v813, %v812
      %v819 = vpack.c.bf16 %v815, %v814
      %s820 = scalar_lea.vmem %s3, 128
      %v821 = vld [vmem:[%s820] sm:$0xf]
      %v822 = vld [vmem:[%s820 + $0x4] sm:$0xf]
      %v823 = vld [vmem:[%s820 + $0x8] sm:$0xf]
      %v824 = vld [vmem:[%s820 + $0xc] sm:$0xf]
      %v825 = vld [vmem:[%s820 + $0x10] sm:$0xf]
      %v826 = vld [vmem:[%s820 + $0x14] sm:$0xf]
      %v827 = vld [vmem:[%s820 + $0x18] sm:$0xf]
      %v828 = vld [vmem:[%s820 + $0x1c] sm:$0xf]
      %v829 = vld [vmem:[%s820 + $0x20] sm:$0xf]
      %v830 = vld [vmem:[%s820 + $0x24] sm:$0xf]
      %v831 = vld [vmem:[%s820 + $0x28] sm:$0xf]
      %v832 = vld [vmem:[%s820 + $0x2c] sm:$0xf]
      %v833 = vld [vmem:[%s820 + $0x30] sm:$0xf]
      %v834 = vld [vmem:[%s820 + $0x34] sm:$0xf]
      %v835 = vld [vmem:[%s820 + $0x38] sm:$0xf]
      %v836 = vld [vmem:[%s820 + $0x3c] sm:$0xf]
      %v853 = vunpack.c.l.b16 %v821
      %v854 = vunpack.c.l.b16 %v822
      %v855 = vunpack.c.l.b16 %v823
      %v856 = vunpack.c.l.b16 %v824
      %v857 = vunpack.c.l.b16 %v825
      %v858 = vunpack.c.l.b16 %v826
      %v859 = vunpack.c.l.b16 %v827
      %v860 = vunpack.c.l.b16 %v828
      %v861 = vunpack.c.l.b16 %v829
      %v862 = vunpack.c.l.b16 %v830
      %v863 = vunpack.c.l.b16 %v831
      %v864 = vunpack.c.l.b16 %v832
      %v865 = vunpack.c.l.b16 %v833
      %v866 = vunpack.c.l.b16 %v834
      %v867 = vunpack.c.l.b16 %v835
      %v868 = vunpack.c.l.b16 %v836
      %v869 = vpack.c.b16 %v854, %v853
      %v870 = vpack.c.b16 %v856, %v855
      %v871 = vpack.c.b16 %v858, %v857
      %v872 = vpack.c.b16 %v860, %v859
      %v873 = vpack.c.b16 %v862, %v861
      %v874 = vpack.c.b16 %v864, %v863
      %v875 = vpack.c.b16 %v866, %v865
      %v876 = vpack.c.b16 %v868, %v867
      %885 = vmatprep.subr.bf16.mxu0 0
      %886 = vmatpush1.bf16.msra.mxu0 %v876
      %887 = vmatprep.subr.bf16.mxu0 0
      %888 = vmatpush1.bf16.msra.mxu0 %v875
      %889 = vmatprep.subr.bf16.mxu0 0
      %890 = vmatpush1.bf16.msra.mxu0 %v874
      %891 = vmatprep.subr.bf16.mxu0 0
      %892 = vmatpush1.bf16.msra.mxu0 %v873
      %893 = vmatprep.subr.bf16.mxu0 0
      %894 = vmatpush1.bf16.msra.mxu0 %v872
      %895 = vmatprep.subr.bf16.mxu0 0
      %896 = vmatpush1.bf16.msra.mxu0 %v871
      %897 = vmatprep.subr.bf16.mxu0 0
      %898 = vmatpush1.bf16.msra.mxu0 %v870
      %899 = vmatprep.subr.bf16.mxu0 0
      %900 = vmatpush1.bf16.msra.mxu0 %v869
      %901 = vmatprep.subr.bf16.mxu0 0
      %902 = vmatpush2.bf16.msra.mxu0 0
      %903 = vmatprep.subr.bf16.mxu0 0
      %904 = vmatpush2.bf16.msra.mxu0 0
      %905 = vmatprep.subr.bf16.mxu0 0
      %906 = vmatpush2.bf16.msra.mxu0 0
      %907 = vmatprep.subr.bf16.mxu0 0
      %908 = vmatpush2.bf16.msra.mxu0 0
      %909 = vmatprep.subr.bf16.mxu0 0
      %910 = vmatpush2.bf16.msra.mxu0 0
      %911 = vmatprep.subr.bf16.mxu0 0
      %912 = vmatpush2.bf16.msra.mxu0 0
      %913 = vmatprep.subr.bf16.mxu0 0
      %914 = vmatpush2.bf16.msra.mxu0 0
      %915 = vmatprep.subr.bf16.mxu0 0
      %916 = vmatpush2.bf16.msra.mxu0 0
      %917 = vmatprep.mubr.bf16.mxu0 0
      %918 = vmatmul.mubr.bf16.gmra.mxu0 %v816
      %v919 = vpop.f32.mrf.mxu0
      %v920 = vadd.f32 0.0, %v919
      %v921 = vpop.f32.mrf.mxu0
      %v922 = vpop.f32.mrf.mxu0
      %v923 = vadd.f32 0.0, %v922
      %v924 = vpop.f32.mrf.mxu0
      %925 = vmatprep.mubr.bf16.mxu0 0
      %926 = vmatmul.mubr.bf16.gmra.mxu0 %v817
      %v927 = vpop.f32.mrf.mxu0
      %v928 = vadd.f32 0.0, %v927
      %v929 = vpop.f32.mrf.mxu0
      %v930 = vpop.f32.mrf.mxu0
      %v931 = vadd.f32 0.0, %v930
      %v932 = vpop.f32.mrf.mxu0
      %933 = vmatprep.mubr.bf16.mxu0 0
      %934 = vmatmul.mubr.bf16.gmra.mxu0 %v818
      %v935 = vpop.f32.mrf.mxu0
      %v936 = vadd.f32 0.0, %v935
      %v937 = vpop.f32.mrf.mxu0
      %v938 = vpop.f32.mrf.mxu0
      %v939 = vadd.f32 0.0, %v938
      %v940 = vpop.f32.mrf.mxu0
      %941 = vmatprep.mubr.bf16.mxu0 0
      %942 = vmatmul.mubr.bf16.gmra.mxu0 %v819
      %v943 = vpop.f32.mrf.mxu0
      %v944 = vadd.f32 0.0, %v943
      %v945 = vpop.f32.mrf.mxu0
      %v946 = vpop.f32.mrf.mxu0
      %v947 = vadd.f32 0.0, %v946
      %v948 = vpop.f32.mrf.mxu0
      %949 = vdwg.mxu0
      %v950 = vadd.f32 %v800, %v920
      %v951 = vadd.f32 %v801, %v923
      %v952 = vadd.f32 %v802, %v928
      %v953 = vadd.f32 %v803, %v931
      %v954 = vadd.f32 %v804, %v936
      %v955 = vadd.f32 %v805, %v939
      %v956 = vadd.f32 %v806, %v944
      %v957 = vadd.f32 %v807, %v947
      %v958 = vld [vmem:[%s339] sm:$0xff]
      %v959 = vld [vmem:[%s339 + $0x10] sm:$0xff]
      %v960 = vld [vmem:[%s339 + $0x20] sm:$0xff]
      %v961 = vld [vmem:[%s339 + $0x30] sm:$0xff]
      %v962 = vld [vmem:[%s339 + $0x40] sm:$0xff]
      %v963 = vld [vmem:[%s339 + $0x50] sm:$0xff]
      %v964 = vld [vmem:[%s339 + $0x60] sm:$0xff]
      %v965 = vld [vmem:[%s339 + $0x70] sm:$0xff]
      %v966 = vpack.c.bf16 %v959, %v958
      %v967 = vpack.c.bf16 %v961, %v960
      %v968 = vpack.c.bf16 %v963, %v962
      %v969 = vpack.c.bf16 %v965, %v964
      %s970 = scalar_lea.vmem %s3, 192
      %v971 = vld [vmem:[%s970] sm:$0xf]
      %v972 = vld [vmem:[%s970 + $0x4] sm:$0xf]
      %v973 = vld [vmem:[%s970 + $0x8] sm:$0xf]
      %v974 = vld [vmem:[%s970 + $0xc] sm:$0xf]
      %v975 = vld [vmem:[%s970 + $0x10] sm:$0xf]
      %v976 = vld [vmem:[%s970 + $0x14] sm:$0xf]
      %v977 = vld [vmem:[%s970 + $0x18] sm:$0xf]
      %v978 = vld [vmem:[%s970 + $0x1c] sm:$0xf]
      %v979 = vld [vmem:[%s970 + $0x20] sm:$0xf]
      %v980 = vld [vmem:[%s970 + $0x24] sm:$0xf]
      %v981 = vld [vmem:[%s970 + $0x28] sm:$0xf]
      %v982 = vld [vmem:[%s970 + $0x2c] sm:$0xf]
      %v983 = vld [vmem:[%s970 + $0x30] sm:$0xf]
      %v984 = vld [vmem:[%s970 + $0x34] sm:$0xf]
      %v985 = vld [vmem:[%s970 + $0x38] sm:$0xf]
      %v986 = vld [vmem:[%s970 + $0x3c] sm:$0xf]
      %v1003 = vunpack.c.l.b16 %v971
      %v1004 = vunpack.c.l.b16 %v972
      %v1005 = vunpack.c.l.b16 %v973
      %v1006 = vunpack.c.l.b16 %v974
      %v1007 = vunpack.c.l.b16 %v975
      %v1008 = vunpack.c.l.b16 %v976
      %v1009 = vunpack.c.l.b16 %v977
      %v1010 = vunpack.c.l.b16 %v978
      %v1011 = vunpack.c.l.b16 %v979
      %v1012 = vunpack.c.l.b16 %v980
      %v1013 = vunpack.c.l.b16 %v981
      %v1014 = vunpack.c.l.b16 %v982
      %v1015 = vunpack.c.l.b16 %v983
      %v1016 = vunpack.c.l.b16 %v984
      %v1017 = vunpack.c.l.b16 %v985
      %v1018 = vunpack.c.l.b16 %v986
      %v1019 = vpack.c.b16 %v1004, %v1003
      %v1020 = vpack.c.b16 %v1006, %v1005
      %v1021 = vpack.c.b16 %v1008, %v1007
      %v1022 = vpack.c.b16 %v1010, %v1009
      %v1023 = vpack.c.b16 %v1012, %v1011
      %v1024 = vpack.c.b16 %v1014, %v1013
      %v1025 = vpack.c.b16 %v1016, %v1015
      %v1026 = vpack.c.b16 %v1018, %v1017
      %1035 = vmatprep.subr.bf16.mxu0 0
      %1036 = vmatpush1.bf16.msra.mxu0 %v1026
      %1037 = vmatprep.subr.bf16.mxu0 0
      %1038 = vmatpush1.bf16.msra.mxu0 %v1025
      %1039 = vmatprep.subr.bf16.mxu0 0
      %1040 = vmatpush1.bf16.msra.mxu0 %v1024
      %1041 = vmatprep.subr.bf16.mxu0 0
      %1042 = vmatpush1.bf16.msra.mxu0 %v1023
      %1043 = vmatprep.subr.bf16.mxu0 0
      %1044 = vmatpush1.bf16.msra.mxu0 %v1022
      %1045 = vmatprep.subr.bf16.mxu0 0
      %1046 = vmatpush1.bf16.msra.mxu0 %v1021
      %1047 = vmatprep.subr.bf16.mxu0 0
      %1048 = vmatpush1.bf16.msra.mxu0 %v1020
      %1049 = vmatprep.subr.bf16.mxu0 0
      %1050 = vmatpush1.bf16.msra.mxu0 %v1019
      %1051 = vmatprep.subr.bf16.mxu0 0
      %1052 = vmatpush2.bf16.msra.mxu0 0
      %1053 = vmatprep.subr.bf16.mxu0 0
      %1054 = vmatpush2.bf16.msra.mxu0 0
      %1055 = vmatprep.subr.bf16.mxu0 0
      %1056 = vmatpush2.bf16.msra.mxu0 0
      %1057 = vmatprep.subr.bf16.mxu0 0
      %1058 = vmatpush2.bf16.msra.mxu0 0
      %1059 = vmatprep.subr.bf16.mxu0 0
      %1060 = vmatpush2.bf16.msra.mxu0 0
      %1061 = vmatprep.subr.bf16.mxu0 0
      %1062 = vmatpush2.bf16.msra.mxu0 0
      %1063 = vmatprep.subr.bf16.mxu0 0
      %1064 = vmatpush2.bf16.msra.mxu0 0
      %1065 = vmatprep.subr.bf16.mxu0 0
      %1066 = vmatpush2.bf16.msra.mxu0 0
      %1067 = vmatprep.mubr.bf16.mxu0 0
      %1068 = vmatmul.mubr.bf16.gmra.mxu0 %v966
      %v1069 = vpop.f32.mrf.mxu0
      %v1070 = vadd.f32 0.0, %v1069
      %v1071 = vpop.f32.mrf.mxu0
      %v1072 = vpop.f32.mrf.mxu0
      %v1073 = vadd.f32 0.0, %v1072
      %v1074 = vpop.f32.mrf.mxu0
      %1075 = vmatprep.mubr.bf16.mxu0 0
      %1076 = vmatmul.mubr.bf16.gmra.mxu0 %v967
      %v1077 = vpop.f32.mrf.mxu0
      %v1078 = vadd.f32 0.0, %v1077
      %v1079 = vpop.f32.mrf.mxu0
      %v1080 = vpop.f32.mrf.mxu0
      %v1081 = vadd.f32 0.0, %v1080
      %v1082 = vpop.f32.mrf.mxu0
      %1083 = vmatprep.mubr.bf16.mxu0 0
      %1084 = vmatmul.mubr.bf16.gmra.mxu0 %v968
      %v1085 = vpop.f32.mrf.mxu0
      %v1086 = vadd.f32 0.0, %v1085
      %v1087 = vpop.f32.mrf.mxu0
      %v1088 = vpop.f32.mrf.mxu0
      %v1089 = vadd.f32 0.0, %v1088
      %v1090 = vpop.f32.mrf.mxu0
      %1091 = vmatprep.mubr.bf16.mxu0 0
      %1092 = vmatmul.mubr.bf16.gmra.mxu0 %v969
      %v1093 = vpop.f32.mrf.mxu0
      %v1094 = vadd.f32 0.0, %v1093
      %v1095 = vpop.f32.mrf.mxu0
      %v1096 = vpop.f32.mrf.mxu0
      %v1097 = vadd.f32 0.0, %v1096
      %v1098 = vpop.f32.mrf.mxu0
      %1099 = vdwg.mxu0
      %v1100 = vadd.f32 %v950, %v1070
      %v1101 = vadd.f32 %v951, %v1073
      %v1102 = vadd.f32 %v952, %v1078
      %v1103 = vadd.f32 %v953, %v1081
      %v1104 = vadd.f32 %v954, %v1086
      %v1105 = vadd.f32 %v955, %v1089
      %v1106 = vadd.f32 %v956, %v1094
      %v1107 = vadd.f32 %v957, %v1097
      %v1108 = vld [vmem:[%s339 + $0x1] sm:$0xff]
      %v1109 = vld [vmem:[%s339 + $0x11] sm:$0xff]
      %v1110 = vld [vmem:[%s339 + $0x21] sm:$0xff]
      %v1111 = vld [vmem:[%s339 + $0x31] sm:$0xff]
      %v1112 = vld [vmem:[%s339 + $0x41] sm:$0xff]
      %v1113 = vld [vmem:[%s339 + $0x51] sm:$0xff]
      %v1114 = vld [vmem:[%s339 + $0x61] sm:$0xff]
      %v1115 = vld [vmem:[%s339 + $0x71] sm:$0xff]
      %v1116 = vpack.c.bf16 %v1109, %v1108
      %v1117 = vpack.c.bf16 %v1111, %v1110
      %v1118 = vpack.c.bf16 %v1113, %v1112
      %v1119 = vpack.c.bf16 %v1115, %v1114
      %s1120 = scalar_lea.vmem %s3, 256
      %v1121 = vld [vmem:[%s1120] sm:$0xf]
      %v1122 = vld [vmem:[%s1120 + $0x4] sm:$0xf]
      %v1123 = vld [vmem:[%s1120 + $0x8] sm:$0xf]
      %v1124 = vld [vmem:[%s1120 + $0xc] sm:$0xf]
      %v1125 = vld [vmem:[%s1120 + $0x10] sm:$0xf]
      %v1126 = vld [vmem:[%s1120 + $0x14] sm:$0xf]
      %v1127 = vld [vmem:[%s1120 + $0x18] sm:$0xf]
      %v1128 = vld [vmem:[%s1120 + $0x1c] sm:$0xf]
      %v1129 = vld [vmem:[%s1120 + $0x20] sm:$0xf]
      %v1130 = vld [vmem:[%s1120 + $0x24] sm:$0xf]
      %v1131 = vld [vmem:[%s1120 + $0x28] sm:$0xf]
      %v1132 = vld [vmem:[%s1120 + $0x2c] sm:$0xf]
      %v1133 = vld [vmem:[%s1120 + $0x30] sm:$0xf]
      %v1134 = vld [vmem:[%s1120 + $0x34] sm:$0xf]
      %v1135 = vld [vmem:[%s1120 + $0x38] sm:$0xf]
      %v1136 = vld [vmem:[%s1120 + $0x3c] sm:$0xf]
      %v1153 = vunpack.c.l.b16 %v1121
      %v1154 = vunpack.c.l.b16 %v1122
      %v1155 = vunpack.c.l.b16 %v1123
      %v1156 = vunpack.c.l.b16 %v1124
      %v1157 = vunpack.c.l.b16 %v1125
      %v1158 = vunpack.c.l.b16 %v1126
      %v1159 = vunpack.c.l.b16 %v1127
      %v1160 = vunpack.c.l.b16 %v1128
      %v1161 = vunpack.c.l.b16 %v1129
      %v1162 = vunpack.c.l.b16 %v1130
      %v1163 = vunpack.c.l.b16 %v1131
      %v1164 = vunpack.c.l.b16 %v1132
      %v1165 = vunpack.c.l.b16 %v1133
      %v1166 = vunpack.c.l.b16 %v1134
      %v1167 = vunpack.c.l.b16 %v1135
      %v1168 = vunpack.c.l.b16 %v1136
      %v1169 = vpack.c.b16 %v1154, %v1153
      %v1170 = vpack.c.b16 %v1156, %v1155
      %v1171 = vpack.c.b16 %v1158, %v1157
      %v1172 = vpack.c.b16 %v1160, %v1159
      %v1173 = vpack.c.b16 %v1162, %v1161
      %v1174 = vpack.c.b16 %v1164, %v1163
      %v1175 = vpack.c.b16 %v1166, %v1165
      %v1176 = vpack.c.b16 %v1168, %v1167
      %1185 = vmatprep.subr.bf16.mxu0 0
      %1186 = vmatpush1.bf16.msra.mxu0 %v1176
      %1187 = vmatprep.subr.bf16.mxu0 0
      %1188 = vmatpush1.bf16.msra.mxu0 %v1175
      %1189 = vmatprep.subr.bf16.mxu0 0
      %1190 = vmatpush1.bf16.msra.mxu0 %v1174
      %1191 = vmatprep.subr.bf16.mxu0 0
      %1192 = vmatpush1.bf16.msra.mxu0 %v1173
      %1193 = vmatprep.subr.bf16.mxu0 0
      %1194 = vmatpush1.bf16.msra.mxu0 %v1172
      %1195 = vmatprep.subr.bf16.mxu0 0
      %1196 = vmatpush1.bf16.msra.mxu0 %v1171
      %1197 = vmatprep.subr.bf16.mxu0 0
      %1198 = vmatpush1.bf16.msra.mxu0 %v1170
      %1199 = vmatprep.subr.bf16.mxu0 0
      %1200 = vmatpush1.bf16.msra.mxu0 %v1169
      %1201 = vmatprep.subr.bf16.mxu0 0
      %1202 = vmatpush2.bf16.msra.mxu0 0
      %1203 = vmatprep.subr.bf16.mxu0 0
      %1204 = vmatpush2.bf16.msra.mxu0 0
      %1205 = vmatprep.subr.bf16.mxu0 0
      %1206 = vmatpush2.bf16.msra.mxu0 0
      %1207 = vmatprep.subr.bf16.mxu0 0
      %1208 = vmatpush2.bf16.msra.mxu0 0
      %1209 = vmatprep.subr.bf16.mxu0 0
      %1210 = vmatpush2.bf16.msra.mxu0 0
      %1211 = vmatprep.subr.bf16.mxu0 0
      %1212 = vmatpush2.bf16.msra.mxu0 0
      %1213 = vmatprep.subr.bf16.mxu0 0
      %1214 = vmatpush2.bf16.msra.mxu0 0
      %1215 = vmatprep.subr.bf16.mxu0 0
      %1216 = vmatpush2.bf16.msra.mxu0 0
      %1217 = vmatprep.mubr.bf16.mxu0 0
      %1218 = vmatmul.mubr.bf16.gmra.mxu0 %v1116
      %v1219 = vpop.f32.mrf.mxu0
      %v1220 = vadd.f32 0.0, %v1219
      %v1221 = vpop.f32.mrf.mxu0
      %v1222 = vpop.f32.mrf.mxu0
      %v1223 = vadd.f32 0.0, %v1222
      %v1224 = vpop.f32.mrf.mxu0
      %1225 = vmatprep.mubr.bf16.mxu0 0
      %1226 = vmatmul.mubr.bf16.gmra.mxu0 %v1117
      %v1227 = vpop.f32.mrf.mxu0
      %v1228 = vadd.f32 0.0, %v1227
      %v1229 = vpop.f32.mrf.mxu0
      %v1230 = vpop.f32.mrf.mxu0
      %v1231 = vadd.f32 0.0, %v1230
      %v1232 = vpop.f32.mrf.mxu0
      %1233 = vmatprep.mubr.bf16.mxu0 0
      %1234 = vmatmul.mubr.bf16.gmra.mxu0 %v1118
      %v1235 = vpop.f32.mrf.mxu0
      %v1236 = vadd.f32 0.0, %v1235
      %v1237 = vpop.f32.mrf.mxu0
      %v1238 = vpop.f32.mrf.mxu0
      %v1239 = vadd.f32 0.0, %v1238
      %v1240 = vpop.f32.mrf.mxu0
      %1241 = vmatprep.mubr.bf16.mxu0 0
      %1242 = vmatmul.mubr.bf16.gmra.mxu0 %v1119
      %v1243 = vpop.f32.mrf.mxu0
      %v1244 = vadd.f32 0.0, %v1243
      %v1245 = vpop.f32.mrf.mxu0
      %v1246 = vpop.f32.mrf.mxu0
      %v1247 = vadd.f32 0.0, %v1246
      %v1248 = vpop.f32.mrf.mxu0
      %1249 = vdwg.mxu0
      %v1250 = vadd.f32 %v1100, %v1220
      %v1251 = vadd.f32 %v1101, %v1223
      %v1252 = vadd.f32 %v1102, %v1228
      %v1253 = vadd.f32 %v1103, %v1231
      %v1254 = vadd.f32 %v1104, %v1236
      %v1255 = vadd.f32 %v1105, %v1239
      %v1256 = vadd.f32 %v1106, %v1244
      %v1257 = vadd.f32 %v1107, %v1247
      %v1258 = vld [vmem:[%s339 + $0x2] sm:$0xff]
      %v1259 = vld [vmem:[%s339 + $0x12] sm:$0xff]
      %v1260 = vld [vmem:[%s339 + $0x22] sm:$0xff]
      %v1261 = vld [vmem:[%s339 + $0x32] sm:$0xff]
      %v1262 = vld [vmem:[%s339 + $0x42] sm:$0xff]
      %v1263 = vld [vmem:[%s339 + $0x52] sm:$0xff]
      %v1264 = vld [vmem:[%s339 + $0x62] sm:$0xff]
      %v1265 = vld [vmem:[%s339 + $0x72] sm:$0xff]
      %v1266 = vpack.c.bf16 %v1259, %v1258
      %v1267 = vpack.c.bf16 %v1261, %v1260
      %v1268 = vpack.c.bf16 %v1263, %v1262
      %v1269 = vpack.c.bf16 %v1265, %v1264
      %s1270 = scalar_lea.vmem %s3, 320
      %v1271 = vld [vmem:[%s1270] sm:$0xf]
      %v1272 = vld [vmem:[%s1270 + $0x4] sm:$0xf]
      %v1273 = vld [vmem:[%s1270 + $0x8] sm:$0xf]
      %v1274 = vld [vmem:[%s1270 + $0xc] sm:$0xf]
      %v1275 = vld [vmem:[%s1270 + $0x10] sm:$0xf]
      %v1276 = vld [vmem:[%s1270 + $0x14] sm:$0xf]
      %v1277 = vld [vmem:[%s1270 + $0x18] sm:$0xf]
      %v1278 = vld [vmem:[%s1270 + $0x1c] sm:$0xf]
      %v1279 = vld [vmem:[%s1270 + $0x20] sm:$0xf]
      %v1280 = vld [vmem:[%s1270 + $0x24] sm:$0xf]
      %v1281 = vld [vmem:[%s1270 + $0x28] sm:$0xf]
      %v1282 = vld [vmem:[%s1270 + $0x2c] sm:$0xf]
      %v1283 = vld [vmem:[%s1270 + $0x30] sm:$0xf]
      %v1284 = vld [vmem:[%s1270 + $0x34] sm:$0xf]
      %v1285 = vld [vmem:[%s1270 + $0x38] sm:$0xf]
      %v1286 = vld [vmem:[%s1270 + $0x3c] sm:$0xf]
      %v1303 = vunpack.c.l.b16 %v1271
      %v1304 = vunpack.c.l.b16 %v1272
      %v1305 = vunpack.c.l.b16 %v1273
      %v1306 = vunpack.c.l.b16 %v1274
      %v1307 = vunpack.c.l.b16 %v1275
      %v1308 = vunpack.c.l.b16 %v1276
      %v1309 = vunpack.c.l.b16 %v1277
      %v1310 = vunpack.c.l.b16 %v1278
      %v1311 = vunpack.c.l.b16 %v1279
      %v1312 = vunpack.c.l.b16 %v1280
      %v1313 = vunpack.c.l.b16 %v1281
      %v1314 = vunpack.c.l.b16 %v1282
      %v1315 = vunpack.c.l.b16 %v1283
      %v1316 = vunpack.c.l.b16 %v1284
      %v1317 = vunpack.c.l.b16 %v1285
      %v1318 = vunpack.c.l.b16 %v1286
      %v1319 = vpack.c.b16 %v1304, %v1303
      %v1320 = vpack.c.b16 %v1306, %v1305
      %v1321 = vpack.c.b16 %v1308, %v1307
      %v1322 = vpack.c.b16 %v1310, %v1309
      %v1323 = vpack.c.b16 %v1312, %v1311
      %v1324 = vpack.c.b16 %v1314, %v1313
      %v1325 = vpack.c.b16 %v1316, %v1315
      %v1326 = vpack.c.b16 %v1318, %v1317
      %1335 = vmatprep.subr.bf16.mxu0 0
      %1336 = vmatpush1.bf16.msra.mxu0 %v1326
      %1337 = vmatprep.subr.bf16.mxu0 0
      %1338 = vmatpush1.bf16.msra.mxu0 %v1325
      %1339 = vmatprep.subr.bf16.mxu0 0
      %1340 = vmatpush1.bf16.msra.mxu0 %v1324
      %1341 = vmatprep.subr.bf16.mxu0 0
      %1342 = vmatpush1.bf16.msra.mxu0 %v1323
      %1343 = vmatprep.subr.bf16.mxu0 0
      %1344 = vmatpush1.bf16.msra.mxu0 %v1322
      %1345 = vmatprep.subr.bf16.mxu0 0
      %1346 = vmatpush1.bf16.msra.mxu0 %v1321
      %1347 = vmatprep.subr.bf16.mxu0 0
      %1348 = vmatpush1.bf16.msra.mxu0 %v1320
      %1349 = vmatprep.subr.bf16.mxu0 0
      %1350 = vmatpush1.bf16.msra.mxu0 %v1319
      %1351 = vmatprep.subr.bf16.mxu0 0
      %1352 = vmatpush2.bf16.msra.mxu0 0
      %1353 = vmatprep.subr.bf16.mxu0 0
      %1354 = vmatpush2.bf16.msra.mxu0 0
      %1355 = vmatprep.subr.bf16.mxu0 0
      %1356 = vmatpush2.bf16.msra.mxu0 0
      %1357 = vmatprep.subr.bf16.mxu0 0
      %1358 = vmatpush2.bf16.msra.mxu0 0
      %1359 = vmatprep.subr.bf16.mxu0 0
      %1360 = vmatpush2.bf16.msra.mxu0 0
      %1361 = vmatprep.subr.bf16.mxu0 0
      %1362 = vmatpush2.bf16.msra.mxu0 0
      %1363 = vmatprep.subr.bf16.mxu0 0
      %1364 = vmatpush2.bf16.msra.mxu0 0
      %1365 = vmatprep.subr.bf16.mxu0 0
      %1366 = vmatpush2.bf16.msra.mxu0 0
      %1367 = vmatprep.mubr.bf16.mxu0 0
      %1368 = vmatmul.mubr.bf16.gmra.mxu0 %v1266
      %v1369 = vpop.f32.mrf.mxu0
      %v1370 = vadd.f32 0.0, %v1369
      %v1371 = vpop.f32.mrf.mxu0
      %v1372 = vpop.f32.mrf.mxu0
      %v1373 = vadd.f32 0.0, %v1372
      %v1374 = vpop.f32.mrf.mxu0
      %1375 = vmatprep.mubr.bf16.mxu0 0
      %1376 = vmatmul.mubr.bf16.gmra.mxu0 %v1267
      %v1377 = vpop.f32.mrf.mxu0
      %v1378 = vadd.f32 0.0, %v1377
      %v1379 = vpop.f32.mrf.mxu0
      %v1380 = vpop.f32.mrf.mxu0
      %v1381 = vadd.f32 0.0, %v1380
      %v1382 = vpop.f32.mrf.mxu0
      %1383 = vmatprep.mubr.bf16.mxu0 0
      %1384 = vmatmul.mubr.bf16.gmra.mxu0 %v1268
      %v1385 = vpop.f32.mrf.mxu0
      %v1386 = vadd.f32 0.0, %v1385
      %v1387 = vpop.f32.mrf.mxu0
      %v1388 = vpop.f32.mrf.mxu0
      %v1389 = vadd.f32 0.0, %v1388
      %v1390 = vpop.f32.mrf.mxu0
      %1391 = vmatprep.mubr.bf16.mxu0 0
      %1392 = vmatmul.mubr.bf16.gmra.mxu0 %v1269
      %v1393 = vpop.f32.mrf.mxu0
      %v1394 = vadd.f32 0.0, %v1393
      %v1395 = vpop.f32.mrf.mxu0
      %v1396 = vpop.f32.mrf.mxu0
      %v1397 = vadd.f32 0.0, %v1396
      %v1398 = vpop.f32.mrf.mxu0
      %1399 = vdwg.mxu0
      %v1400 = vadd.f32 %v1250, %v1370
      %v1401 = vadd.f32 %v1251, %v1373
      %v1402 = vadd.f32 %v1252, %v1378
      %v1403 = vadd.f32 %v1253, %v1381
      %v1404 = vadd.f32 %v1254, %v1386
      %v1405 = vadd.f32 %v1255, %v1389
      %v1406 = vadd.f32 %v1256, %v1394
      %v1407 = vadd.f32 %v1257, %v1397
      %s1408 = scalar_lea.vmem [#allocation2], 32
      %v1409 = vld [vmem:[%s1408] sm:$0xff]
      %v1410 = vld [vmem:[%s1408 + $0x10] sm:$0xff]
      %v1411 = vld [vmem:[%s1408 + $0x20] sm:$0xff]
      %v1412 = vld [vmem:[%s1408 + $0x30] sm:$0xff]
      %v1413 = vld [vmem:[%s1408 + $0x40] sm:$0xff]
      %v1414 = vld [vmem:[%s1408 + $0x50] sm:$0xff]
      %v1415 = vld [vmem:[%s1408 + $0x60] sm:$0xff]
      %v1416 = vld [vmem:[%s1408 + $0x70] sm:$0xff]
      %v1417 = vpack.c.bf16 %v1410, %v1409
      %v1418 = vpack.c.bf16 %v1412, %v1411
      %v1419 = vpack.c.bf16 %v1414, %v1413
      %v1420 = vpack.c.bf16 %v1416, %v1415
      %s1421 = scalar_lea.vmem %s3, 384
      %v1422 = vld [vmem:[%s1421] sm:$0xf]
      %v1423 = vld [vmem:[%s1421 + $0x4] sm:$0xf]
      %v1424 = vld [vmem:[%s1421 + $0x8] sm:$0xf]
      %v1425 = vld [vmem:[%s1421 + $0xc] sm:$0xf]
      %v1426 = vld [vmem:[%s1421 + $0x10] sm:$0xf]
      %v1427 = vld [vmem:[%s1421 + $0x14] sm:$0xf]
      %v1428 = vld [vmem:[%s1421 + $0x18] sm:$0xf]
      %v1429 = vld [vmem:[%s1421 + $0x1c] sm:$0xf]
      %v1430 = vld [vmem:[%s1421 + $0x20] sm:$0xf]
      %v1431 = vld [vmem:[%s1421 + $0x24] sm:$0xf]
      %v1432 = vld [vmem:[%s1421 + $0x28] sm:$0xf]
      %v1433 = vld [vmem:[%s1421 + $0x2c] sm:$0xf]
      %v1434 = vld [vmem:[%s1421 + $0x30] sm:$0xf]
      %v1435 = vld [vmem:[%s1421 + $0x34] sm:$0xf]
      %v1436 = vld [vmem:[%s1421 + $0x38] sm:$0xf]
      %v1437 = vld [vmem:[%s1421 + $0x3c] sm:$0xf]
      %v1454 = vunpack.c.l.b16 %v1422
      %v1455 = vunpack.c.l.b16 %v1423
      %v1456 = vunpack.c.l.b16 %v1424
      %v1457 = vunpack.c.l.b16 %v1425
      %v1458 = vunpack.c.l.b16 %v1426
      %v1459 = vunpack.c.l.b16 %v1427
      %v1460 = vunpack.c.l.b16 %v1428
      %v1461 = vunpack.c.l.b16 %v1429
      %v1462 = vunpack.c.l.b16 %v1430
      %v1463 = vunpack.c.l.b16 %v1431
      %v1464 = vunpack.c.l.b16 %v1432
      %v1465 = vunpack.c.l.b16 %v1433
      %v1466 = vunpack.c.l.b16 %v1434
      %v1467 = vunpack.c.l.b16 %v1435
      %v1468 = vunpack.c.l.b16 %v1436
      %v1469 = vunpack.c.l.b16 %v1437
      %v1470 = vpack.c.b16 %v1455, %v1454
      %v1471 = vpack.c.b16 %v1457, %v1456
      %v1472 = vpack.c.b16 %v1459, %v1458
      %v1473 = vpack.c.b16 %v1461, %v1460
      %v1474 = vpack.c.b16 %v1463, %v1462
      %v1475 = vpack.c.b16 %v1465, %v1464
      %v1476 = vpack.c.b16 %v1467, %v1466
      %v1477 = vpack.c.b16 %v1469, %v1468
      %1486 = vmatprep.subr.bf16.mxu0 0
      %1487 = vmatpush1.bf16.msra.mxu0 %v1477
      %1488 = vmatprep.subr.bf16.mxu0 0
      %1489 = vmatpush1.bf16.msra.mxu0 %v1476
      %1490 = vmatprep.subr.bf16.mxu0 0
      %1491 = vmatpush1.bf16.msra.mxu0 %v1475
      %1492 = vmatprep.subr.bf16.mxu0 0
      %1493 = vmatpush1.bf16.msra.mxu0 %v1474
      %1494 = vmatprep.subr.bf16.mxu0 0
      %1495 = vmatpush1.bf16.msra.mxu0 %v1473
      %1496 = vmatprep.subr.bf16.mxu0 0
      %1497 = vmatpush1.bf16.msra.mxu0 %v1472
      %1498 = vmatprep.subr.bf16.mxu0 0
      %1499 = vmatpush1.bf16.msra.mxu0 %v1471
      %1500 = vmatprep.subr.bf16.mxu0 0
      %1501 = vmatpush1.bf16.msra.mxu0 %v1470
      %1502 = vmatprep.subr.bf16.mxu0 0
      %1503 = vmatpush2.bf16.msra.mxu0 0
      %1504 = vmatprep.subr.bf16.mxu0 0
      %1505 = vmatpush2.bf16.msra.mxu0 0
      %1506 = vmatprep.subr.bf16.mxu0 0
      %1507 = vmatpush2.bf16.msra.mxu0 0
      %1508 = vmatprep.subr.bf16.mxu0 0
      %1509 = vmatpush2.bf16.msra.mxu0 0
      %1510 = vmatprep.subr.bf16.mxu0 0
      %1511 = vmatpush2.bf16.msra.mxu0 0
      %1512 = vmatprep.subr.bf16.mxu0 0
      %1513 = vmatpush2.bf16.msra.mxu0 0
      %1514 = vmatprep.subr.bf16.mxu0 0
      %1515 = vmatpush2.bf16.msra.mxu0 0
      %1516 = vmatprep.subr.bf16.mxu0 0
      %1517 = vmatpush2.bf16.msra.mxu0 0
      %1518 = vmatprep.mubr.bf16.mxu0 0
      %1519 = vmatmul.mubr.bf16.gmra.mxu0 %v1417
      %v1520 = vpop.f32.mrf.mxu0
      %v1521 = vadd.f32 0.0, %v1520
      %v1522 = vpop.f32.mrf.mxu0
      %v1523 = vpop.f32.mrf.mxu0
      %v1524 = vadd.f32 0.0, %v1523
      %v1525 = vpop.f32.mrf.mxu0
      %1526 = vmatprep.mubr.bf16.mxu0 0
      %1527 = vmatmul.mubr.bf16.gmra.mxu0 %v1418
      %v1528 = vpop.f32.mrf.mxu0
      %v1529 = vadd.f32 0.0, %v1528
      %v1530 = vpop.f32.mrf.mxu0
      %v1531 = vpop.f32.mrf.mxu0
      %v1532 = vadd.f32 0.0, %v1531
      %v1533 = vpop.f32.mrf.mxu0
      %1534 = vmatprep.mubr.bf16.mxu0 0
      %1535 = vmatmul.mubr.bf16.gmra.mxu0 %v1419
      %v1536 = vpop.f32.mrf.mxu0
      %v1537 = vadd.f32 0.0, %v1536
      %v1538 = vpop.f32.mrf.mxu0
      %v1539 = vpop.f32.mrf.mxu0
      %v1540 = vadd.f32 0.0, %v1539
      %v1541 = vpop.f32.mrf.mxu0
      %1542 = vmatprep.mubr.bf16.mxu0 0
      %1543 = vmatmul.mubr.bf16.gmra.mxu0 %v1420
      %v1544 = vpop.f32.mrf.mxu0
      %v1545 = vadd.f32 0.0, %v1544
      %v1546 = vpop.f32.mrf.mxu0
      %v1547 = vpop.f32.mrf.mxu0
      %v1548 = vadd.f32 0.0, %v1547
      %v1549 = vpop.f32.mrf.mxu0
      %1550 = vdwg.mxu0
      %v1551 = vadd.f32 %v1400, %v1521
      %v1552 = vadd.f32 %v1401, %v1524
      %v1553 = vadd.f32 %v1402, %v1529
      %v1554 = vadd.f32 %v1403, %v1532
      %v1555 = vadd.f32 %v1404, %v1537
      %v1556 = vadd.f32 %v1405, %v1540
      %v1557 = vadd.f32 %v1406, %v1545
      %v1558 = vadd.f32 %v1407, %v1548
      %v1559 = vld [vmem:[%s1408 + $0x1] sm:$0xff]
      %v1560 = vld [vmem:[%s1408 + $0x11] sm:$0xff]
      %v1561 = vld [vmem:[%s1408 + $0x21] sm:$0xff]
      %v1562 = vld [vmem:[%s1408 + $0x31] sm:$0xff]
      %v1563 = vld [vmem:[%s1408 + $0x41] sm:$0xff]
      %v1564 = vld [vmem:[%s1408 + $0x51] sm:$0xff]
      %v1565 = vld [vmem:[%s1408 + $0x61] sm:$0xff]
      %v1566 = vld [vmem:[%s1408 + $0x71] sm:$0xff]
      %v1567 = vpack.c.bf16 %v1560, %v1559
      %v1568 = vpack.c.bf16 %v1562, %v1561
      %v1569 = vpack.c.bf16 %v1564, %v1563
      %v1570 = vpack.c.bf16 %v1566, %v1565
      %s1571 = scalar_lea.vmem %s3, 448
      %v1572 = vld [vmem:[%s1571] sm:$0xf]
      %v1573 = vld [vmem:[%s1571 + $0x4] sm:$0xf]
      %v1574 = vld [vmem:[%s1571 + $0x8] sm:$0xf]
      %v1575 = vld [vmem:[%s1571 + $0xc] sm:$0xf]
      %v1576 = vld [vmem:[%s1571 + $0x10] sm:$0xf]
      %v1577 = vld [vmem:[%s1571 + $0x14] sm:$0xf]
      %v1578 = vld [vmem:[%s1571 + $0x18] sm:$0xf]
      %v1579 = vld [vmem:[%s1571 + $0x1c] sm:$0xf]
      %v1580 = vld [vmem:[%s1571 + $0x20] sm:$0xf]
      %v1581 = vld [vmem:[%s1571 + $0x24] sm:$0xf]
      %v1582 = vld [vmem:[%s1571 + $0x28] sm:$0xf]
      %v1583 = vld [vmem:[%s1571 + $0x2c] sm:$0xf]
      %v1584 = vld [vmem:[%s1571 + $0x30] sm:$0xf]
      %v1585 = vld [vmem:[%s1571 + $0x34] sm:$0xf]
      %v1586 = vld [vmem:[%s1571 + $0x38] sm:$0xf]
      %v1587 = vld [vmem:[%s1571 + $0x3c] sm:$0xf]
      %v1604 = vunpack.c.l.b16 %v1572
      %v1605 = vunpack.c.l.b16 %v1573
      %v1606 = vunpack.c.l.b16 %v1574
      %v1607 = vunpack.c.l.b16 %v1575
      %v1608 = vunpack.c.l.b16 %v1576
      %v1609 = vunpack.c.l.b16 %v1577
      %v1610 = vunpack.c.l.b16 %v1578
      %v1611 = vunpack.c.l.b16 %v1579
      %v1612 = vunpack.c.l.b16 %v1580
      %v1613 = vunpack.c.l.b16 %v1581
      %v1614 = vunpack.c.l.b16 %v1582
      %v1615 = vunpack.c.l.b16 %v1583
      %v1616 = vunpack.c.l.b16 %v1584
      %v1617 = vunpack.c.l.b16 %v1585
      %v1618 = vunpack.c.l.b16 %v1586
      %v1619 = vunpack.c.l.b16 %v1587
      %v1620 = vpack.c.b16 %v1605, %v1604
      %v1621 = vpack.c.b16 %v1607, %v1606
      %v1622 = vpack.c.b16 %v1609, %v1608
      %v1623 = vpack.c.b16 %v1611, %v1610
      %v1624 = vpack.c.b16 %v1613, %v1612
      %v1625 = vpack.c.b16 %v1615, %v1614
      %v1626 = vpack.c.b16 %v1617, %v1616
      %v1627 = vpack.c.b16 %v1619, %v1618
      %1636 = vmatprep.subr.bf16.mxu0 0
      %1637 = vmatpush1.bf16.msra.mxu0 %v1627
      %1638 = vmatprep.subr.bf16.mxu0 0
      %1639 = vmatpush1.bf16.msra.mxu0 %v1626
      %1640 = vmatprep.subr.bf16.mxu0 0
      %1641 = vmatpush1.bf16.msra.mxu0 %v1625
      %1642 = vmatprep.subr.bf16.mxu0 0
      %1643 = vmatpush1.bf16.msra.mxu0 %v1624
      %1644 = vmatprep.subr.bf16.mxu0 0
      %1645 = vmatpush1.bf16.msra.mxu0 %v1623
      %1646 = vmatprep.subr.bf16.mxu0 0
      %1647 = vmatpush1.bf16.msra.mxu0 %v1622
      %1648 = vmatprep.subr.bf16.mxu0 0
      %1649 = vmatpush1.bf16.msra.mxu0 %v1621
      %1650 = vmatprep.subr.bf16.mxu0 0
      %1651 = vmatpush1.bf16.msra.mxu0 %v1620
      %1652 = vmatprep.subr.bf16.mxu0 0
      %1653 = vmatpush2.bf16.msra.mxu0 0
      %1654 = vmatprep.subr.bf16.mxu0 0
      %1655 = vmatpush2.bf16.msra.mxu0 0
      %1656 = vmatprep.subr.bf16.mxu0 0
      %1657 = vmatpush2.bf16.msra.mxu0 0
      %1658 = vmatprep.subr.bf16.mxu0 0
      %1659 = vmatpush2.bf16.msra.mxu0 0
      %1660 = vmatprep.subr.bf16.mxu0 0
      %1661 = vmatpush2.bf16.msra.mxu0 0
      %1662 = vmatprep.subr.bf16.mxu0 0
      %1663 = vmatpush2.bf16.msra.mxu0 0
      %1664 = vmatprep.subr.bf16.mxu0 0
      %1665 = vmatpush2.bf16.msra.mxu0 0
      %1666 = vmatprep.subr.bf16.mxu0 0
      %1667 = vmatpush2.bf16.msra.mxu0 0
      %1668 = vmatprep.mubr.bf16.mxu0 0
      %1669 = vmatmul.mubr.bf16.gmra.mxu0 %v1567
      %v1670 = vpop.f32.mrf.mxu0
      %v1671 = vadd.f32 0.0, %v1670
      %v1672 = vpop.f32.mrf.mxu0
      %v1673 = vpop.f32.mrf.mxu0
      %v1674 = vadd.f32 0.0, %v1673
      %v1675 = vpop.f32.mrf.mxu0
      %1676 = vmatprep.mubr.bf16.mxu0 0
      %1677 = vmatmul.mubr.bf16.gmra.mxu0 %v1568
      %v1678 = vpop.f32.mrf.mxu0
      %v1679 = vadd.f32 0.0, %v1678
      %v1680 = vpop.f32.mrf.mxu0
      %v1681 = vpop.f32.mrf.mxu0
      %v1682 = vadd.f32 0.0, %v1681
      %v1683 = vpop.f32.mrf.mxu0
      %1684 = vmatprep.mubr.bf16.mxu0 0
      %1685 = vmatmul.mubr.bf16.gmra.mxu0 %v1569
      %v1686 = vpop.f32.mrf.mxu0
      %v1687 = vadd.f32 0.0, %v1686
      %v1688 = vpop.f32.mrf.mxu0
      %v1689 = vpop.f32.mrf.mxu0
      %v1690 = vadd.f32 0.0, %v1689
      %v1691 = vpop.f32.mrf.mxu0
      %1692 = vmatprep.mubr.bf16.mxu0 0
      %1693 = vmatmul.mubr.bf16.gmra.mxu0 %v1570
      %v1694 = vpop.f32.mrf.mxu0
      %v1695 = vadd.f32 0.0, %v1694
      %v1696 = vpop.f32.mrf.mxu0
      %v1697 = vpop.f32.mrf.mxu0
      %v1698 = vadd.f32 0.0, %v1697
      %v1699 = vpop.f32.mrf.mxu0
      %1700 = vdwg.mxu0
      %v1701 = vadd.f32 %v1551, %v1671
      %v1702 = vadd.f32 %v1552, %v1674
      %v1703 = vadd.f32 %v1553, %v1679
      %v1704 = vadd.f32 %v1554, %v1682
      %v1705 = vadd.f32 %v1555, %v1687
      %v1706 = vadd.f32 %v1556, %v1690
      %v1707 = vadd.f32 %v1557, %v1695
      %v1708 = vadd.f32 %v1558, %v1698
      %v1709 = vld [vmem:[%s1408 + $0x2] sm:$0xff]
      %v1710 = vld [vmem:[%s1408 + $0x12] sm:$0xff]
      %v1711 = vld [vmem:[%s1408 + $0x22] sm:$0xff]
      %v1712 = vld [vmem:[%s1408 + $0x32] sm:$0xff]
      %v1713 = vld [vmem:[%s1408 + $0x42] sm:$0xff]
      %v1714 = vld [vmem:[%s1408 + $0x52] sm:$0xff]
      %v1715 = vld [vmem:[%s1408 + $0x62] sm:$0xff]
      %v1716 = vld [vmem:[%s1408 + $0x72] sm:$0xff]
      %v1717 = vpack.c.bf16 %v1710, %v1709
      %v1718 = vpack.c.bf16 %v1712, %v1711
      %v1719 = vpack.c.bf16 %v1714, %v1713
      %v1720 = vpack.c.bf16 %v1716, %v1715
      %s1721 = scalar_lea.vmem %s3, 512
      %v1722 = vld [vmem:[%s1721] sm:$0xf]
      %v1723 = vld [vmem:[%s1721 + $0x4] sm:$0xf]
      %v1724 = vld [vmem:[%s1721 + $0x8] sm:$0xf]
      %v1725 = vld [vmem:[%s1721 + $0xc] sm:$0xf]
      %v1726 = vld [vmem:[%s1721 + $0x10] sm:$0xf]
      %v1727 = vld [vmem:[%s1721 + $0x14] sm:$0xf]
      %v1728 = vld [vmem:[%s1721 + $0x18] sm:$0xf]
      %v1729 = vld [vmem:[%s1721 + $0x1c] sm:$0xf]
      %v1730 = vld [vmem:[%s1721 + $0x20] sm:$0xf]
      %v1731 = vld [vmem:[%s1721 + $0x24] sm:$0xf]
      %v1732 = vld [vmem:[%s1721 + $0x28] sm:$0xf]
      %v1733 = vld [vmem:[%s1721 + $0x2c] sm:$0xf]
      %v1734 = vld [vmem:[%s1721 + $0x30] sm:$0xf]
      %v1735 = vld [vmem:[%s1721 + $0x34] sm:$0xf]
      %v1736 = vld [vmem:[%s1721 + $0x38] sm:$0xf]
      %v1737 = vld [vmem:[%s1721 + $0x3c] sm:$0xf]
      %v1754 = vunpack.c.l.b16 %v1722
      %v1755 = vunpack.c.l.b16 %v1723
      %v1756 = vunpack.c.l.b16 %v1724
      %v1757 = vunpack.c.l.b16 %v1725
      %v1758 = vunpack.c.l.b16 %v1726
      %v1759 = vunpack.c.l.b16 %v1727
      %v1760 = vunpack.c.l.b16 %v1728
      %v1761 = vunpack.c.l.b16 %v1729
      %v1762 = vunpack.c.l.b16 %v1730
      %v1763 = vunpack.c.l.b16 %v1731
      %v1764 = vunpack.c.l.b16 %v1732
      %v1765 = vunpack.c.l.b16 %v1733
      %v1766 = vunpack.c.l.b16 %v1734
      %v1767 = vunpack.c.l.b16 %v1735
      %v1768 = vunpack.c.l.b16 %v1736
      %v1769 = vunpack.c.l.b16 %v1737
      %v1770 = vpack.c.b16 %v1755, %v1754
      %v1771 = vpack.c.b16 %v1757, %v1756
      %v1772 = vpack.c.b16 %v1759, %v1758
      %v1773 = vpack.c.b16 %v1761, %v1760
      %v1774 = vpack.c.b16 %v1763, %v1762
      %v1775 = vpack.c.b16 %v1765, %v1764
      %v1776 = vpack.c.b16 %v1767, %v1766
      %v1777 = vpack.c.b16 %v1769, %v1768
      %1786 = vmatprep.subr.bf16.mxu0 0
      %1787 = vmatpush1.bf16.msra.mxu0 %v1777
      %1788 = vmatprep.subr.bf16.mxu0 0
      %1789 = vmatpush1.bf16.msra.mxu0 %v1776
      %1790 = vmatprep.subr.bf16.mxu0 0
      %1791 = vmatpush1.bf16.msra.mxu0 %v1775
      %1792 = vmatprep.subr.bf16.mxu0 0
      %1793 = vmatpush1.bf16.msra.mxu0 %v1774
      %1794 = vmatprep.subr.bf16.mxu0 0
      %1795 = vmatpush1.bf16.msra.mxu0 %v1773
      %1796 = vmatprep.subr.bf16.mxu0 0
      %1797 = vmatpush1.bf16.msra.mxu0 %v1772
      %1798 = vmatprep.subr.bf16.mxu0 0
      %1799 = vmatpush1.bf16.msra.mxu0 %v1771
      %1800 = vmatprep.subr.bf16.mxu0 0
      %1801 = vmatpush1.bf16.msra.mxu0 %v1770
      %1802 = vmatprep.subr.bf16.mxu0 0
      %1803 = vmatpush2.bf16.msra.mxu0 0
      %1804 = vmatprep.subr.bf16.mxu0 0
      %1805 = vmatpush2.bf16.msra.mxu0 0
      %1806 = vmatprep.subr.bf16.mxu0 0
      %1807 = vmatpush2.bf16.msra.mxu0 0
      %1808 = vmatprep.subr.bf16.mxu0 0
      %1809 = vmatpush2.bf16.msra.mxu0 0
      %1810 = vmatprep.subr.bf16.mxu0 0
      %1811 = vmatpush2.bf16.msra.mxu0 0
      %1812 = vmatprep.subr.bf16.mxu0 0
      %1813 = vmatpush2.bf16.msra.mxu0 0
      %1814 = vmatprep.subr.bf16.mxu0 0
      %1815 = vmatpush2.bf16.msra.mxu0 0
      %1816 = vmatprep.subr.bf16.mxu0 0
      %1817 = vmatpush2.bf16.msra.mxu0 0
      %1818 = vmatprep.mubr.bf16.mxu0 0
      %1819 = vmatmul.mubr.bf16.gmra.mxu0 %v1717
      %v1820 = vpop.f32.mrf.mxu0
      %v1821 = vadd.f32 0.0, %v1820
      %v1822 = vpop.f32.mrf.mxu0
      %v1823 = vpop.f32.mrf.mxu0
      %v1824 = vadd.f32 0.0, %v1823
      %v1825 = vpop.f32.mrf.mxu0
      %1826 = vmatprep.mubr.bf16.mxu0 0
      %1827 = vmatmul.mubr.bf16.gmra.mxu0 %v1718
      %v1828 = vpop.f32.mrf.mxu0
      %v1829 = vadd.f32 0.0, %v1828
      %v1830 = vpop.f32.mrf.mxu0
      %v1831 = vpop.f32.mrf.mxu0
      %v1832 = vadd.f32 0.0, %v1831
      %v1833 = vpop.f32.mrf.mxu0
      %1834 = vmatprep.mubr.bf16.mxu0 0
      %1835 = vmatmul.mubr.bf16.gmra.mxu0 %v1719
      %v1836 = vpop.f32.mrf.mxu0
      %v1837 = vadd.f32 0.0, %v1836
      %v1838 = vpop.f32.mrf.mxu0
      %v1839 = vpop.f32.mrf.mxu0
      %v1840 = vadd.f32 0.0, %v1839
      %v1841 = vpop.f32.mrf.mxu0
      %1842 = vmatprep.mubr.bf16.mxu0 0
      %1843 = vmatmul.mubr.bf16.gmra.mxu0 %v1720
      %v1844 = vpop.f32.mrf.mxu0
      %v1845 = vadd.f32 0.0, %v1844
      %v1846 = vpop.f32.mrf.mxu0
      %v1847 = vpop.f32.mrf.mxu0
      %v1848 = vadd.f32 0.0, %v1847
      %v1849 = vpop.f32.mrf.mxu0
      %1850 = vdwg.mxu0
      %v1851 = vadd.f32 %v1701, %v1821
      %v1852 = vadd.f32 %v1702, %v1824
      %v1853 = vadd.f32 %v1703, %v1829
      %v1854 = vadd.f32 %v1704, %v1832
      %v1855 = vadd.f32 %v1705, %v1837
      %v1856 = vadd.f32 %v1706, %v1840
      %v1857 = vadd.f32 %v1707, %v1845
      %v1858 = vadd.f32 %v1708, %v1848
      %1859 = vst [vmem:[%s271] sm:$0xff] %v1851
      %1860 = vst [vmem:[%s271 + $0x8] sm:$0xff] %v1852
      %1861 = vst [vmem:[%s271 + $0x10] sm:$0xff] %v1853
      %1862 = vst [vmem:[%s271 + $0x18] sm:$0xff] %v1854
      %1863 = vst [vmem:[%s271 + $0x20] sm:$0xff] %v1855
      %1864 = vst [vmem:[%s271 + $0x28] sm:$0xff] %v1856
      %1865 = vst [vmem:[%s271 + $0x30] sm:$0xff] %v1857
      %1866 = vst [vmem:[%s271 + $0x38] sm:$0xff] %v1858
      %p1867 = scmp.lt.s32.totalorder %s17, 1
      %s1868 = scalar_select %p1867, %s17, 1
      %s1869 = smul.addr %s1868, 8
      %s1870 = smul.addr %s1869, 8
      %s1871 = scalar_lea.vmem %s6, %s1870
      // Predicated region
      $region45: #{_lambda_.7} parent=43 // pred_check
        %p1872 = pneg %p171
      $region46: #{_lambda_.7} parent=43 // pred_check_branch
        %1874 = sbr.rel (%p1872) target = $region48
      $region47: #{_lambda_.7} parent=43 // pred_region
        _
      $region48: #{_lambda_.7} parent=43 // pred_fallthru
        _
    $region44: #{_lambda_.7} parent=5 // pred_fallthru
      _
    %p1875 = scmp.le.s32.totalorder 2, %s12
    // Predicated region
    $region49: #{_lambda_.7} parent=5 // pred_check
      %p1876 = pneg %p1875
    $region50: #{_lambda_.7} parent=5 // pred_check_branch
      %1878 = sbr.rel (%p1876) target = $region52
    $region51: #{_lambda_.7} parent=5 // pred_region
      %s1879 = ssub.s32 %s12, 2
      // Predicated region
      $region53: #{_lambda_.7} parent=51 // pred_check
        %p1880 = pneg %p177
      $region54: #{_lambda_.7} parent=51 // pred_check_branch
        %1882 = sbr.rel (%p1880) target = $region56
      $region55: #{_lambda_.7} parent=51 // pred_region
        %p1883 = scmp.lt.s32.totalorder %s18, 1
        %s1884 = scalar_select %p1883, %s18, 1
        %s1885 = smul.addr %s1884, 8
        %s1886 = smul.addr %s1885, 8
        %s1887 = scalar_lea.vmem %s6, %s1886
      $region56: #{_lambda_.7} parent=51 // pred_fallthru
        _
    $region52: #{_lambda_.7} parent=5 // pred_fallthru
      _
  $region6: #{_lambda_.7} parent=0 // loop_footer
    %s16 = sadd.s32 1, %s12
  $region7: #{_lambda_.7} parent=0 // loop_footer_branch
    %11 = sbr.rel target = $region3
  $region8: #{_lambda_.7} parent=0 // loop_exit
    _

</llo_original>
